<compile_context>
chip_gen: v7x
topology: tpu7x:2x2x1
jax: 0.10.0
libtpu: 0.0.40
codegen_flags: <defaults>
</compile_context>

<pallas_src>
import math
import functools

import jax
import jax.numpy as jnp
from jax import lax
from jax.experimental import pallas as pl
from jax.experimental.pallas import tpu as pltpu

NEG_SLOPE = 0.01          # nn.LeakyReLU default
WN_EPS = 1e-8             # WeightNormalizedLinear eps
LN_EPS = 1e-5             # nn.LayerNorm default eps
NEG_INF = -1e30


def _leaky(x):
    return jnp.where(x >= 0, x, NEG_SLOPE * x)


def _prenorm(wt):
    """Fold WeightNormalizedLinear (scale=False, bias=False) into the weight.

    wt = W.T with shape (..., in, out); dividing each output column by
    (||W_row||_2 + eps) once is exactly y = (x @ W.T) / (||W_row|| + eps).
    """
    norm = jnp.sqrt(jnp.sum(wt * wt, axis=-2, keepdims=True)) + WN_EPS
    return wt / norm


def _round_up(x, m):
    return (x + m - 1) // m * m


def _make_kernel(num_layers, heads, tb, n):
    TB, N = tb, n

    def kernel(xf_ref, mask_ref, emb_ref, cls_ref, wslab_ref, bslab_ref,
               fc1_ref, outw_ref, out_ref, res_ref):
        E = emb_ref.shape[1]
        dh = E // heads
        inv_sqrt_dh = 1.0 / math.sqrt(dh)

        # Disc.embbed + LeakyReLU on the whole (TB*N, C) point slab.
        # emb_ref has a zero row for the mask channel, so using all C channels
        # equals using x[..., :3].
        h_x = _leaky(jnp.dot(xf_ref[...], emb_ref[...],
                             preferred_element_type=jnp.float32))    # (TB*N, E)

        # key_padding_mask = (1 - x[..., 3]).bool(): mask bit != 1 -> ignore key.
        bias = jnp.where(mask_ref[...] == 1.0, 0.0, NEG_INF)         # (TB, N)

        x_cls = jnp.broadcast_to(cls_ref[...], (TB, E))              # (TB, E)

        for l in range(num_layers):                 # static unroll (num_layers small)
            base = l * 7
            w_fc0 = wslab_ref[base + 0]
            w_q = wslab_ref[base + 1]
            w_k = wslab_ref[base + 2]
            w_v = wslab_ref[base + 3]
            w_o = wslab_ref[base + 4]
            w_f1c = wslab_ref[base + 5]
            w_f2c = wslab_ref[base + 6]
            b_all = bslab_ref[l]                                     # (6, E)
            b_q, b_k, b_v, b_o = (b_all[0:1], b_all[1:2],
                                  b_all[2:3], b_all[3:4])
            ln_w, ln_b = b_all[4:5], b_all[5:6]

            res = x_cls

            # BlockCls.fc0 + act on the point cloud
            h = _leaky(jnp.dot(h_x, w_fc0,
                               preferred_element_type=jnp.float32))  # (TB*N, H)

            # nn.MultiheadAttention(query=x_cls, key=value=h, key_padding_mask)
            q = jnp.dot(x_cls, w_q, preferred_element_type=jnp.float32) + b_q
            k = jnp.dot(h, w_k, preferred_element_type=jnp.float32) + b_k
            v = jnp.dot(h, w_v, preferred_element_type=jnp.float32) + b_v
            # (TB*N, E) -> (TB, N, E) is layout-free (rows grouped per batch elem)
            k3 = k.reshape(TB, N, E)
            v3 = v.reshape(TB, N, E)

            heads_out = []
            for hh in range(heads):                 # static unroll (heads small)
                lo = hh * dh
                qh = q[:, lo:lo + dh]                                # (TB, dh)
                kh = k3[:, :, lo:lo + dh]                            # (TB, N, dh)
                vh = v3[:, :, lo:lo + dh]                            # (TB, N, dh)
                s = (jnp.sum(kh * qh[:, None, :], axis=-1) * inv_sqrt_dh
                     + bias)                                         # (TB, N)
                m = jnp.max(s, axis=-1, keepdims=True)
                p = jnp.exp(s - m)
                denom = jnp.sum(p, axis=-1, keepdims=True)
                p = p * pl.reciprocal(denom, approx=True)
                heads_out.append(jnp.sum(p[:, :, None] * vh, axis=1))  # (TB, dh)

            o_cat = jnp.concatenate(heads_out, axis=-1)              # (TB, E)
            attn = jnp.dot(o_cat, w_o,
                           preferred_element_type=jnp.float32) + b_o  # (TB, E)

            # fc1_cls + act, LayerNorm(x + res), fc2_cls + act
            x_c = _leaky(jnp.dot(attn, w_f1c,
                                 preferred_element_type=jnp.float32))  # (TB, H)
            z = x_c + res
            mu = jnp.mean(z, axis=-1, keepdims=True)
            zc = z - mu
            var = jnp.mean(zc * zc, axis=-1, keepdims=True)
            zn = zc * lax.rsqrt(var + LN_EPS)
            zn = zn * ln_w + ln_b
            x_cls = _leaky(jnp.dot(zn, w_f2c,
                                   preferred_element_type=jnp.float32))  # (TB, E)

        # mean-field residual output + Disc head (fc1 + act, out)
        res_ref[...] = x_cls                                         # (TB, E)
        y = _leaky(jnp.dot(x_cls, fc1_ref[...],
                           preferred_element_type=jnp.float32))      # (TB, H)
        out_ref[...] = jnp.dot(y, outw_ref[...],
                               preferred_element_type=jnp.float32)   # (TB, 1)

    return kernel


def init_params(key, n_dim=3, hidden=32, num_layers=2, heads=2):
    """Deterministic synthetic parameters matching the module's shapes.

    All linear weights are stored pre-transposed as (in_features, out_features).
    """
    E = hidden   # l_dim = hidden inside Disc.__init__
    H = hidden
    ks = iter(jax.random.split(key, 32))

    def nrm(shape, fan_in):
        return jax.random.normal(next(ks), shape, jnp.float32) / math.sqrt(fan_in)

    p = {}
    p["emb_wt"] = nrm((n_dim, E), n_dim)                         # embbed.weight.T
    p["cls"] = jax.random.normal(next(ks), (1, E), jnp.float32)  # cls_token
    # per-encoder-layer params (stacked on a leading layer axis)
    p["fc0_wt"] = nrm((num_layers, E, H), E)                     # fc0.weight.T
    p["fc1c_wt"] = nrm((num_layers, E, H), E)                    # fc1_cls.weight.T
    p["fc2c_wt"] = nrm((num_layers, H, E), H)                    # fc2_cls.weight.T
    p["wq"] = nrm((num_layers, E, E), E)                         # attn in_proj (q).T
    p["wk"] = nrm((num_layers, E, E), E)                         # attn in_proj (k).T
    p["wv"] = nrm((num_layers, E, E), E)                         # attn in_proj (v).T
    p["bq"] = jnp.zeros((num_layers, 1, E), jnp.float32)
    p["bk"] = jnp.zeros((num_layers, 1, E), jnp.float32)
    p["bv"] = jnp.zeros((num_layers, 1, E), jnp.float32)
    p["wo"] = nrm((num_layers, E, E), E)                         # attn out_proj.weight.T
    p["bo"] = jnp.full((num_layers, 1, E), 0.01, jnp.float32)    # _init_weights bias fill
    p["lnw"] = jnp.ones((num_layers, 1, H), jnp.float32)         # LayerNorm weight
    p["lnb"] = jnp.zeros((num_layers, 1, H), jnp.float32)        # LayerNorm bias
    # Disc head
    p["fc1_wt"] = nrm((E, H), E)                                 # Disc.fc1.weight.T
    p["out_wt"] = nrm((E, 1), E)                                 # Disc.out.weight.T
    return p


@functools.partial(jax.jit, static_argnames=("num_layers", "heads", "mean_field"))
def model_forward(x_stacked, params, num_layers=2, heads=2, mean_field=True):
    """ModelClass.forward on the stacked representation x = to_stacked_mask(batch)."""
    B, N, C = x_stacked.shape
    E = params["emb_wt"].shape[1]
    H = params["fc0_wt"].shape[2]
    n_dim = params["emb_wt"].shape[0]
    assert E == H            # l_dim = hidden in Disc.__init__
    assert E % heads == 0
    L = num_layers

    # ---- fold WeightNormalizedLinear norms into the weights (grid-invariant) ----
    emb_p = jnp.concatenate(
        [_prenorm(params["emb_wt"]),
         jnp.zeros((C - n_dim, E), jnp.float32)], axis=0)            # (C, E); mask row -> 0
    w_slab = jnp.stack(
        [_prenorm(params["fc0_wt"]), params["wq"], params["wk"],
         params["wv"], params["wo"], _prenorm(params["fc1c_wt"]),
         _prenorm(params["fc2c_wt"])], axis=1).reshape(L * 7, E, E)  # (7L, E, E)
    b_slab = jnp.concatenate(
        [params["bq"], params["bk"], params["bv"], params["bo"],
         params["lnw"], params["lnb"]], axis=1)                      # (L, 6, E)
    fc1_p = _prenorm(params["fc1_wt"])                               # (E, H)
    out_p = _prenorm(params["out_wt"])                               # (E, 1)
    cls = params["cls"]                                              # (1, E)

    # ---- batch tiling: TB elements per grid step ----
    TB = min(_round_up(B, 8), 64)
    B_pad = _round_up(B, TB)
    x_p = x_stacked.astype(jnp.float32)
    if B_pad != B:
        # zero-padded elements have mask bit 0 -> fully masked; sliced off below.
        x_p = jnp.pad(x_p, ((0, B_pad - B), (0, 0), (0, 0)))
    mask2d = x_p[..., 3]                                             # (B_pad, N)
    x_flat = x_p.reshape(B_pad * N, C)                               # (B_pad*N, C)

    kernel = _make_kernel(num_layers, heads, TB, N)

    def _const_spec(a):
        nd = a.ndim
        return pl.BlockSpec(a.shape, lambda b, _nd=nd: (0,) * _nd)

    grid = (B_pad // TB,)
    in_specs = [pl.BlockSpec((TB * N, C), lambda b: (b, 0)),
                pl.BlockSpec((TB, N), lambda b: (b, 0)),
                _const_spec(emb_p), _const_spec(cls),
                _const_spec(w_slab), _const_spec(b_slab),
                _const_spec(fc1_p), _const_spec(out_p)]
    out_specs = [pl.BlockSpec((TB, 1), lambda b: (b, 0)),
                 pl.BlockSpec((TB, E), lambda b: (b, 0))]
    out_shape = [jax.ShapeDtypeStruct((B_pad, 1), jnp.float32),
                 jax.ShapeDtypeStruct((B_pad, E), jnp.float32)]

    out_full, res_full = pl.pallas_call(
        kernel,
        out_shape=out_shape,
        grid_spec=pltpu.PrefetchScalarGridSpec(
            num_scalar_prefetch=0,
            grid=grid,
            in_specs=in_specs,
            out_specs=out_specs),
        compiler_params=pltpu.CompilerParams(
            dimension_semantics=("parallel",)),   # batch blocks are independent
    )(x_flat, mask2d, emb_p, cls, w_slab, b_slab, fc1_p, out_p)

    out = out_full[:B]       # == self.out(x_cls).squeeze(-1) -> (B, 1)
    res = res_full[:B]       # == res.squeeze(1)              -> (B, E)
    if mean_field:
        return out, res
    return out


if __name__ == "__main__":
    key = jax.random.PRNGKey(0)
    kp, kx = jax.random.split(key)

    B, N = 2, 8
    n_dim, hidden, num_layers, heads = 3, 32, 2, 2

    params = init_params(kp, n_dim=n_dim, hidden=hidden,
                         num_layers=num_layers, heads=heads)

    # Deterministic stacked input: 3 features + validity bit (1=real, 0=padded).
    feat = jax.random.normal(kx, (B, N, n_dim), jnp.float32)
    maskbit = jnp.array([[1, 1, 1, 1, 1, 0, 0, 0],
                         [1, 1, 1, 1, 0, 0, 0, 0]], jnp.float32)[:, :, None]
    x_stacked = jnp.concatenate([feat, maskbit], axis=-1)     # (B, N, 4)

    out, res = model_forward(x_stacked, params,
                             num_layers=num_layers, heads=heads, mean_field=True)
    jax.block_until_ready((out, res))
    assert out.shape == (B, 1) and res.shape == (B, hidden)
    print("KERNEL_OK")
</pallas_src>

<mosaic_0001>
module attributes {stable_mosaic.version = 11 : i64} {
  func.func @kernel(%arg0: i32, %arg1: memref<64x4xf32, #tpu.memory_space<vmem>>, %arg2: memref<8x8xf32, #tpu.memory_space<vmem>>, %arg3: memref<4x32xf32, #tpu.memory_space<vmem>>, %arg4: memref<1x32xf32, #tpu.memory_space<vmem>>, %arg5: memref<14x32x32xf32, #tpu.memory_space<vmem>>, %arg6: memref<2x6x32xf32, #tpu.memory_space<vmem>>, %arg7: memref<32x32xf32, #tpu.memory_space<vmem>>, %arg8: memref<32x1xf32, #tpu.memory_space<vmem>>, %arg9: memref<8x1xf32, #tpu.memory_space<vmem>>, %arg10: memref<8x32xf32, #tpu.memory_space<vmem>>) attributes {dimension_semantics = [#tpu.dimension_semantics<parallel>], iteration_bounds = array<i64: 1>, scalar_prefetch = 0 : i64, scratch_operands = 0 : i64, tpu.core_type = #tpu.core_type<tc>, window_params = [{transform_indices = @transform_0, window_bounds = array<i64: 64, 4>}, {transform_indices = @transform_1, window_bounds = array<i64: 8, 8>}, {pipeline_mode = #tpu.pipeline_mode<synchronous>, transform_indices = @transform_2, window_bounds = array<i64: 4, 32>}, {pipeline_mode = #tpu.pipeline_mode<synchronous>, transform_indices = @transform_3, window_bounds = array<i64: 1, 32>}, {pipeline_mode = #tpu.pipeline_mode<synchronous>, transform_indices = @transform_4, window_bounds = array<i64: 14, 32, 32>}, {pipeline_mode = #tpu.pipeline_mode<synchronous>, transform_indices = @transform_5, window_bounds = array<i64: 2, 6, 32>}, {pipeline_mode = #tpu.pipeline_mode<synchronous>, transform_indices = @transform_6, window_bounds = array<i64: 32, 32>}, {pipeline_mode = #tpu.pipeline_mode<synchronous>, transform_indices = @transform_7, window_bounds = array<i64: 32, 1>}, {transform_indices = @transform_8, window_bounds = array<i64: 8, 1>}, {transform_indices = @transform_9, window_bounds = array<i64: 8, 32>}]} {
    %c0 = arith.constant 0 : index
    %c0_0 = arith.constant 0 : index
    %0 = vector.load %arg1[%c0, %c0_0] : memref<64x4xf32, #tpu.memory_space<vmem>>, vector<64x4xf32>
    %c0_1 = arith.constant 0 : index
    %c0_2 = arith.constant 0 : index
    %1 = vector.load %arg3[%c0_1, %c0_2] : memref<4x32xf32, #tpu.memory_space<vmem>>, vector<4x32xf32>
    %cst = arith.constant dense<0.000000e+00> : vector<64x32xf32>
    %2 = tpu.matmul %0, %1, %cst {dimension_numbers = #tpu.dot_dimension_numbers<[1], [0], [0], [1], [0, 0, 1, 1], [], []>} : vector<64x4xf32>, vector<4x32xf32>, vector<64x32xf32> -> vector<64x32xf32>
    %cst_3 = arith.constant 0.000000e+00 : f32
    %3 = vector.broadcast %cst_3 : f32 to vector<64x32xf32>
    %4 = arith.cmpf oge, %2, %3 : vector<64x32xf32>
    %cst_4 = arith.constant 0.00999999977 : f32
    %5 = vector.broadcast %cst_4 : f32 to vector<64x32xf32>
    %6 = arith.mulf %5, %2 : vector<64x32xf32>
    %7 = arith.select %4, %2, %6 : vector<64x32xi1>, vector<64x32xf32>
    %c0_5 = arith.constant 0 : index
    %c0_6 = arith.constant 0 : index
    %8 = vector.load %arg2[%c0_5, %c0_6] : memref<8x8xf32, #tpu.memory_space<vmem>>, vector<8x8xf32>
    %cst_7 = arith.constant 1.000000e+00 : f32
    %9 = vector.broadcast %cst_7 : f32 to vector<8x8xf32>
    %10 = arith.cmpf oeq, %8, %9 : vector<8x8xf32>
    %cst_8 = arith.constant 0.000000e+00 : f32
    %cst_9 = arith.constant -1.000000e+30 : f32
    %11 = vector.broadcast %cst_8 : f32 to vector<8x8xf32>
    %12 = vector.broadcast %cst_9 : f32 to vector<8x8xf32>
    %13 = arith.select %10, %11, %12 : vector<8x8xi1>, vector<8x8xf32>
    %c0_10 = arith.constant 0 : index
    %c0_11 = arith.constant 0 : index
    %14 = vector.load %arg4[%c0_10, %c0_11] : memref<1x32xf32, #tpu.memory_space<vmem>>, vector<1x32xf32>
    %15 = vector.shape_cast %14 : vector<1x32xf32> to vector<1x32xf32>
    %16 = vector.broadcast %15 : vector<1x32xf32> to vector<8x32xf32>
    %c0_12 = arith.constant 0 : index
    %c0_13 = arith.constant 0 : index
    %c0_14 = arith.constant 0 : index
    %17 = vector.load %arg5[%c0_12, %c0_13, %c0_14] : memref<14x32x32xf32, #tpu.memory_space<vmem>>, vector<1x32x32xf32>
    %18 = vector.shape_cast %17 : vector<1x32x32xf32> to vector<32x32xf32>
    %c1 = arith.constant 1 : index
    %c0_15 = arith.constant 0 : index
    %c0_16 = arith.constant 0 : index
    %19 = vector.load %arg5[%c1, %c0_15, %c0_16] : memref<14x32x32xf32, #tpu.memory_space<vmem>>, vector<1x32x32xf32>
    %20 = vector.shape_cast %19 : vector<1x32x32xf32> to vector<32x32xf32>
    %c2 = arith.constant 2 : index
    %c0_17 = arith.constant 0 : index
    %c0_18 = arith.constant 0 : index
    %21 = vector.load %arg5[%c2, %c0_17, %c0_18] : memref<14x32x32xf32, #tpu.memory_space<vmem>>, vector<1x32x32xf32>
    %22 = vector.shape_cast %21 : vector<1x32x32xf32> to vector<32x32xf32>
    %c3 = arith.constant 3 : index
    %c0_19 = arith.constant 0 : index
    %c0_20 = arith.constant 0 : index
    %23 = vector.load %arg5[%c3, %c0_19, %c0_20] : memref<14x32x32xf32, #tpu.memory_space<vmem>>, vector<1x32x32xf32>
    %24 = vector.shape_cast %23 : vector<1x32x32xf32> to vector<32x32xf32>
    %c4 = arith.constant 4 : index
    %c0_21 = arith.constant 0 : index
    %c0_22 = arith.constant 0 : index
    %25 = vector.load %arg5[%c4, %c0_21, %c0_22] : memref<14x32x32xf32, #tpu.memory_space<vmem>>, vector<1x32x32xf32>
    %26 = vector.shape_cast %25 : vector<1x32x32xf32> to vector<32x32xf32>
    %c5 = arith.constant 5 : index
    %c0_23 = arith.constant 0 : index
    %c0_24 = arith.constant 0 : index
    %27 = vector.load %arg5[%c5, %c0_23, %c0_24] : memref<14x32x32xf32, #tpu.memory_space<vmem>>, vector<1x32x32xf32>
    %28 = vector.shape_cast %27 : vector<1x32x32xf32> to vector<32x32xf32>
    %c6 = arith.constant 6 : index
    %c0_25 = arith.constant 0 : index
    %c0_26 = arith.constant 0 : index
    %29 = vector.load %arg5[%c6, %c0_25, %c0_26] : memref<14x32x32xf32, #tpu.memory_space<vmem>>, vector<1x32x32xf32>
    %30 = vector.shape_cast %29 : vector<1x32x32xf32> to vector<32x32xf32>
    %c0_27 = arith.constant 0 : index
    %c0_28 = arith.constant 0 : index
    %c0_29 = arith.constant 0 : index
    %31 = vector.load %arg6[%c0_27, %c0_28, %c0_29] : memref<2x6x32xf32, #tpu.memory_space<vmem>>, vector<1x6x32xf32>
    %32 = vector.shape_cast %31 : vector<1x6x32xf32> to vector<6x32xf32>
    %33 = vector.extract_strided_slice %32 {offsets = [0, 0], sizes = [1, 32], strides = [1, 1]} : vector<6x32xf32> to vector<1x32xf32>
    %34 = vector.extract_strided_slice %32 {offsets = [1, 0], sizes = [1, 32], strides = [1, 1]} : vector<6x32xf32> to vector<1x32xf32>
    %35 = vector.extract_strided_slice %32 {offsets = [2, 0], sizes = [1, 32], strides = [1, 1]} : vector<6x32xf32> to vector<1x32xf32>
    %36 = vector.extract_strided_slice %32 {offsets = [3, 0], sizes = [1, 32], strides = [1, 1]} : vector<6x32xf32> to vector<1x32xf32>
    %37 = vector.extract_strided_slice %32 {offsets = [4, 0], sizes = [1, 32], strides = [1, 1]} : vector<6x32xf32> to vector<1x32xf32>
    %38 = vector.extract_strided_slice %32 {offsets = [5, 0], sizes = [1, 32], strides = [1, 1]} : vector<6x32xf32> to vector<1x32xf32>
    %cst_30 = arith.constant dense<0.000000e+00> : vector<64x32xf32>
    %39 = tpu.matmul %7, %18, %cst_30 {dimension_numbers = #tpu.dot_dimension_numbers<[1], [0], [0], [1], [0, 0, 1, 1], [], []>} : vector<64x32xf32>, vector<32x32xf32>, vector<64x32xf32> -> vector<64x32xf32>
    %cst_31 = arith.constant 0.000000e+00 : f32
    %40 = vector.broadcast %cst_31 : f32 to vector<64x32xf32>
    %41 = arith.cmpf oge, %39, %40 : vector<64x32xf32>
    %cst_32 = arith.constant 0.00999999977 : f32
    %42 = vector.broadcast %cst_32 : f32 to vector<64x32xf32>
    %43 = arith.mulf %42, %39 : vector<64x32xf32>
    %44 = arith.select %41, %39, %43 : vector<64x32xi1>, vector<64x32xf32>
    %cst_33 = arith.constant dense<0.000000e+00> : vector<8x32xf32>
    %45 = tpu.matmul %16, %20, %cst_33 {dimension_numbers = #tpu.dot_dimension_numbers<[1], [0], [0], [1], [0, 0, 1, 1], [], []>} : vector<8x32xf32>, vector<32x32xf32>, vector<8x32xf32> -> vector<8x32xf32>
    %46 = vector.broadcast %33 : vector<1x32xf32> to vector<8x32xf32>
    %47 = arith.addf %45, %46 : vector<8x32xf32>
    %cst_34 = arith.constant dense<0.000000e+00> : vector<64x32xf32>
    %48 = tpu.matmul %44, %22, %cst_34 {dimension_numbers = #tpu.dot_dimension_numbers<[1], [0], [0], [1], [0, 0, 1, 1], [], []>} : vector<64x32xf32>, vector<32x32xf32>, vector<64x32xf32> -> vector<64x32xf32>
    %49 = vector.broadcast %34 : vector<1x32xf32> to vector<64x32xf32>
    %50 = arith.addf %48, %49 : vector<64x32xf32>
    %cst_35 = arith.constant dense<0.000000e+00> : vector<64x32xf32>
    %51 = tpu.matmul %44, %24, %cst_35 {dimension_numbers = #tpu.dot_dimension_numbers<[1], [0], [0], [1], [0, 0, 1, 1], [], []>} : vector<64x32xf32>, vector<32x32xf32>, vector<64x32xf32> -> vector<64x32xf32>
    %52 = vector.broadcast %35 : vector<1x32xf32> to vector<64x32xf32>
    %53 = arith.addf %51, %52 : vector<64x32xf32>
    %54 = vector.shape_cast %50 : vector<64x32xf32> to vector<8x8x32xf32>
    %55 = vector.shape_cast %53 : vector<64x32xf32> to vector<8x8x32xf32>
    %56 = vector.extract_strided_slice %47 {offsets = [0, 0], sizes = [8, 16], strides = [1, 1]} : vector<8x32xf32> to vector<8x16xf32>
    %57 = vector.extract_strided_slice %54 {offsets = [0, 0, 0], sizes = [8, 8, 16], strides = [1, 1, 1]} : vector<8x8x32xf32> to vector<8x8x16xf32>
    %58 = vector.extract_strided_slice %55 {offsets = [0, 0, 0], sizes = [8, 8, 16], strides = [1, 1, 1]} : vector<8x8x32xf32> to vector<8x8x16xf32>
    %59 = vector.shape_cast %56 : vector<8x16xf32> to vector<8x1x16xf32>
    %60 = vector.broadcast %59 : vector<8x1x16xf32> to vector<8x8x16xf32>
    %61 = arith.mulf %57, %60 : vector<8x8x16xf32>
    %cst_36 = arith.constant dense<0.000000e+00> : vector<8x8xf32>
    %62 = vector.multi_reduction <add>, %61, %cst_36 [2] : vector<8x8x16xf32> to vector<8x8xf32>
    %cst_37 = arith.constant 2.500000e-01 : f32
    %63 = vector.broadcast %cst_37 : f32 to vector<8x8xf32>
    %64 = arith.mulf %62, %63 : vector<8x8xf32>
    %65 = arith.addf %64, %13 : vector<8x8xf32>
    %cst_38 = arith.constant dense<0xFF800000> : vector<8xf32>
    %66 = vector.multi_reduction <maximumf>, %65, %cst_38 [1] : vector<8x8xf32> to vector<8xf32>
    %67 = vector.shape_cast %66 : vector<8xf32> to vector<8x1xf32>
    %68 = vector.broadcast %67 : vector<8x1xf32> to vector<8x8xf32>
    %69 = arith.subf %65, %68 : vector<8x8xf32>
    %70 = math.exp %69 : vector<8x8xf32>
    %cst_39 = arith.constant dense<0.000000e+00> : vector<8xf32>
    %71 = vector.multi_reduction <add>, %70, %cst_39 [1] : vector<8x8xf32> to vector<8xf32>
    %72 = vector.shape_cast %71 : vector<8xf32> to vector<8x1xf32>
    %73 = tpu.reciprocal %72 {approx = true} : vector<8x1xf32> -> vector<8x1xf32>
    %74 = vector.broadcast %73 : vector<8x1xf32> to vector<8x8xf32>
    %75 = arith.mulf %70, %74 : vector<8x8xf32>
    %76 = vector.shape_cast %75 : vector<8x8xf32> to vector<8x8x1xf32>
    %77 = vector.broadcast %76 : vector<8x8x1xf32> to vector<8x8x16xf32>
    %78 = arith.mulf %77, %58 : vector<8x8x16xf32>
    %cst_40 = arith.constant dense<0.000000e+00> : vector<8x16xf32>
    %79 = vector.multi_reduction <add>, %78, %cst_40 [1] : vector<8x8x16xf32> to vector<8x16xf32>
    %80 = vector.extract_strided_slice %47 {offsets = [0, 16], sizes = [8, 16], strides = [1, 1]} : vector<8x32xf32> to vector<8x16xf32>
    %81 = vector.extract_strided_slice %54 {offsets = [0, 0, 16], sizes = [8, 8, 16], strides = [1, 1, 1]} : vector<8x8x32xf32> to vector<8x8x16xf32>
    %82 = vector.extract_strided_slice %55 {offsets = [0, 0, 16], sizes = [8, 8, 16], strides = [1, 1, 1]} : vector<8x8x32xf32> to vector<8x8x16xf32>
    %83 = vector.shape_cast %80 : vector<8x16xf32> to vector<8x1x16xf32>
    %84 = vector.broadcast %83 : vector<8x1x16xf32> to vector<8x8x16xf32>
    %85 = arith.mulf %81, %84 : vector<8x8x16xf32>
    %cst_41 = arith.constant dense<0.000000e+00> : vector<8x8xf32>
    %86 = vector.multi_reduction <add>, %85, %cst_41 [2] : vector<8x8x16xf32> to vector<8x8xf32>
    %cst_42 = arith.constant 2.500000e-01 : f32
    %87 = vector.broadcast %cst_42 : f32 to vector<8x8xf32>
    %88 = arith.mulf %86, %87 : vector<8x8xf32>
    %89 = arith.addf %88, %13 : vector<8x8xf32>
    %cst_43 = arith.constant dense<0xFF800000> : vector<8xf32>
    %90 = vector.multi_reduction <maximumf>, %89, %cst_43 [1] : vector<8x8xf32> to vector<8xf32>
    %91 = vector.shape_cast %90 : vector<8xf32> to vector<8x1xf32>
    %92 = vector.broadcast %91 : vector<8x1xf32> to vector<8x8xf32>
    %93 = arith.subf %89, %92 : vector<8x8xf32>
    %94 = math.exp %93 : vector<8x8xf32>
    %cst_44 = arith.constant dense<0.000000e+00> : vector<8xf32>
    %95 = vector.multi_reduction <add>, %94, %cst_44 [1] : vector<8x8xf32> to vector<8xf32>
    %96 = vector.shape_cast %95 : vector<8xf32> to vector<8x1xf32>
    %97 = tpu.reciprocal %96 {approx = true} : vector<8x1xf32> -> vector<8x1xf32>
    %98 = vector.broadcast %97 : vector<8x1xf32> to vector<8x8xf32>
    %99 = arith.mulf %94, %98 : vector<8x8xf32>
    %100 = vector.shape_cast %99 : vector<8x8xf32> to vector<8x8x1xf32>
    %101 = vector.broadcast %100 : vector<8x8x1xf32> to vector<8x8x16xf32>
    %102 = arith.mulf %101, %82 : vector<8x8x16xf32>
    %cst_45 = arith.constant dense<0.000000e+00> : vector<8x16xf32>
    %103 = vector.multi_reduction <add>, %102, %cst_45 [1] : vector<8x8x16xf32> to vector<8x16xf32>
    %104 = tpu.concatenate %79, %103 in 1 : vector<8x16xf32>, vector<8x16xf32> -> vector<8x32xf32>
    %cst_46 = arith.constant dense<0.000000e+00> : vector<8x32xf32>
    %105 = tpu.matmul %104, %26, %cst_46 {dimension_numbers = #tpu.dot_dimension_numbers<[1], [0], [0], [1], [0, 0, 1, 1], [], []>} : vector<8x32xf32>, vector<32x32xf32>, vector<8x32xf32> -> vector<8x32xf32>
    %106 = vector.broadcast %36 : vector<1x32xf32> to vector<8x32xf32>
    %107 = arith.addf %105, %106 : vector<8x32xf32>
    %cst_47 = arith.constant dense<0.000000e+00> : vector<8x32xf32>
    %108 = tpu.matmul %107, %28, %cst_47 {dimension_numbers = #tpu.dot_dimension_numbers<[1], [0], [0], [1], [0, 0, 1, 1], [], []>} : vector<8x32xf32>, vector<32x32xf32>, vector<8x32xf32> -> vector<8x32xf32>
    %cst_48 = arith.constant 0.000000e+00 : f32
    %109 = vector.broadcast %cst_48 : f32 to vector<8x32xf32>
    %110 = arith.cmpf oge, %108, %109 : vector<8x32xf32>
    %cst_49 = arith.constant 0.00999999977 : f32
    %111 = vector.broadcast %cst_49 : f32 to vector<8x32xf32>
    %112 = arith.mulf %111, %108 : vector<8x32xf32>
    %113 = arith.select %110, %108, %112 : vector<8x32xi1>, vector<8x32xf32>
    %114 = arith.addf %113, %16 : vector<8x32xf32>
    %cst_50 = arith.constant dense<0.000000e+00> : vector<8xf32>
    %115 = vector.multi_reduction <add>, %114, %cst_50 [1] : vector<8x32xf32> to vector<8xf32>
    %116 = vector.shape_cast %115 : vector<8xf32> to vector<8x1xf32>
    %cst_51 = arith.constant 3.200000e+01 : f32
    %117 = vector.broadcast %cst_51 : f32 to vector<8x1xf32>
    %118 = arith.divf %116, %117 : vector<8x1xf32>
    %119 = vector.broadcast %118 : vector<8x1xf32> to vector<8x32xf32>
    %120 = arith.subf %114, %119 : vector<8x32xf32>
    %121 = arith.mulf %120, %120 : vector<8x32xf32>
    %cst_52 = arith.constant dense<0.000000e+00> : vector<8xf32>
    %122 = vector.multi_reduction <add>, %121, %cst_52 [1] : vector<8x32xf32> to vector<8xf32>
    %123 = vector.shape_cast %122 : vector<8xf32> to vector<8x1xf32>
    %cst_53 = arith.constant 3.200000e+01 : f32
    %124 = vector.broadcast %cst_53 : f32 to vector<8x1xf32>
    %125 = arith.divf %123, %124 : vector<8x1xf32>
    %cst_54 = arith.constant 9.99999974E-6 : f32
    %126 = vector.broadcast %cst_54 : f32 to vector<8x1xf32>
    %127 = arith.addf %125, %126 : vector<8x1xf32>
    %128 = math.rsqrt %127 : vector<8x1xf32>
    %129 = vector.broadcast %128 : vector<8x1xf32> to vector<8x32xf32>
    %130 = arith.mulf %120, %129 : vector<8x32xf32>
    %131 = vector.broadcast %37 : vector<1x32xf32> to vector<8x32xf32>
    %132 = arith.mulf %130, %131 : vector<8x32xf32>
    %133 = vector.broadcast %38 : vector<1x32xf32> to vector<8x32xf32>
    %134 = arith.addf %132, %133 : vector<8x32xf32>
    %cst_55 = arith.constant dense<0.000000e+00> : vector<8x32xf32>
    %135 = tpu.matmul %134, %30, %cst_55 {dimension_numbers = #tpu.dot_dimension_numbers<[1], [0], [0], [1], [0, 0, 1, 1], [], []>} : vector<8x32xf32>, vector<32x32xf32>, vector<8x32xf32> -> vector<8x32xf32>
    %cst_56 = arith.constant 0.000000e+00 : f32
    %136 = vector.broadcast %cst_56 : f32 to vector<8x32xf32>
    %137 = arith.cmpf oge, %135, %136 : vector<8x32xf32>
    %cst_57 = arith.constant 0.00999999977 : f32
    %138 = vector.broadcast %cst_57 : f32 to vector<8x32xf32>
    %139 = arith.mulf %138, %135 : vector<8x32xf32>
    %140 = arith.select %137, %135, %139 : vector<8x32xi1>, vector<8x32xf32>
    %c7 = arith.constant 7 : index
    %c0_58 = arith.constant 0 : index
    %c0_59 = arith.constant 0 : index
    %141 = vector.load %arg5[%c7, %c0_58, %c0_59] : memref<14x32x32xf32, #tpu.memory_space<vmem>>, vector<1x32x32xf32>
    %142 = vector.shape_cast %141 : vector<1x32x32xf32> to vector<32x32xf32>
    %c8 = arith.constant 8 : index
    %c0_60 = arith.constant 0 : index
    %c0_61 = arith.constant 0 : index
    %143 = vector.load %arg5[%c8, %c0_60, %c0_61] : memref<14x32x32xf32, #tpu.memory_space<vmem>>, vector<1x32x32xf32>
    %144 = vector.shape_cast %143 : vector<1x32x32xf32> to vector<32x32xf32>
    %c9 = arith.constant 9 : index
    %c0_62 = arith.constant 0 : index
    %c0_63 = arith.constant 0 : index
    %145 = vector.load %arg5[%c9, %c0_62, %c0_63] : memref<14x32x32xf32, #tpu.memory_space<vmem>>, vector<1x32x32xf32>
    %146 = vector.shape_cast %145 : vector<1x32x32xf32> to vector<32x32xf32>
    %c10 = arith.constant 10 : index
    %c0_64 = arith.constant 0 : index
    %c0_65 = arith.constant 0 : index
    %147 = vector.load %arg5[%c10, %c0_64, %c0_65] : memref<14x32x32xf32, #tpu.memory_space<vmem>>, vector<1x32x32xf32>
    %148 = vector.shape_cast %147 : vector<1x32x32xf32> to vector<32x32xf32>
    %c11 = arith.constant 11 : index
    %c0_66 = arith.constant 0 : index
    %c0_67 = arith.constant 0 : index
    %149 = vector.load %arg5[%c11, %c0_66, %c0_67] : memref<14x32x32xf32, #tpu.memory_space<vmem>>, vector<1x32x32xf32>
    %150 = vector.shape_cast %149 : vector<1x32x32xf32> to vector<32x32xf32>
    %c12 = arith.constant 12 : index
    %c0_68 = arith.constant 0 : index
    %c0_69 = arith.constant 0 : index
    %151 = vector.load %arg5[%c12, %c0_68, %c0_69] : memref<14x32x32xf32, #tpu.memory_space<vmem>>, vector<1x32x32xf32>
    %152 = vector.shape_cast %151 : vector<1x32x32xf32> to vector<32x32xf32>
    %c13 = arith.constant 13 : index
    %c0_70 = arith.constant 0 : index
    %c0_71 = arith.constant 0 : index
    %153 = vector.load %arg5[%c13, %c0_70, %c0_71] : memref<14x32x32xf32, #tpu.memory_space<vmem>>, vector<1x32x32xf32>
    %154 = vector.shape_cast %153 : vector<1x32x32xf32> to vector<32x32xf32>
    %c1_72 = arith.constant 1 : index
    %c0_73 = arith.constant 0 : index
    %c0_74 = arith.constant 0 : index
    %155 = vector.load %arg6[%c1_72, %c0_73, %c0_74] : memref<2x6x32xf32, #tpu.memory_space<vmem>>, vector<1x6x32xf32>
    %156 = vector.shape_cast %155 : vector<1x6x32xf32> to vector<6x32xf32>
    %157 = vector.extract_strided_slice %156 {offsets = [0, 0], sizes = [1, 32], strides = [1, 1]} : vector<6x32xf32> to vector<1x32xf32>
    %158 = vector.extract_strided_slice %156 {offsets = [1, 0], sizes = [1, 32], strides = [1, 1]} : vector<6x32xf32> to vector<1x32xf32>
    %159 = vector.extract_strided_slice %156 {offsets = [2, 0], sizes = [1, 32], strides = [1, 1]} : vector<6x32xf32> to vector<1x32xf32>
    %160 = vector.extract_strided_slice %156 {offsets = [3, 0], sizes = [1, 32], strides = [1, 1]} : vector<6x32xf32> to vector<1x32xf32>
    %161 = vector.extract_strided_slice %156 {offsets = [4, 0], sizes = [1, 32], strides = [1, 1]} : vector<6x32xf32> to vector<1x32xf32>
    %162 = vector.extract_strided_slice %156 {offsets = [5, 0], sizes = [1, 32], strides = [1, 1]} : vector<6x32xf32> to vector<1x32xf32>
    %cst_75 = arith.constant dense<0.000000e+00> : vector<64x32xf32>
    %163 = tpu.matmul %7, %142, %cst_75 {dimension_numbers = #tpu.dot_dimension_numbers<[1], [0], [0], [1], [0, 0, 1, 1], [], []>} : vector<64x32xf32>, vector<32x32xf32>, vector<64x32xf32> -> vector<64x32xf32>
    %cst_76 = arith.constant 0.000000e+00 : f32
    %164 = vector.broadcast %cst_76 : f32 to vector<64x32xf32>
    %165 = arith.cmpf oge, %163, %164 : vector<64x32xf32>
    %cst_77 = arith.constant 0.00999999977 : f32
    %166 = vector.broadcast %cst_77 : f32 to vector<64x32xf32>
    %167 = arith.mulf %166, %163 : vector<64x32xf32>
    %168 = arith.select %165, %163, %167 : vector<64x32xi1>, vector<64x32xf32>
    %cst_78 = arith.constant dense<0.000000e+00> : vector<8x32xf32>
    %169 = tpu.matmul %140, %144, %cst_78 {dimension_numbers = #tpu.dot_dimension_numbers<[1], [0], [0], [1], [0, 0, 1, 1], [], []>} : vector<8x32xf32>, vector<32x32xf32>, vector<8x32xf32> -> vector<8x32xf32>
    %170 = vector.broadcast %157 : vector<1x32xf32> to vector<8x32xf32>
    %171 = arith.addf %169, %170 : vector<8x32xf32>
    %cst_79 = arith.constant dense<0.000000e+00> : vector<64x32xf32>
    %172 = tpu.matmul %168, %146, %cst_79 {dimension_numbers = #tpu.dot_dimension_numbers<[1], [0], [0], [1], [0, 0, 1, 1], [], []>} : vector<64x32xf32>, vector<32x32xf32>, vector<64x32xf32> -> vector<64x32xf32>
    %173 = vector.broadcast %158 : vector<1x32xf32> to vector<64x32xf32>
    %174 = arith.addf %172, %173 : vector<64x32xf32>
    %cst_80 = arith.constant dense<0.000000e+00> : vector<64x32xf32>
    %175 = tpu.matmul %168, %148, %cst_80 {dimension_numbers = #tpu.dot_dimension_numbers<[1], [0], [0], [1], [0, 0, 1, 1], [], []>} : vector<64x32xf32>, vector<32x32xf32>, vector<64x32xf32> -> vector<64x32xf32>
    %176 = vector.broadcast %159 : vector<1x32xf32> to vector<64x32xf32>
    %177 = arith.addf %175, %176 : vector<64x32xf32>
    %178 = vector.shape_cast %174 : vector<64x32xf32> to vector<8x8x32xf32>
    %179 = vector.shape_cast %177 : vector<64x32xf32> to vector<8x8x32xf32>
    %180 = vector.extract_strided_slice %171 {offsets = [0, 0], sizes = [8, 16], strides = [1, 1]} : vector<8x32xf32> to vector<8x16xf32>
    %181 = vector.extract_strided_slice %178 {offsets = [0, 0, 0], sizes = [8, 8, 16], strides = [1, 1, 1]} : vector<8x8x32xf32> to vector<8x8x16xf32>
    %182 = vector.extract_strided_slice %179 {offsets = [0, 0, 0], sizes = [8, 8, 16], strides = [1, 1, 1]} : vector<8x8x32xf32> to vector<8x8x16xf32>
    %183 = vector.shape_cast %180 : vector<8x16xf32> to vector<8x1x16xf32>
    %184 = vector.broadcast %183 : vector<8x1x16xf32> to vector<8x8x16xf32>
    %185 = arith.mulf %181, %184 : vector<8x8x16xf32>
    %cst_81 = arith.constant dense<0.000000e+00> : vector<8x8xf32>
    %186 = vector.multi_reduction <add>, %185, %cst_81 [2] : vector<8x8x16xf32> to vector<8x8xf32>
    %cst_82 = arith.constant 2.500000e-01 : f32
    %187 = vector.broadcast %cst_82 : f32 to vector<8x8xf32>
    %188 = arith.mulf %186, %187 : vector<8x8xf32>
    %189 = arith.addf %188, %13 : vector<8x8xf32>
    %cst_83 = arith.constant dense<0xFF800000> : vector<8xf32>
    %190 = vector.multi_reduction <maximumf>, %189, %cst_83 [1] : vector<8x8xf32> to vector<8xf32>
    %191 = vector.shape_cast %190 : vector<8xf32> to vector<8x1xf32>
    %192 = vector.broadcast %191 : vector<8x1xf32> to vector<8x8xf32>
    %193 = arith.subf %189, %192 : vector<8x8xf32>
    %194 = math.exp %193 : vector<8x8xf32>
    %cst_84 = arith.constant dense<0.000000e+00> : vector<8xf32>
    %195 = vector.multi_reduction <add>, %194, %cst_84 [1] : vector<8x8xf32> to vector<8xf32>
    %196 = vector.shape_cast %195 : vector<8xf32> to vector<8x1xf32>
    %197 = tpu.reciprocal %196 {approx = true} : vector<8x1xf32> -> vector<8x1xf32>
    %198 = vector.broadcast %197 : vector<8x1xf32> to vector<8x8xf32>
    %199 = arith.mulf %194, %198 : vector<8x8xf32>
    %200 = vector.shape_cast %199 : vector<8x8xf32> to vector<8x8x1xf32>
    %201 = vector.broadcast %200 : vector<8x8x1xf32> to vector<8x8x16xf32>
    %202 = arith.mulf %201, %182 : vector<8x8x16xf32>
    %cst_85 = arith.constant dense<0.000000e+00> : vector<8x16xf32>
    %203 = vector.multi_reduction <add>, %202, %cst_85 [1] : vector<8x8x16xf32> to vector<8x16xf32>
    %204 = vector.extract_strided_slice %171 {offsets = [0, 16], sizes = [8, 16], strides = [1, 1]} : vector<8x32xf32> to vector<8x16xf32>
    %205 = vector.extract_strided_slice %178 {offsets = [0, 0, 16], sizes = [8, 8, 16], strides = [1, 1, 1]} : vector<8x8x32xf32> to vector<8x8x16xf32>
    %206 = vector.extract_strided_slice %179 {offsets = [0, 0, 16], sizes = [8, 8, 16], strides = [1, 1, 1]} : vector<8x8x32xf32> to vector<8x8x16xf32>
    %207 = vector.shape_cast %204 : vector<8x16xf32> to vector<8x1x16xf32>
    %208 = vector.broadcast %207 : vector<8x1x16xf32> to vector<8x8x16xf32>
    %209 = arith.mulf %205, %208 : vector<8x8x16xf32>
    %cst_86 = arith.constant dense<0.000000e+00> : vector<8x8xf32>
    %210 = vector.multi_reduction <add>, %209, %cst_86 [2] : vector<8x8x16xf32> to vector<8x8xf32>
    %cst_87 = arith.constant 2.500000e-01 : f32
    %211 = vector.broadcast %cst_87 : f32 to vector<8x8xf32>
    %212 = arith.mulf %210, %211 : vector<8x8xf32>
    %213 = arith.addf %212, %13 : vector<8x8xf32>
    %cst_88 = arith.constant dense<0xFF800000> : vector<8xf32>
    %214 = vector.multi_reduction <maximumf>, %213, %cst_88 [1] : vector<8x8xf32> to vector<8xf32>
    %215 = vector.shape_cast %214 : vector<8xf32> to vector<8x1xf32>
    %216 = vector.broadcast %215 : vector<8x1xf32> to vector<8x8xf32>
    %217 = arith.subf %213, %216 : vector<8x8xf32>
    %218 = math.exp %217 : vector<8x8xf32>
    %cst_89 = arith.constant dense<0.000000e+00> : vector<8xf32>
    %219 = vector.multi_reduction <add>, %218, %cst_89 [1] : vector<8x8xf32> to vector<8xf32>
    %220 = vector.shape_cast %219 : vector<8xf32> to vector<8x1xf32>
    %221 = tpu.reciprocal %220 {approx = true} : vector<8x1xf32> -> vector<8x1xf32>
    %222 = vector.broadcast %221 : vector<8x1xf32> to vector<8x8xf32>
    %223 = arith.mulf %218, %222 : vector<8x8xf32>
    %224 = vector.shape_cast %223 : vector<8x8xf32> to vector<8x8x1xf32>
    %225 = vector.broadcast %224 : vector<8x8x1xf32> to vector<8x8x16xf32>
    %226 = arith.mulf %225, %206 : vector<8x8x16xf32>
    %cst_90 = arith.constant dense<0.000000e+00> : vector<8x16xf32>
    %227 = vector.multi_reduction <add>, %226, %cst_90 [1] : vector<8x8x16xf32> to vector<8x16xf32>
    %228 = tpu.concatenate %203, %227 in 1 : vector<8x16xf32>, vector<8x16xf32> -> vector<8x32xf32>
    %cst_91 = arith.constant dense<0.000000e+00> : vector<8x32xf32>
    %229 = tpu.matmul %228, %150, %cst_91 {dimension_numbers = #tpu.dot_dimension_numbers<[1], [0], [0], [1], [0, 0, 1, 1], [], []>} : vector<8x32xf32>, vector<32x32xf32>, vector<8x32xf32> -> vector<8x32xf32>
    %230 = vector.broadcast %160 : vector<1x32xf32> to vector<8x32xf32>
    %231 = arith.addf %229, %230 : vector<8x32xf32>
    %cst_92 = arith.constant dense<0.000000e+00> : vector<8x32xf32>
    %232 = tpu.matmul %231, %152, %cst_92 {dimension_numbers = #tpu.dot_dimension_numbers<[1], [0], [0], [1], [0, 0, 1, 1], [], []>} : vector<8x32xf32>, vector<32x32xf32>, vector<8x32xf32> -> vector<8x32xf32>
    %cst_93 = arith.constant 0.000000e+00 : f32
    %233 = vector.broadcast %cst_93 : f32 to vector<8x32xf32>
    %234 = arith.cmpf oge, %232, %233 : vector<8x32xf32>
    %cst_94 = arith.constant 0.00999999977 : f32
    %235 = vector.broadcast %cst_94 : f32 to vector<8x32xf32>
    %236 = arith.mulf %235, %232 : vector<8x32xf32>
    %237 = arith.select %234, %232, %236 : vector<8x32xi1>, vector<8x32xf32>
    %238 = arith.addf %237, %140 : vector<8x32xf32>
    %cst_95 = arith.constant dense<0.000000e+00> : vector<8xf32>
    %239 = vector.multi_reduction <add>, %238, %cst_95 [1] : vector<8x32xf32> to vector<8xf32>
    %240 = vector.shape_cast %239 : vector<8xf32> to vector<8x1xf32>
    %cst_96 = arith.constant 3.200000e+01 : f32
    %241 = vector.broadcast %cst_96 : f32 to vector<8x1xf32>
    %242 = arith.divf %240, %241 : vector<8x1xf32>
    %243 = vector.broadcast %242 : vector<8x1xf32> to vector<8x32xf32>
    %244 = arith.subf %238, %243 : vector<8x32xf32>
    %245 = arith.mulf %244, %244 : vector<8x32xf32>
    %cst_97 = arith.constant dense<0.000000e+00> : vector<8xf32>
    %246 = vector.multi_reduction <add>, %245, %cst_97 [1] : vector<8x32xf32> to vector<8xf32>
    %247 = vector.shape_cast %246 : vector<8xf32> to vector<8x1xf32>
    %cst_98 = arith.constant 3.200000e+01 : f32
    %248 = vector.broadcast %cst_98 : f32 to vector<8x1xf32>
    %249 = arith.divf %247, %248 : vector<8x1xf32>
    %cst_99 = arith.constant 9.99999974E-6 : f32
    %250 = vector.broadcast %cst_99 : f32 to vector<8x1xf32>
    %251 = arith.addf %249, %250 : vector<8x1xf32>
    %252 = math.rsqrt %251 : vector<8x1xf32>
    %253 = vector.broadcast %252 : vector<8x1xf32> to vector<8x32xf32>
    %254 = arith.mulf %244, %253 : vector<8x32xf32>
    %255 = vector.broadcast %161 : vector<1x32xf32> to vector<8x32xf32>
    %256 = arith.mulf %254, %255 : vector<8x32xf32>
    %257 = vector.broadcast %162 : vector<1x32xf32> to vector<8x32xf32>
    %258 = arith.addf %256, %257 : vector<8x32xf32>
    %cst_100 = arith.constant dense<0.000000e+00> : vector<8x32xf32>
    %259 = tpu.matmul %258, %154, %cst_100 {dimension_numbers = #tpu.dot_dimension_numbers<[1], [0], [0], [1], [0, 0, 1, 1], [], []>} : vector<8x32xf32>, vector<32x32xf32>, vector<8x32xf32> -> vector<8x32xf32>
    %cst_101 = arith.constant 0.000000e+00 : f32
    %260 = vector.broadcast %cst_101 : f32 to vector<8x32xf32>
    %261 = arith.cmpf oge, %259, %260 : vector<8x32xf32>
    %cst_102 = arith.constant 0.00999999977 : f32
    %262 = vector.broadcast %cst_102 : f32 to vector<8x32xf32>
    %263 = arith.mulf %262, %259 : vector<8x32xf32>
    %264 = arith.select %261, %259, %263 : vector<8x32xi1>, vector<8x32xf32>
    %c0_103 = arith.constant 0 : index
    %c0_104 = arith.constant 0 : index
    %265 = vector.load %arg10[%c0_103, %c0_104] : memref<8x32xf32, #tpu.memory_space<vmem>>, vector<8x32xf32>
    tpu.vector_store %arg10[%c0_103, %c0_104], %264 {strides = array<i32>} : memref<8x32xf32, #tpu.memory_space<vmem>>, vector<8x32xf32>,
    %c0_105 = arith.constant 0 : index
    %c0_106 = arith.constant 0 : index
    %266 = vector.load %arg7[%c0_105, %c0_106] : memref<32x32xf32, #tpu.memory_space<vmem>>, vector<32x32xf32>
    %cst_107 = arith.constant dense<0.000000e+00> : vector<8x32xf32>
    %267 = tpu.matmul %264, %266, %cst_107 {dimension_numbers = #tpu.dot_dimension_numbers<[1], [0], [0], [1], [0, 0, 1, 1], [], []>} : vector<8x32xf32>, vector<32x32xf32>, vector<8x32xf32> -> vector<8x32xf32>
    %cst_108 = arith.constant 0.000000e+00 : f32
    %268 = vector.broadcast %cst_108 : f32 to vector<8x32xf32>
    %269 = arith.cmpf oge, %267, %268 : vector<8x32xf32>
    %cst_109 = arith.constant 0.00999999977 : f32
    %270 = vector.broadcast %cst_109 : f32 to vector<8x32xf32>
    %271 = arith.mulf %270, %267 : vector<8x32xf32>
    %272 = arith.select %269, %267, %271 : vector<8x32xi1>, vector<8x32xf32>
    %c0_110 = arith.constant 0 : index
    %c0_111 = arith.constant 0 : index
    %273 = vector.load %arg8[%c0_110, %c0_111] : memref<32x1xf32, #tpu.memory_space<vmem>>, vector<32x1xf32>
    %cst_112 = arith.constant dense<0.000000e+00> : vector<8x1xf32>
    %274 = tpu.matmul %272, %273, %cst_112 {dimension_numbers = #tpu.dot_dimension_numbers<[1], [0], [0], [1], [0, 0, 1, 1], [], []>} : vector<8x32xf32>, vector<32x1xf32>, vector<8x1xf32> -> vector<8x1xf32>
    %c0_113 = arith.constant 0 : index
    %c0_114 = arith.constant 0 : index
    %275 = vector.load %arg9[%c0_113, %c0_114] : memref<8x1xf32, #tpu.memory_space<vmem>>, vector<8x1xf32>
    tpu.vector_store %arg9[%c0_113, %c0_114], %274 {strides = array<i32>} : memref<8x1xf32, #tpu.memory_space<vmem>>, vector<8x1xf32>,
    return
  }
  func.func @transform_0(%arg0: i32) -> (i32, i32) {
    %c0_i32 = arith.constant 0 : i32
    %c0_i32_0 = arith.constant 0 : i32
    return %arg0, %c0_i32 : i32, i32
  }
  func.func @transform_1(%arg0: i32) -> (i32, i32) {
    %c0_i32 = arith.constant 0 : i32
    %c0_i32_0 = arith.constant 0 : i32
    return %arg0, %c0_i32 : i32, i32
  }
  func.func @transform_2(%arg0: i32) -> (i32, i32) {
    %c0_i32 = arith.constant 0 : i32
    %c0_i32_0 = arith.constant 0 : i32
    %c0_i32_1 = arith.constant 0 : i32
    return %c0_i32, %c0_i32_0 : i32, i32
  }
  func.func @transform_3(%arg0: i32) -> (i32, i32) {
    %c0_i32 = arith.constant 0 : i32
    %c0_i32_0 = arith.constant 0 : i32
    %c0_i32_1 = arith.constant 0 : i32
    return %c0_i32, %c0_i32_0 : i32, i32
  }
  func.func @transform_4(%arg0: i32) -> (i32, i32, i32) {
    %c0_i32 = arith.constant 0 : i32
    %c0_i32_0 = arith.constant 0 : i32
    %c0_i32_1 = arith.constant 0 : i32
    %c0_i32_2 = arith.constant 0 : i32
    return %c0_i32, %c0_i32_0, %c0_i32_1 : i32, i32, i32
  }
  func.func @transform_5(%arg0: i32) -> (i32, i32, i32) {
    %c0_i32 = arith.constant 0 : i32
    %c0_i32_0 = arith.constant 0 : i32
    %c0_i32_1 = arith.constant 0 : i32
    %c0_i32_2 = arith.constant 0 : i32
    return %c0_i32, %c0_i32_0, %c0_i32_1 : i32, i32, i32
  }
  func.func @transform_6(%arg0: i32) -> (i32, i32) {
    %c0_i32 = arith.constant 0 : i32
    %c0_i32_0 = arith.constant 0 : i32
    %c0_i32_1 = arith.constant 0 : i32
    return %c0_i32, %c0_i32_0 : i32, i32
  }
  func.func @transform_7(%arg0: i32) -> (i32, i32) {
    %c0_i32 = arith.constant 0 : i32
    %c0_i32_0 = arith.constant 0 : i32
    %c0_i32_1 = arith.constant 0 : i32
    return %c0_i32, %c0_i32_0 : i32, i32
  }
  func.func @transform_8(%arg0: i32) -> (i32, i32) {
    %c0_i32 = arith.constant 0 : i32
    %c0_i32_0 = arith.constant 0 : i32
    return %arg0, %c0_i32 : i32, i32
  }
  func.func @transform_9(%arg0: i32) -> (i32, i32) {
    %c0_i32 = arith.constant 0 : i32
    %c0_i32_0 = arith.constant 0 : i32
    return %arg0, %c0_i32 : i32, i32
  }
}

</mosaic_0001>

<llo_original>
// kernel: model_forward.1
$region0: #{model_forward.1}
  #allocation0 [shape = 'u32[]', space=smem, size = 0x4, offset = 0x4, fixed_abs, tag = 'smem constant byte address 0x4 - core index']
  #allocation1 [shape = 'u32[144,128]{1,0:T(1,128)}', space=vmem, size = 0x12000, scoped, tag = 'internal scratch']
  %s0 = inlined_call_operand.vmem [shape: f32[64,4], index: 0, kind: input, shape index: {}]
  %s1 = inlined_call_operand.vmem [shape: f32[8,8], index: 1, kind: input, shape index: {}]
  %s2 = inlined_call_operand.vmem [shape: f32[4,32], index: 2, kind: input, shape index: {}]
  %s3 = inlined_call_operand.vmem [shape: f32[1,32], index: 3, kind: input, shape index: {}]
  %s4 = inlined_call_operand.vmem [shape: f32[14,32,32], index: 4, kind: input, shape index: {}]
  %s5 = inlined_call_operand.vmem [shape: f32[2,6,32], index: 5, kind: input, shape index: {}]
  %s6 = inlined_call_operand.vmem [shape: f32[32,32], index: 6, kind: input, shape index: {}]
  %s7 = inlined_call_operand.vmem [shape: f32[32,1], index: 7, kind: input, shape index: {}]
  %s8 = inlined_call_operand.vmem [shape: f32[8,1], index: 8, kind: output, shape index: {0}]
  %s9 = inlined_call_operand.vmem [shape: f32[8,32], index: 9, kind: output, shape index: {1}]
  %10 = xla_tuple %s8, %s9
  %s11 = sld [smem:[#allocation0]]
  $region50: #{model_forward.1} parent=0
    _
  %s13 = ssub.s32 1, %s11
  %s14 = scalar_select 0, %s13, %s11
  // Predicated region
  $region2: #{model_forward.1} parent=0 // pred_check
    _
  $region3: #{model_forward.1} parent=0 // pred_check_branch
    %16 = sbr.rel (0) target = $region5
  $region4: #{model_forward.1} parent=0 // pred_region
    _
  $region5: #{model_forward.1} parent=0 // pred_fallthru
    _
  // Predicated region
  $region6: #{model_forward.1} parent=0 // pred_check
    _
  $region7: #{model_forward.1} parent=0 // pred_check_branch
    %18 = sbr.rel (0) target = $region9
  $region8: #{model_forward.1} parent=0 // pred_region
    _
  $region9: #{model_forward.1} parent=0 // pred_fallthru
    _
  // Predicated region
  $region10: #{model_forward.1} parent=0 // pred_check
    _
  $region11: #{model_forward.1} parent=0 // pred_check_branch
    %20 = sbr.rel (0) target = $region13
  $region12: #{model_forward.1} parent=0 // pred_region
    _
  $region13: #{model_forward.1} parent=0 // pred_fallthru
    _
  // Predicated region
  $region14: #{model_forward.1} parent=0 // pred_check
    _
  $region15: #{model_forward.1} parent=0 // pred_check_branch
    %22 = sbr.rel (0) target = $region17
  $region16: #{model_forward.1} parent=0 // pred_region
    _
  $region17: #{model_forward.1} parent=0 // pred_fallthru
    _
  // Predicated region
  $region18: #{model_forward.1} parent=0 // pred_check
    _
  $region19: #{model_forward.1} parent=0 // pred_check_branch
    %24 = sbr.rel (0) target = $region21
  $region20: #{model_forward.1} parent=0 // pred_region
    _
  $region21: #{model_forward.1} parent=0 // pred_fallthru
    _
  // Predicated region
  $region22: #{model_forward.1} parent=0 // pred_check
    _
  $region23: #{model_forward.1} parent=0 // pred_check_branch
    %26 = sbr.rel (0) target = $region25
  $region24: #{model_forward.1} parent=0 // pred_region
    _
  $region25: #{model_forward.1} parent=0 // pred_fallthru
    _
  // Predicated region
  $region26: #{model_forward.1} parent=0 // pred_check
    _
  $region27: #{model_forward.1} parent=0 // pred_check_branch
    %28 = sbr.rel (0) target = $region29
  $region28: #{model_forward.1} parent=0 // pred_region
    _
  $region29: #{model_forward.1} parent=0 // pred_fallthru
    _
  // Predicated region
  $region30: #{model_forward.1} parent=0 // pred_check
    _
  $region31: #{model_forward.1} parent=0 // pred_check_branch
    %30 = sbr.rel (0) target = $region33
  $region32: #{model_forward.1} parent=0 // pred_region
    _
  $region33: #{model_forward.1} parent=0 // pred_fallthru
    _
  %v31 = vld [vmem:[%s0] sm:$0xff]
  %v32 = vld [vmem:[%s0 + $0x8] sm:$0xff]
  %v33 = vld [vmem:[%s0 + $0x10] sm:$0xff]
  %v34 = vld [vmem:[%s0 + $0x18] sm:$0xff]
  %v35 = vld [vmem:[%s0 + $0x20] sm:$0xff]
  %v36 = vld [vmem:[%s0 + $0x28] sm:$0xff]
  %v37 = vld [vmem:[%s0 + $0x30] sm:$0xff]
  %v38 = vld [vmem:[%s0 + $0x38] sm:$0xff]
  %v39 = vld [vmem:[%s2] sm:$0xf]
  %vm40 = vcmask 31744
  %v42 = vsel %vm40, %v31, 0
  %v45 = vsel %vm40, %v32, 0
  %v48 = vsel %vm40, %v33, 0
  %v51 = vsel %vm40, %v34, 0
  %v54 = vsel %vm40, %v35, 0
  %v57 = vsel %vm40, %v36, 0
  %v60 = vsel %vm40, %v37, 0
  %v63 = vsel %vm40, %v38, 0
  %vm65 = vcmask 1043456
  %v67 = vsel %vm65, %v39, 0
  %69 = vmatprep.subr.mxu0 0.0
  %70 = vmatpush1.msra.mxu0 %v67
  %71 = vmatprep.subr.mxu0 0.0
  %72 = vmatpush1.msra.mxu0 0.0
  %73 = vmatprep.subr.mxu0 0.0
  %74 = vmatpush1.msra.mxu0 0.0
  %75 = vmatprep.subr.mxu0 0.0
  %76 = vmatpush1.msra.mxu0 0.0
  %77 = vmatprep.subr.mxu0 0.0
  %78 = vmatpush1.msra.mxu0 0.0
  %79 = vmatprep.subr.mxu0 0.0
  %80 = vmatpush1.msra.mxu0 0.0
  %81 = vmatprep.subr.mxu0 0.0
  %82 = vmatpush1.msra.mxu0 0.0
  %83 = vmatprep.subr.mxu0 0.0
  %84 = vmatpush1.msra.mxu0 0.0
  %85 = vmatprep.subr.mxu0 0.0
  %86 = vmatpush1.msra.mxu0 0.0
  %87 = vmatprep.subr.mxu0 0.0
  %88 = vmatpush1.msra.mxu0 0.0
  %89 = vmatprep.subr.mxu0 0.0
  %90 = vmatpush1.msra.mxu0 0.0
  %91 = vmatprep.subr.mxu0 0.0
  %92 = vmatpush1.msra.mxu0 0.0
  %93 = vmatprep.subr.mxu0 0.0
  %94 = vmatpush1.msra.mxu0 0.0
  %95 = vmatprep.subr.mxu0 0.0
  %96 = vmatpush1.msra.mxu0 0.0
  %97 = vmatprep.subr.mxu0 0.0
  %98 = vmatpush1.msra.mxu0 0.0
  %99 = vmatprep.subr.mxu0 0.0
  %100 = vmatpush1.msra.mxu0 0.0
  %101 = vmatprep.subr.mxu0 0.0
  %102 = vmatpush1.msra.mxu0 0.0
  %103 = vmatprep.subr.mxu0 0.0
  %104 = vmatpush1.msra.mxu0 0.0
  %105 = vmatprep.subr.mxu0 0.0
  %106 = vmatpush1.msra.mxu0 0.0
  %107 = vmatprep.subr.mxu0 0.0
  %108 = vmatpush1.msra.mxu0 0.0
  %109 = vmatprep.subr.mxu0 0.0
  %110 = vmatpush1.msra.mxu0 0.0
  %111 = vmatprep.subr.mxu0 0.0
  %112 = vmatpush1.msra.mxu0 0.0
  %113 = vmatprep.subr.mxu0 0.0
  %114 = vmatpush1.msra.mxu0 0.0
  %115 = vmatprep.subr.mxu0 0.0
  %116 = vmatpush1.msra.mxu0 0.0
  %117 = vmatprep.subr.mxu0 0.0
  %118 = vmatpush1.msra.mxu0 0.0
  %119 = vmatprep.subr.mxu0 0.0
  %120 = vmatpush1.msra.mxu0 0.0
  %121 = vmatprep.subr.mxu0 0.0
  %122 = vmatpush1.msra.mxu0 0.0
  %123 = vmatprep.subr.mxu0 0.0
  %124 = vmatpush1.msra.mxu0 0.0
  %125 = vmatprep.subr.mxu0 0.0
  %126 = vmatpush1.msra.mxu0 0.0
  %127 = vmatprep.subr.mxu0 0.0
  %128 = vmatpush1.msra.mxu0 0.0
  %129 = vmatprep.subr.mxu0 0.0
  %130 = vmatpush1.msra.mxu0 0.0
  %131 = vmatprep.subr.mxu0 0.0
  %132 = vmatpush1.msra.mxu0 0.0
  %133 = vmatprep.mubr.f32.mxu0 0.0
  %134 = vmatmul.mubr.f32.gmra.mrb[0].mxu0 %v42
  %v135 = vpop.f32.mrb[0].mxu0
  %v136 = vadd.f32 0.0, %v135
  %v137 = vpop.f32.mrb[0].mxu0
  %138 = vmatprep.mubr.f32.mxu0 0.0
  %139 = vmatmul.mubr.f32.gmra.mrb[0].mxu0 %v45
  %v140 = vpop.f32.mrb[0].mxu0
  %v141 = vadd.f32 0.0, %v140
  %v142 = vpop.f32.mrb[0].mxu0
  %143 = vmatprep.mubr.f32.mxu0 0.0
  %144 = vmatmul.mubr.f32.gmra.mrb[0].mxu0 %v48
  %v145 = vpop.f32.mrb[0].mxu0
  %v146 = vadd.f32 0.0, %v145
  %v147 = vpop.f32.mrb[0].mxu0
  %148 = vmatprep.mubr.f32.mxu0 0.0
  %149 = vmatmul.mubr.f32.gmra.mrb[0].mxu0 %v51
  %v150 = vpop.f32.mrb[0].mxu0
  %v151 = vadd.f32 0.0, %v150
  %v152 = vpop.f32.mrb[0].mxu0
  %153 = vmatprep.mubr.f32.mxu0 0.0
  %154 = vmatmul.mubr.f32.gmra.mrb[0].mxu0 %v54
  %v155 = vpop.f32.mrb[0].mxu0
  %v156 = vadd.f32 0.0, %v155
  %v157 = vpop.f32.mrb[0].mxu0
  %158 = vmatprep.mubr.f32.mxu0 0.0
  %159 = vmatmul.mubr.f32.gmra.mrb[0].mxu0 %v57
  %v160 = vpop.f32.mrb[0].mxu0
  %v161 = vadd.f32 0.0, %v160
  %v162 = vpop.f32.mrb[0].mxu0
  %163 = vmatprep.mubr.f32.mxu0 0.0
  %164 = vmatmul.mubr.f32.gmra.mrb[0].mxu0 %v60
  %v165 = vpop.f32.mrb[0].mxu0
  %v166 = vadd.f32 0.0, %v165
  %v167 = vpop.f32.mrb[0].mxu0
  %168 = vmatprep.mubr.f32.mxu0 0.0
  %169 = vmatmul.mubr.f32.gmra.mrb[0].mxu0 %v63
  %v170 = vpop.f32.mrb[0].mxu0
  %v171 = vadd.f32 0.0, %v170
  %v172 = vpop.f32.mrb[0].mxu0
  %173 = vdwg.mxu0
  %vm174 = vcmp.ge.f32.partialorder %v136, 0.0
  %vm175 = vcmp.ge.f32.partialorder %v141, 0.0
  %vm176 = vcmp.ge.f32.partialorder %v146, 0.0
  %vm177 = vcmp.ge.f32.partialorder %v151, 0.0
  %vm178 = vcmp.ge.f32.partialorder %v156, 0.0
  %vm179 = vcmp.ge.f32.partialorder %v161, 0.0
  %vm180 = vcmp.ge.f32.partialorder %v166, 0.0
  %vm181 = vcmp.ge.f32.partialorder %v171, 0.0
  %v182 = vmul.f32 %v136, 0.01
  %v183 = vmul.f32 %v141, 0.01
  %v184 = vmul.f32 %v146, 0.01
  %v185 = vmul.f32 %v151, 0.01
  %v186 = vmul.f32 %v156, 0.01
  %v187 = vmul.f32 %v161, 0.01
  %v188 = vmul.f32 %v166, 0.01
  %v189 = vmul.f32 %v171, 0.01
  %v190 = vsel %vm174, %v136, %v182
  %v191 = vsel %vm175, %v141, %v183
  %v192 = vsel %vm176, %v146, %v184
  %v193 = vsel %vm177, %v151, %v185
  %v194 = vsel %vm178, %v156, %v186
  %v195 = vsel %vm179, %v161, %v187
  %v196 = vsel %vm180, %v166, %v188
  %v197 = vsel %vm181, %v171, %v189
  %v198 = vld [vmem:[%s1] sm:$0xff]
  %vm199 = vcmp.eq.f32.partialorder %v198, 1.0
  %v200 = vsel %vm199, 0.0, -1e+30
  %v201 = vld [vmem:[%s3] sm:$0x1]
  %v203 = vlaneseq
  %v204 = vshrl.u32 %v203, 7
  %v205 = vsub.s32 0, %v204
  %v206 = vrot.slane %v201, %v205
  %v208 = vld [vmem:[%s4] sm:$0xff]
  %v209 = vld [vmem:[%s4 + $0x8] sm:$0xff]
  %v210 = vld [vmem:[%s4 + $0x10] sm:$0xff]
  %v211 = vld [vmem:[%s4 + $0x18] sm:$0xff]
  %s212 = scalar_lea.vmem %s4, 32
  %v213 = vld [vmem:[%s212] sm:$0xff]
  %v214 = vld [vmem:[%s212 + $0x8] sm:$0xff]
  %v215 = vld [vmem:[%s212 + $0x10] sm:$0xff]
  %v216 = vld [vmem:[%s212 + $0x18] sm:$0xff]
  %s217 = scalar_lea.vmem %s4, 64
  %v218 = vld [vmem:[%s217] sm:$0xff]
  %v219 = vld [vmem:[%s217 + $0x8] sm:$0xff]
  %v220 = vld [vmem:[%s217 + $0x10] sm:$0xff]
  %v221 = vld [vmem:[%s217 + $0x18] sm:$0xff]
  %s222 = scalar_lea.vmem %s4, 96
  %v223 = vld [vmem:[%s222] sm:$0xff]
  %v224 = vld [vmem:[%s222 + $0x8] sm:$0xff]
  %v225 = vld [vmem:[%s222 + $0x10] sm:$0xff]
  %v226 = vld [vmem:[%s222 + $0x18] sm:$0xff]
  %s227 = scalar_lea.vmem %s4, 128
  %v228 = vld [vmem:[%s227] sm:$0xff]
  %v229 = vld [vmem:[%s227 + $0x8] sm:$0xff]
  %v230 = vld [vmem:[%s227 + $0x10] sm:$0xff]
  %v231 = vld [vmem:[%s227 + $0x18] sm:$0xff]
  %s232 = scalar_lea.vmem %s4, 160
  %v233 = vld [vmem:[%s232] sm:$0xff]
  %v234 = vld [vmem:[%s232 + $0x8] sm:$0xff]
  %v235 = vld [vmem:[%s232 + $0x10] sm:$0xff]
  %v236 = vld [vmem:[%s232 + $0x18] sm:$0xff]
  %s237 = scalar_lea.vmem %s4, 192
  %v238 = vld [vmem:[%s237] sm:$0xff]
  %v239 = vld [vmem:[%s237 + $0x8] sm:$0xff]
  %v240 = vld [vmem:[%s237 + $0x10] sm:$0xff]
  %v241 = vld [vmem:[%s237 + $0x18] sm:$0xff]
  %v242 = vld [vmem:[%s5] sm:$0x3f]
  %vm243 = vcmask 261120
  %v245 = vsel %vm243, %v190, 0
  %v248 = vsel %vm243, %v191, 0
  %v251 = vsel %vm243, %v192, 0
  %v254 = vsel %vm243, %v193, 0
  %v257 = vsel %vm243, %v194, 0
  %v260 = vsel %vm243, %v195, 0
  %v263 = vsel %vm243, %v196, 0
  %v266 = vsel %vm243, %v197, 0
  %268 = vmatprep.subr.mxu0 0.0
  %269 = vmatpush1.msra.mxu0 %v208
  %270 = vmatprep.subr.mxu0 0.0
  %271 = vmatpush1.msra.mxu0 %v209
  %272 = vmatprep.subr.mxu0 0.0
  %273 = vmatpush1.msra.mxu0 %v210
  %274 = vmatprep.subr.mxu0 0.0
  %275 = vmatpush1.msra.mxu0 %v211
  %276 = vmatprep.subr.mxu0 0.0
  %277 = vmatpush1.msra.mxu0 0.0
  %278 = vmatprep.subr.mxu0 0.0
  %279 = vmatpush1.msra.mxu0 0.0
  %280 = vmatprep.subr.mxu0 0.0
  %281 = vmatpush1.msra.mxu0 0.0
  %282 = vmatprep.subr.mxu0 0.0
  %283 = vmatpush1.msra.mxu0 0.0
  %284 = vmatprep.subr.mxu0 0.0
  %285 = vmatpush1.msra.mxu0 0.0
  %286 = vmatprep.subr.mxu0 0.0
  %287 = vmatpush1.msra.mxu0 0.0
  %288 = vmatprep.subr.mxu0 0.0
  %289 = vmatpush1.msra.mxu0 0.0
  %290 = vmatprep.subr.mxu0 0.0
  %291 = vmatpush1.msra.mxu0 0.0
  %292 = vmatprep.subr.mxu0 0.0
  %293 = vmatpush1.msra.mxu0 0.0
  %294 = vmatprep.subr.mxu0 0.0
  %295 = vmatpush1.msra.mxu0 0.0
  %296 = vmatprep.subr.mxu0 0.0
  %297 = vmatpush1.msra.mxu0 0.0
  %298 = vmatprep.subr.mxu0 0.0
  %299 = vmatpush1.msra.mxu0 0.0
  %300 = vmatprep.subr.mxu0 0.0
  %301 = vmatpush1.msra.mxu0 0.0
  %302 = vmatprep.subr.mxu0 0.0
  %303 = vmatpush1.msra.mxu0 0.0
  %304 = vmatprep.subr.mxu0 0.0
  %305 = vmatpush1.msra.mxu0 0.0
  %306 = vmatprep.subr.mxu0 0.0
  %307 = vmatpush1.msra.mxu0 0.0
  %308 = vmatprep.subr.mxu0 0.0
  %309 = vmatpush1.msra.mxu0 0.0
  %310 = vmatprep.subr.mxu0 0.0
  %311 = vmatpush1.msra.mxu0 0.0
  %312 = vmatprep.subr.mxu0 0.0
  %313 = vmatpush1.msra.mxu0 0.0
  %314 = vmatprep.subr.mxu0 0.0
  %315 = vmatpush1.msra.mxu0 0.0
  %316 = vmatprep.subr.mxu0 0.0
  %317 = vmatpush1.msra.mxu0 0.0
  %318 = vmatprep.subr.mxu0 0.0
  %319 = vmatpush1.msra.mxu0 0.0
  %320 = vmatprep.subr.mxu0 0.0
  %321 = vmatpush1.msra.mxu0 0.0
  %322 = vmatprep.subr.mxu0 0.0
  %323 = vmatpush1.msra.mxu0 0.0
  %324 = vmatprep.subr.mxu0 0.0
  %325 = vmatpush1.msra.mxu0 0.0
  %326 = vmatprep.subr.mxu0 0.0
  %327 = vmatpush1.msra.mxu0 0.0
  %328 = vmatprep.subr.mxu0 0.0
  %329 = vmatpush1.msra.mxu0 0.0
  %330 = vmatprep.subr.mxu0 0.0
  %331 = vmatpush1.msra.mxu0 0.0
  %332 = vmatprep.mubr.f32.mxu0 0.0
  %333 = vmatmul.mubr.f32.gmra.mrb[0].mxu0 %v245
  %v334 = vpop.f32.mrb[0].mxu0
  %v335 = vadd.f32 0.0, %v334
  %v336 = vpop.f32.mrb[0].mxu0
  %337 = vmatprep.mubr.f32.mxu0 0.0
  %338 = vmatmul.mubr.f32.gmra.mrb[0].mxu0 %v248
  %v339 = vpop.f32.mrb[0].mxu0
  %v340 = vadd.f32 0.0, %v339
  %v341 = vpop.f32.mrb[0].mxu0
  %342 = vmatprep.mubr.f32.mxu0 0.0
  %343 = vmatmul.mubr.f32.gmra.mrb[0].mxu0 %v251
  %v344 = vpop.f32.mrb[0].mxu0
  %v345 = vadd.f32 0.0, %v344
  %v346 = vpop.f32.mrb[0].mxu0
  %347 = vmatprep.mubr.f32.mxu0 0.0
  %348 = vmatmul.mubr.f32.gmra.mrb[0].mxu0 %v254
  %v349 = vpop.f32.mrb[0].mxu0
  %v350 = vadd.f32 0.0, %v349
  %v351 = vpop.f32.mrb[0].mxu0
  %352 = vmatprep.mubr.f32.mxu0 0.0
  %353 = vmatmul.mubr.f32.gmra.mrb[0].mxu0 %v257
  %v354 = vpop.f32.mrb[0].mxu0
  %v355 = vadd.f32 0.0, %v354
  %v356 = vpop.f32.mrb[0].mxu0
  %357 = vmatprep.mubr.f32.mxu0 0.0
  %358 = vmatmul.mubr.f32.gmra.mrb[0].mxu0 %v260
  %v359 = vpop.f32.mrb[0].mxu0
  %v360 = vadd.f32 0.0, %v359
  %v361 = vpop.f32.mrb[0].mxu0
  %362 = vmatprep.mubr.f32.mxu0 0.0
  %363 = vmatmul.mubr.f32.gmra.mrb[0].mxu0 %v263
  %v364 = vpop.f32.mrb[0].mxu0
  %v365 = vadd.f32 0.0, %v364
  %v366 = vpop.f32.mrb[0].mxu0
  %367 = vmatprep.mubr.f32.mxu0 0.0
  %368 = vmatmul.mubr.f32.gmra.mrb[0].mxu0 %v266
  %v369 = vpop.f32.mrb[0].mxu0
  %v370 = vadd.f32 0.0, %v369
  %v371 = vpop.f32.mrb[0].mxu0
  %372 = vdwg.mxu0
  %vm373 = vcmp.ge.f32.partialorder %v335, 0.0
  %vm374 = vcmp.ge.f32.partialorder %v340, 0.0
  %vm375 = vcmp.ge.f32.partialorder %v345, 0.0
  %vm376 = vcmp.ge.f32.partialorder %v350, 0.0
  %vm377 = vcmp.ge.f32.partialorder %v355, 0.0
  %vm378 = vcmp.ge.f32.partialorder %v360, 0.0
  %vm379 = vcmp.ge.f32.partialorder %v365, 0.0
  %vm380 = vcmp.ge.f32.partialorder %v370, 0.0
  %v381 = vmul.f32 %v335, 0.01
  %v382 = vmul.f32 %v340, 0.01
  %v383 = vmul.f32 %v345, 0.01
  %v384 = vmul.f32 %v350, 0.01
  %v385 = vmul.f32 %v355, 0.01
  %v386 = vmul.f32 %v360, 0.01
  %v387 = vmul.f32 %v365, 0.01
  %v388 = vmul.f32 %v370, 0.01
  %v389 = vsel %vm373, %v335, %v381
  %v390 = vsel %vm374, %v340, %v382
  %v391 = vsel %vm375, %v345, %v383
  %v392 = vsel %vm376, %v350, %v384
  %v393 = vsel %vm377, %v355, %v385
  %v394 = vsel %vm378, %v360, %v386
  %v395 = vsel %vm379, %v365, %v387
  %v396 = vsel %vm380, %v370, %v388
  %v397 = vlaneseq
  %v398 = vshrl.u32 %v397, 7
  %v399 = vsub.s32 0, %v398
  %v400 = vrot.slane %v242, %v399
  %v401 = vsel %vm243, %v206, 0
  %403 = vmatprep.subr.mxu0 0.0
  %404 = vmatpush1.msra.mxu0 %v213
  %405 = vmatprep.subr.mxu0 0.0
  %406 = vmatpush1.msra.mxu0 %v214
  %407 = vmatprep.subr.mxu0 0.0
  %408 = vmatpush1.msra.mxu0 %v215
  %409 = vmatprep.subr.mxu0 0.0
  %410 = vmatpush1.msra.mxu0 %v216
  %411 = vmatprep.subr.mxu0 0.0
  %412 = vmatpush1.msra.mxu0 0.0
  %413 = vmatprep.subr.mxu0 0.0
  %414 = vmatpush1.msra.mxu0 0.0
  %415 = vmatprep.subr.mxu0 0.0
  %416 = vmatpush1.msra.mxu0 0.0
  %417 = vmatprep.subr.mxu0 0.0
  %418 = vmatpush1.msra.mxu0 0.0
  %419 = vmatprep.subr.mxu0 0.0
  %420 = vmatpush1.msra.mxu0 0.0
  %421 = vmatprep.subr.mxu0 0.0
  %422 = vmatpush1.msra.mxu0 0.0
  %423 = vmatprep.subr.mxu0 0.0
  %424 = vmatpush1.msra.mxu0 0.0
  %425 = vmatprep.subr.mxu0 0.0
  %426 = vmatpush1.msra.mxu0 0.0
  %427 = vmatprep.subr.mxu0 0.0
  %428 = vmatpush1.msra.mxu0 0.0
  %429 = vmatprep.subr.mxu0 0.0
  %430 = vmatpush1.msra.mxu0 0.0
  %431 = vmatprep.subr.mxu0 0.0
  %432 = vmatpush1.msra.mxu0 0.0
  %433 = vmatprep.subr.mxu0 0.0
  %434 = vmatpush1.msra.mxu0 0.0
  %435 = vmatprep.subr.mxu0 0.0
  %436 = vmatpush1.msra.mxu0 0.0
  %437 = vmatprep.subr.mxu0 0.0
  %438 = vmatpush1.msra.mxu0 0.0
  %439 = vmatprep.subr.mxu0 0.0
  %440 = vmatpush1.msra.mxu0 0.0
  %441 = vmatprep.subr.mxu0 0.0
  %442 = vmatpush1.msra.mxu0 0.0
  %443 = vmatprep.subr.mxu0 0.0
  %444 = vmatpush1.msra.mxu0 0.0
  %445 = vmatprep.subr.mxu0 0.0
  %446 = vmatpush1.msra.mxu0 0.0
  %447 = vmatprep.subr.mxu0 0.0
  %448 = vmatpush1.msra.mxu0 0.0
  %449 = vmatprep.subr.mxu0 0.0
  %450 = vmatpush1.msra.mxu0 0.0
  %451 = vmatprep.subr.mxu0 0.0
  %452 = vmatpush1.msra.mxu0 0.0
  %453 = vmatprep.subr.mxu0 0.0
  %454 = vmatpush1.msra.mxu0 0.0
  %455 = vmatprep.subr.mxu0 0.0
  %456 = vmatpush1.msra.mxu0 0.0
  %457 = vmatprep.subr.mxu0 0.0
  %458 = vmatpush1.msra.mxu0 0.0
  %459 = vmatprep.subr.mxu0 0.0
  %460 = vmatpush1.msra.mxu0 0.0
  %461 = vmatprep.subr.mxu0 0.0
  %462 = vmatpush1.msra.mxu0 0.0
  %463 = vmatprep.subr.mxu0 0.0
  %464 = vmatpush1.msra.mxu0 0.0
  %465 = vmatprep.subr.mxu0 0.0
  %466 = vmatpush1.msra.mxu0 0.0
  %467 = vmatprep.mubr.f32.mxu0 0.0
  %468 = vmatmul.mubr.f32.gmra.mrb[0].mxu0 %v401
  %v469 = vpop.f32.mrb[0].mxu0
  %v470 = vadd.f32 %v400, %v469
  %v471 = vpop.f32.mrb[0].mxu0
  %472 = vdwg.mxu0
  %v473 = vlaneseq
  %v474 = vshrl.u32 %v473, 7
  %v475 = vsub.s32 1, %v474
  %v476 = vrot.slane %v242, %v475
  %v478 = vsel %vm243, %v389, 0
  %v481 = vsel %vm243, %v390, 0
  %v484 = vsel %vm243, %v391, 0
  %v487 = vsel %vm243, %v392, 0
  %v490 = vsel %vm243, %v393, 0
  %v493 = vsel %vm243, %v394, 0
  %v496 = vsel %vm243, %v395, 0
  %v499 = vsel %vm243, %v396, 0
  %501 = vmatprep.subr.mxu0 0.0
  %502 = vmatpush1.msra.mxu0 %v218
  %503 = vmatprep.subr.mxu0 0.0
  %504 = vmatpush1.msra.mxu0 %v219
  %505 = vmatprep.subr.mxu0 0.0
  %506 = vmatpush1.msra.mxu0 %v220
  %507 = vmatprep.subr.mxu0 0.0
  %508 = vmatpush1.msra.mxu0 %v221
  %509 = vmatprep.subr.mxu0 0.0
  %510 = vmatpush1.msra.mxu0 0.0
  %511 = vmatprep.subr.mxu0 0.0
  %512 = vmatpush1.msra.mxu0 0.0
  %513 = vmatprep.subr.mxu0 0.0
  %514 = vmatpush1.msra.mxu0 0.0
  %515 = vmatprep.subr.mxu0 0.0
  %516 = vmatpush1.msra.mxu0 0.0
  %517 = vmatprep.subr.mxu0 0.0
  %518 = vmatpush1.msra.mxu0 0.0
  %519 = vmatprep.subr.mxu0 0.0
  %520 = vmatpush1.msra.mxu0 0.0
  %521 = vmatprep.subr.mxu0 0.0
  %522 = vmatpush1.msra.mxu0 0.0
  %523 = vmatprep.subr.mxu0 0.0
  %524 = vmatpush1.msra.mxu0 0.0
  %525 = vmatprep.subr.mxu0 0.0
  %526 = vmatpush1.msra.mxu0 0.0
  %527 = vmatprep.subr.mxu0 0.0
  %528 = vmatpush1.msra.mxu0 0.0
  %529 = vmatprep.subr.mxu0 0.0
  %530 = vmatpush1.msra.mxu0 0.0
  %531 = vmatprep.subr.mxu0 0.0
  %532 = vmatpush1.msra.mxu0 0.0
  %533 = vmatprep.subr.mxu0 0.0
  %534 = vmatpush1.msra.mxu0 0.0
  %535 = vmatprep.subr.mxu0 0.0
  %536 = vmatpush1.msra.mxu0 0.0
  %537 = vmatprep.subr.mxu0 0.0
  %538 = vmatpush1.msra.mxu0 0.0
  %539 = vmatprep.subr.mxu0 0.0
  %540 = vmatpush1.msra.mxu0 0.0
  %541 = vmatprep.subr.mxu0 0.0
  %542 = vmatpush1.msra.mxu0 0.0
  %543 = vmatprep.subr.mxu0 0.0
  %544 = vmatpush1.msra.mxu0 0.0
  %545 = vmatprep.subr.mxu0 0.0
  %546 = vmatpush1.msra.mxu0 0.0
  %547 = vmatprep.subr.mxu0 0.0
  %548 = vmatpush1.msra.mxu0 0.0
  %549 = vmatprep.subr.mxu0 0.0
  %550 = vmatpush1.msra.mxu0 0.0
  %551 = vmatprep.subr.mxu0 0.0
  %552 = vmatpush1.msra.mxu0 0.0
  %553 = vmatprep.subr.mxu0 0.0
  %554 = vmatpush1.msra.mxu0 0.0
  %555 = vmatprep.subr.mxu0 0.0
  %556 = vmatpush1.msra.mxu0 0.0
  %557 = vmatprep.subr.mxu0 0.0
  %558 = vmatpush1.msra.mxu0 0.0
  %559 = vmatprep.subr.mxu0 0.0
  %560 = vmatpush1.msra.mxu0 0.0
  %561 = vmatprep.subr.mxu0 0.0
  %562 = vmatpush1.msra.mxu0 0.0
  %563 = vmatprep.subr.mxu0 0.0
  %564 = vmatpush1.msra.mxu0 0.0
  %565 = vmatprep.mubr.f32.mxu0 0.0
  %566 = vmatmul.mubr.f32.gmra.mrb[0].mxu0 %v478
  %v567 = vpop.f32.mrb[0].mxu0
  %v568 = vadd.f32 %v476, %v567
  %v569 = vpop.f32.mrb[0].mxu0
  %570 = vmatprep.mubr.f32.mxu0 0.0
  %571 = vmatmul.mubr.f32.gmra.mrb[0].mxu0 %v481
  %v572 = vpop.f32.mrb[0].mxu0
  %v573 = vadd.f32 %v476, %v572
  %v574 = vpop.f32.mrb[0].mxu0
  %575 = vmatprep.mubr.f32.mxu0 0.0
  %576 = vmatmul.mubr.f32.gmra.mrb[0].mxu0 %v484
  %v577 = vpop.f32.mrb[0].mxu0
  %v578 = vadd.f32 %v476, %v577
  %v579 = vpop.f32.mrb[0].mxu0
  %580 = vmatprep.mubr.f32.mxu0 0.0
  %581 = vmatmul.mubr.f32.gmra.mrb[0].mxu0 %v487
  %v582 = vpop.f32.mrb[0].mxu0
  %v583 = vadd.f32 %v476, %v582
  %v584 = vpop.f32.mrb[0].mxu0
  %585 = vmatprep.mubr.f32.mxu0 0.0
  %586 = vmatmul.mubr.f32.gmra.mrb[0].mxu0 %v490
  %v587 = vpop.f32.mrb[0].mxu0
  %v588 = vadd.f32 %v476, %v587
  %v589 = vpop.f32.mrb[0].mxu0
  %590 = vmatprep.mubr.f32.mxu0 0.0
  %591 = vmatmul.mubr.f32.gmra.mrb[0].mxu0 %v493
  %v592 = vpop.f32.mrb[0].mxu0
  %v593 = vadd.f32 %v476, %v592
  %v594 = vpop.f32.mrb[0].mxu0
  %595 = vmatprep.mubr.f32.mxu0 0.0
  %596 = vmatmul.mubr.f32.gmra.mrb[0].mxu0 %v496
  %v597 = vpop.f32.mrb[0].mxu0
  %v598 = vadd.f32 %v476, %v597
  %v599 = vpop.f32.mrb[0].mxu0
  %600 = vmatprep.mubr.f32.mxu0 0.0
  %601 = vmatmul.mubr.f32.gmra.mrb[0].mxu0 %v499
  %v602 = vpop.f32.mrb[0].mxu0
  %v603 = vadd.f32 %v476, %v602
  %v604 = vpop.f32.mrb[0].mxu0
  %605 = vdwg.mxu0
  %v606 = vlaneseq
  %v607 = vshrl.u32 %v606, 7
  %v608 = vsub.s32 2, %v607
  %v609 = vrot.slane %v242, %v608
  %610 = vmatprep.subr.mxu0 0.0
  %611 = vmatpush1.msra.mxu0 %v223
  %612 = vmatprep.subr.mxu0 0.0
  %613 = vmatpush1.msra.mxu0 %v224
  %614 = vmatprep.subr.mxu0 0.0
  %615 = vmatpush1.msra.mxu0 %v225
  %616 = vmatprep.subr.mxu0 0.0
  %617 = vmatpush1.msra.mxu0 %v226
  %618 = vmatprep.subr.mxu0 0.0
  %619 = vmatpush1.msra.mxu0 0.0
  %620 = vmatprep.subr.mxu0 0.0
  %621 = vmatpush1.msra.mxu0 0.0
  %622 = vmatprep.subr.mxu0 0.0
  %623 = vmatpush1.msra.mxu0 0.0
  %624 = vmatprep.subr.mxu0 0.0
  %625 = vmatpush1.msra.mxu0 0.0
  %626 = vmatprep.subr.mxu0 0.0
  %627 = vmatpush1.msra.mxu0 0.0
  %628 = vmatprep.subr.mxu0 0.0
  %629 = vmatpush1.msra.mxu0 0.0
  %630 = vmatprep.subr.mxu0 0.0
  %631 = vmatpush1.msra.mxu0 0.0
  %632 = vmatprep.subr.mxu0 0.0
  %633 = vmatpush1.msra.mxu0 0.0
  %634 = vmatprep.subr.mxu0 0.0
  %635 = vmatpush1.msra.mxu0 0.0
  %636 = vmatprep.subr.mxu0 0.0
  %637 = vmatpush1.msra.mxu0 0.0
  %638 = vmatprep.subr.mxu0 0.0
  %639 = vmatpush1.msra.mxu0 0.0
  %640 = vmatprep.subr.mxu0 0.0
  %641 = vmatpush1.msra.mxu0 0.0
  %642 = vmatprep.subr.mxu0 0.0
  %643 = vmatpush1.msra.mxu0 0.0
  %644 = vmatprep.subr.mxu0 0.0
  %645 = vmatpush1.msra.mxu0 0.0
  %646 = vmatprep.subr.mxu0 0.0
  %647 = vmatpush1.msra.mxu0 0.0
  %648 = vmatprep.subr.mxu0 0.0
  %649 = vmatpush1.msra.mxu0 0.0
  %650 = vmatprep.subr.mxu0 0.0
  %651 = vmatpush1.msra.mxu0 0.0
  %652 = vmatprep.subr.mxu0 0.0
  %653 = vmatpush1.msra.mxu0 0.0
  %654 = vmatprep.subr.mxu0 0.0
  %655 = vmatpush1.msra.mxu0 0.0
  %656 = vmatprep.subr.mxu0 0.0
  %657 = vmatpush1.msra.mxu0 0.0
  %658 = vmatprep.subr.mxu0 0.0
  %659 = vmatpush1.msra.mxu0 0.0
  %660 = vmatprep.subr.mxu0 0.0
  %661 = vmatpush1.msra.mxu0 0.0
  %662 = vmatprep.subr.mxu0 0.0
  %663 = vmatpush1.msra.mxu0 0.0
  %664 = vmatprep.subr.mxu0 0.0
  %665 = vmatpush1.msra.mxu0 0.0
  %666 = vmatprep.subr.mxu0 0.0
  %667 = vmatpush1.msra.mxu0 0.0
  %668 = vmatprep.subr.mxu0 0.0
  %669 = vmatpush1.msra.mxu0 0.0
  %670 = vmatprep.subr.mxu0 0.0
  %671 = vmatpush1.msra.mxu0 0.0
  %672 = vmatprep.subr.mxu0 0.0
  %673 = vmatpush1.msra.mxu0 0.0
  %674 = vmatprep.mubr.f32.mxu0 0.0
  %675 = vmatmul.mubr.f32.gmra.mrb[0].mxu0 %v478
  %v676 = vpop.f32.mrb[0].mxu0
  %v677 = vadd.f32 %v609, %v676
  %v678 = vpop.f32.mrb[0].mxu0
  %679 = vmatprep.mubr.f32.mxu0 0.0
  %680 = vmatmul.mubr.f32.gmra.mrb[0].mxu0 %v481
  %v681 = vpop.f32.mrb[0].mxu0
  %v682 = vadd.f32 %v609, %v681
  %v683 = vpop.f32.mrb[0].mxu0
  %684 = vmatprep.mubr.f32.mxu0 0.0
  %685 = vmatmul.mubr.f32.gmra.mrb[0].mxu0 %v484
  %v686 = vpop.f32.mrb[0].mxu0
  %v687 = vadd.f32 %v609, %v686
  %v688 = vpop.f32.mrb[0].mxu0
  %689 = vmatprep.mubr.f32.mxu0 0.0
  %690 = vmatmul.mubr.f32.gmra.mrb[0].mxu0 %v487
  %v691 = vpop.f32.mrb[0].mxu0
  %v692 = vadd.f32 %v609, %v691
  %v693 = vpop.f32.mrb[0].mxu0
  %694 = vmatprep.mubr.f32.mxu0 0.0
  %695 = vmatmul.mubr.f32.gmra.mrb[0].mxu0 %v490
  %v696 = vpop.f32.mrb[0].mxu0
  %v697 = vadd.f32 %v609, %v696
  %v698 = vpop.f32.mrb[0].mxu0
  %699 = vmatprep.mubr.f32.mxu0 0.0
  %700 = vmatmul.mubr.f32.gmra.mrb[0].mxu0 %v493
  %v701 = vpop.f32.mrb[0].mxu0
  %v702 = vadd.f32 %v609, %v701
  %v703 = vpop.f32.mrb[0].mxu0
  %704 = vmatprep.mubr.f32.mxu0 0.0
  %705 = vmatmul.mubr.f32.gmra.mrb[0].mxu0 %v496
  %v706 = vpop.f32.mrb[0].mxu0
  %v707 = vadd.f32 %v609, %v706
  %v708 = vpop.f32.mrb[0].mxu0
  %709 = vmatprep.mubr.f32.mxu0 0.0
  %710 = vmatmul.mubr.f32.gmra.mrb[0].mxu0 %v499
  %v711 = vpop.f32.mrb[0].mxu0
  %v712 = vadd.f32 %v609, %v711
  %v713 = vpop.f32.mrb[0].mxu0
  %714 = vdwg.mxu0
  %v716 = vcombine.high %v470, %v470
  %v718 = vunpack.c.l.s4 1966171168
  %v719 = vunpack.c.0.s8 %v718
  %v720 = vlaneseq
  %v721 = vshrl.u32 %v720, 7
  %v722 = vsub.s32 %v719, %v721
  %v723 = vrot.slane %v470, %v722
  %v725 = vunpack.c.l.s4 1966171168
  %v726 = vunpack.c.0.s8 %v725
  %v727 = vlaneseq
  %v728 = vshrl.u32 %v727, 7
  %v729 = vsub.s32 %v726, %v728
  %v730 = vrot.slane %v716, %v729
  %v731 = vcombine.high %v723, %v723
  %v732 = vcombine.high %v730, %v730
  %v734 = vunpack.c.l.s4 1966171168
  %v735 = vunpack.c.0.s8 %v734
  %v736 = vlaneseq
  %v737 = vshrl.u32 %v736, 7
  %v738 = vsub.s32 %v735, %v737
  %v739 = vrot.slane %v723, %v738
  %v741 = vunpack.c.l.s4 1966171168
  %v742 = vunpack.c.0.s8 %v741
  %v743 = vlaneseq
  %v744 = vshrl.u32 %v743, 7
  %v745 = vsub.s32 %v742, %v744
  %v746 = vrot.slane %v730, %v745
  %v748 = vunpack.c.l.s4 1966171168
  %v749 = vunpack.c.0.s8 %v748
  %v750 = vlaneseq
  %v751 = vshrl.u32 %v750, 7
  %v752 = vsub.s32 %v749, %v751
  %v753 = vrot.slane %v731, %v752
  %v755 = vunpack.c.l.s4 1966171168
  %v756 = vunpack.c.0.s8 %v755
  %v757 = vlaneseq
  %v758 = vshrl.u32 %v757, 7
  %v759 = vsub.s32 %v756, %v758
  %v760 = vrot.slane %v732, %v759
  %v761 = vcombine.high %v739, %v739
  %v762 = vcombine.high %v746, %v746
  %v763 = vcombine.high %v753, %v753
  %v764 = vcombine.high %v760, %v760
  %v765 = vlaneseq
  %v766 = vshrl.u32 %v765, 7
  %v767 = vsub.s32 0, %v766
  %v768 = vrot.slane %v739, %v767
  %v769 = vlaneseq
  %v770 = vshrl.u32 %v769, 7
  %v771 = vsub.s32 0, %v770
  %v772 = vrot.slane %v753, %v771
  %v773 = vlaneseq
  %v774 = vshrl.u32 %v773, 7
  %v775 = vsub.s32 0, %v774
  %v776 = vrot.slane %v761, %v775
  %v777 = vlaneseq
  %v778 = vshrl.u32 %v777, 7
  %v779 = vsub.s32 0, %v778
  %v780 = vrot.slane %v763, %v779
  %v781 = vlaneseq
  %v782 = vshrl.u32 %v781, 7
  %v783 = vsub.s32 0, %v782
  %v784 = vrot.slane %v746, %v783
  %v785 = vlaneseq
  %v786 = vshrl.u32 %v785, 7
  %v787 = vsub.s32 0, %v786
  %v788 = vrot.slane %v760, %v787
  %v789 = vlaneseq
  %v790 = vshrl.u32 %v789, 7
  %v791 = vsub.s32 0, %v790
  %v792 = vrot.slane %v762, %v791
  %v793 = vlaneseq
  %v794 = vshrl.u32 %v793, 7
  %v795 = vsub.s32 0, %v794
  %v796 = vrot.slane %v764, %v795
  %v805 = vmul.f32 %v568, %v768
  %v806 = vmul.f32 %v573, %v772
  %v807 = vmul.f32 %v578, %v776
  %v808 = vmul.f32 %v583, %v780
  %v809 = vmul.f32 %v588, %v784
  %v810 = vmul.f32 %v593, %v788
  %v811 = vmul.f32 %v598, %v792
  %v812 = vmul.f32 %v603, %v796
  %vm813 = vcmask 130048
  %v814 = vsel %vm813, %v805, 0.0
  %815 = vadd.xlane.f32.xlu0 %v814
  %v816 = vpop.xlane.xlu0 %815
  %v817 = vsel %vm813, %v806, 0.0
  %818 = vadd.xlane.f32.xlu0 %v817
  %v819 = vpop.xlane.xlu0 %818
  %v820 = vsel %vm813, %v807, 0.0
  %821 = vadd.xlane.f32.xlu0 %v820
  %v822 = vpop.xlane.xlu0 %821
  %v823 = vsel %vm813, %v808, 0.0
  %824 = vadd.xlane.f32.xlu0 %v823
  %v825 = vpop.xlane.xlu0 %824
  %v826 = vsel %vm813, %v809, 0.0
  %827 = vadd.xlane.f32.xlu0 %v826
  %v828 = vpop.xlane.xlu0 %827
  %v829 = vsel %vm813, %v810, 0.0
  %830 = vadd.xlane.f32.xlu0 %v829
  %v831 = vpop.xlane.xlu0 %830
  %v832 = vsel %vm813, %v811, 0.0
  %833 = vadd.xlane.f32.xlu0 %v832
  %v834 = vpop.xlane.xlu0 %833
  %v835 = vsel %vm813, %v812, 0.0
  %836 = vadd.xlane.f32.xlu0 %v835
  %v837 = vpop.xlane.xlu0 %836
  %v838 = vmul.f32 %v816, 0.25
  %v839 = vmul.f32 %v819, 0.25
  %v840 = vmul.f32 %v822, 0.25
  %v841 = vmul.f32 %v825, 0.25
  %v842 = vmul.f32 %v828, 0.25
  %v843 = vmul.f32 %v831, 0.25
  %v844 = vmul.f32 %v834, 0.25
  %v845 = vmul.f32 %v837, 0.25
  %v847 = vlaneseq
  %v848 = vshrl.u32 %v847, 7
  %v849 = vsub.s32 0, %v848
  %v850 = vrot.slane %v200, %v849
  %852 = vbcast.lane.b32.xlu0 %v850, 256
  %v853 = vpop.permute.xlu0 %852
  %v854 = vlaneseq
  %v855 = vshrl.u32 %v854, 7
  %v856 = vsub.s32 1, %v855
  %v857 = vrot.slane %v200, %v856
  %859 = vbcast.lane.b32.xlu0 %v857, 256
  %v860 = vpop.permute.xlu0 %859
  %v861 = vlaneseq
  %v862 = vshrl.u32 %v861, 7
  %v863 = vsub.s32 2, %v862
  %v864 = vrot.slane %v200, %v863
  %866 = vbcast.lane.b32.xlu0 %v864, 256
  %v867 = vpop.permute.xlu0 %866
  %v868 = vlaneseq
  %v869 = vshrl.u32 %v868, 7
  %v870 = vsub.s32 3, %v869
  %v871 = vrot.slane %v200, %v870
  %873 = vbcast.lane.b32.xlu0 %v871, 256
  %v874 = vpop.permute.xlu0 %873
  %v875 = vlaneseq
  %v876 = vshrl.u32 %v875, 7
  %v877 = vsub.s32 4, %v876
  %v878 = vrot.slane %v200, %v877
  %880 = vbcast.lane.b32.xlu0 %v878, 256
  %v881 = vpop.permute.xlu0 %880
  %v882 = vlaneseq
  %v883 = vshrl.u32 %v882, 7
  %v884 = vsub.s32 5, %v883
  %v885 = vrot.slane %v200, %v884
  %887 = vbcast.lane.b32.xlu0 %v885, 256
  %v888 = vpop.permute.xlu0 %887
  %v889 = vlaneseq
  %v890 = vshrl.u32 %v889, 7
  %v891 = vsub.s32 6, %v890
  %v892 = vrot.slane %v200, %v891
  %894 = vbcast.lane.b32.xlu0 %v892, 256
  %v895 = vpop.permute.xlu0 %894
  %v896 = vlaneseq
  %v897 = vshrl.u32 %v896, 7
  %v898 = vsub.s32 7, %v897
  %v899 = vrot.slane %v200, %v898
  %901 = vbcast.lane.b32.xlu0 %v899, 256
  %v902 = vpop.permute.xlu0 %901
  %v911 = vadd.f32 %v838, %v853
  %v912 = vadd.f32 %v839, %v860
  %v913 = vadd.f32 %v840, %v867
  %v914 = vadd.f32 %v841, %v874
  %v915 = vadd.f32 %v842, %v881
  %v916 = vadd.f32 %v843, %v888
  %v917 = vadd.f32 %v844, %v895
  %v918 = vadd.f32 %v845, %v902
  %927 = vset.pattern.permute.xlu0 0
  %928 = vperm.xlu0 %927, %v911
  %v929 = vpop.permute.xlu0 %928
  %930 = vset.pattern.permute.xlu0 0
  %931 = vperm.xlu0 %930, %v912
  %v932 = vpop.permute.xlu0 %931
  %933 = vset.pattern.permute.xlu0 0
  %934 = vperm.xlu0 %933, %v913
  %v935 = vpop.permute.xlu0 %934
  %936 = vset.pattern.permute.xlu0 0
  %937 = vperm.xlu0 %936, %v914
  %v938 = vpop.permute.xlu0 %937
  %939 = vset.pattern.permute.xlu0 0
  %940 = vperm.xlu0 %939, %v915
  %v941 = vpop.permute.xlu0 %940
  %942 = vset.pattern.permute.xlu0 0
  %943 = vperm.xlu0 %942, %v916
  %v944 = vpop.permute.xlu0 %943
  %945 = vset.pattern.permute.xlu0 0
  %946 = vperm.xlu0 %945, %v917
  %v947 = vpop.permute.xlu0 %946
  %948 = vset.pattern.permute.xlu0 0
  %949 = vperm.xlu0 %948, %v918
  %v950 = vpop.permute.xlu0 %949
  %v951 = vlaneseq
  %v952 = vand.u32 %v951, 127
  %v953 = vlaneseq
  %v954 = vshrl.u32 %v953, 7
  %v955 = vsub.s32 %v952, %v954
  %v956 = vrot.slane %v929, %v955
  %v957 = vlaneseq
  %v958 = vshrl.u32 %v957, 7
  %v959 = vsub.s32 %v952, %v958
  %v960 = vrot.slane %v932, %v959
  %v961 = vlaneseq
  %v962 = vshrl.u32 %v961, 7
  %v963 = vsub.s32 %v952, %v962
  %v964 = vrot.slane %v935, %v963
  %v965 = vlaneseq
  %v966 = vshrl.u32 %v965, 7
  %v967 = vsub.s32 %v952, %v966
  %v968 = vrot.slane %v938, %v967
  %v969 = vlaneseq
  %v970 = vshrl.u32 %v969, 7
  %v971 = vsub.s32 %v952, %v970
  %v972 = vrot.slane %v941, %v971
  %v973 = vlaneseq
  %v974 = vshrl.u32 %v973, 7
  %v975 = vsub.s32 %v952, %v974
  %v976 = vrot.slane %v944, %v975
  %v977 = vlaneseq
  %v978 = vshrl.u32 %v977, 7
  %v979 = vsub.s32 %v952, %v978
  %v980 = vrot.slane %v947, %v979
  %v981 = vlaneseq
  %v982 = vshrl.u32 %v981, 7
  %v983 = vsub.s32 %v952, %v982
  %v984 = vrot.slane %v950, %v983
  %vm985 = vcmask 1041409
  %v986 = vsel %vm985, %v960, %v956
  %vm987 = vcmask 1042434
  %v988 = vsel %vm987, %v964, %v986
  %vm989 = vcmask 1043459
  %v990 = vsel %vm989, %v968, %v988
  %vm991 = vcmask 1044484
  %v992 = vsel %vm991, %v972, %v990
  %vm993 = vcmask 1045509
  %v994 = vsel %vm993, %v976, %v992
  %vm995 = vcmask 1046534
  %v996 = vsel %vm995, %v980, %v994
  %vm997 = vcmask 1047559
  %v998 = vsel %vm997, %v984, %v996
  %vm1000 = vcmask 64512
  %v1001 = vsel %vm1000, %v998, -inf
  %1002 = vmax.xlane.f32.xlu0 %v1001
  %v1003 = vpop.xlane.xlu0 %1002
  %v1005 = vlaneseq
  %v1006 = vshrl.u32 %v1005, 7
  %v1007 = vsub.s32 0, %v1006
  %v1008 = vrot.slane %v1003, %v1007
  %v1009 = vlaneseq
  %v1010 = vshrl.u32 %v1009, 7
  %v1011 = vsub.s32 1, %v1010
  %v1012 = vrot.slane %v1003, %v1011
  %v1013 = vlaneseq
  %v1014 = vshrl.u32 %v1013, 7
  %v1015 = vsub.s32 2, %v1014
  %v1016 = vrot.slane %v1003, %v1015
  %v1017 = vlaneseq
  %v1018 = vshrl.u32 %v1017, 7
  %v1019 = vsub.s32 3, %v1018
  %v1020 = vrot.slane %v1003, %v1019
  %v1021 = vlaneseq
  %v1022 = vshrl.u32 %v1021, 7
  %v1023 = vsub.s32 4, %v1022
  %v1024 = vrot.slane %v1003, %v1023
  %v1025 = vlaneseq
  %v1026 = vshrl.u32 %v1025, 7
  %v1027 = vsub.s32 5, %v1026
  %v1028 = vrot.slane %v1003, %v1027
  %v1029 = vlaneseq
  %v1030 = vshrl.u32 %v1029, 7
  %v1031 = vsub.s32 6, %v1030
  %v1032 = vrot.slane %v1003, %v1031
  %v1033 = vlaneseq
  %v1034 = vshrl.u32 %v1033, 7
  %v1035 = vsub.s32 7, %v1034
  %v1036 = vrot.slane %v1003, %v1035
  %v1045 = vsub.f32 %v911, %v1008
  %v1046 = vsub.f32 %v912, %v1012
  %v1047 = vsub.f32 %v913, %v1016
  %v1048 = vsub.f32 %v914, %v1020
  %v1049 = vsub.f32 %v915, %v1024
  %v1050 = vsub.f32 %v916, %v1028
  %v1051 = vsub.f32 %v917, %v1032
  %v1052 = vsub.f32 %v918, %v1036
  %v1053 = vmul.f32 %v1045, 1.442695
  %v1054 = vpow.pop %v1053
  %v1055 = vmul.f32 %v1046, 1.442695
  %v1056 = vpow.pop %v1055
  %v1057 = vmul.f32 %v1047, 1.442695
  %v1058 = vpow.pop %v1057
  %v1059 = vmul.f32 %v1048, 1.442695
  %v1060 = vpow.pop %v1059
  %v1061 = vmul.f32 %v1049, 1.442695
  %v1062 = vpow.pop %v1061
  %v1063 = vmul.f32 %v1050, 1.442695
  %v1064 = vpow.pop %v1063
  %v1065 = vmul.f32 %v1051, 1.442695
  %v1066 = vpow.pop %v1065
  %v1067 = vmul.f32 %v1052, 1.442695
  %v1068 = vpow.pop %v1067
  %1077 = vset.pattern.permute.xlu0 0
  %1078 = vperm.xlu0 %1077, %v1054
  %v1079 = vpop.permute.xlu0 %1078
  %1080 = vset.pattern.permute.xlu0 0
  %1081 = vperm.xlu0 %1080, %v1056
  %v1082 = vpop.permute.xlu0 %1081
  %1083 = vset.pattern.permute.xlu0 0
  %1084 = vperm.xlu0 %1083, %v1058
  %v1085 = vpop.permute.xlu0 %1084
  %1086 = vset.pattern.permute.xlu0 0
  %1087 = vperm.xlu0 %1086, %v1060
  %v1088 = vpop.permute.xlu0 %1087
  %1089 = vset.pattern.permute.xlu0 0
  %1090 = vperm.xlu0 %1089, %v1062
  %v1091 = vpop.permute.xlu0 %1090
  %1092 = vset.pattern.permute.xlu0 0
  %1093 = vperm.xlu0 %1092, %v1064
  %v1094 = vpop.permute.xlu0 %1093
  %1095 = vset.pattern.permute.xlu0 0
  %1096 = vperm.xlu0 %1095, %v1066
  %v1097 = vpop.permute.xlu0 %1096
  %1098 = vset.pattern.permute.xlu0 0
  %1099 = vperm.xlu0 %1098, %v1068
  %v1100 = vpop.permute.xlu0 %1099
  %v1101 = vlaneseq
  %v1102 = vshrl.u32 %v1101, 7
  %v1103 = vsub.s32 %v952, %v1102
  %v1104 = vrot.slane %v1079, %v1103
  %v1105 = vlaneseq
  %v1106 = vshrl.u32 %v1105, 7
  %v1107 = vsub.s32 %v952, %v1106
  %v1108 = vrot.slane %v1082, %v1107
  %v1109 = vlaneseq
  %v1110 = vshrl.u32 %v1109, 7
  %v1111 = vsub.s32 %v952, %v1110
  %v1112 = vrot.slane %v1085, %v1111
  %v1113 = vlaneseq
  %v1114 = vshrl.u32 %v1113, 7
  %v1115 = vsub.s32 %v952, %v1114
  %v1116 = vrot.slane %v1088, %v1115
  %v1117 = vlaneseq
  %v1118 = vshrl.u32 %v1117, 7
  %v1119 = vsub.s32 %v952, %v1118
  %v1120 = vrot.slane %v1091, %v1119
  %v1121 = vlaneseq
  %v1122 = vshrl.u32 %v1121, 7
  %v1123 = vsub.s32 %v952, %v1122
  %v1124 = vrot.slane %v1094, %v1123
  %v1125 = vlaneseq
  %v1126 = vshrl.u32 %v1125, 7
  %v1127 = vsub.s32 %v952, %v1126
  %v1128 = vrot.slane %v1097, %v1127
  %v1129 = vlaneseq
  %v1130 = vshrl.u32 %v1129, 7
  %v1131 = vsub.s32 %v952, %v1130
  %v1132 = vrot.slane %v1100, %v1131
  %v1133 = vsel %vm985, %v1108, %v1104
  %v1134 = vsel %vm987, %v1112, %v1133
  %v1135 = vsel %vm989, %v1116, %v1134
  %v1136 = vsel %vm991, %v1120, %v1135
  %v1137 = vsel %vm993, %v1124, %v1136
  %v1138 = vsel %vm995, %v1128, %v1137
  %v1139 = vsel %vm997, %v1132, %v1138
  %v1141 = vsel %vm1000, %v1139, 0.0
  %1142 = vadd.xlane.f32.xlu0 %v1141
  %v1143 = vpop.xlane.xlu0 %1142
  %v1144 = vrcp.pop %v1143
  %v1146 = vlaneseq
  %v1147 = vshrl.u32 %v1146, 7
  %v1148 = vsub.s32 0, %v1147
  %v1149 = vrot.slane %v1144, %v1148
  %v1150 = vlaneseq
  %v1151 = vshrl.u32 %v1150, 7
  %v1152 = vsub.s32 1, %v1151
  %v1153 = vrot.slane %v1144, %v1152
  %v1154 = vlaneseq
  %v1155 = vshrl.u32 %v1154, 7
  %v1156 = vsub.s32 2, %v1155
  %v1157 = vrot.slane %v1144, %v1156
  %v1158 = vlaneseq
  %v1159 = vshrl.u32 %v1158, 7
  %v1160 = vsub.s32 3, %v1159
  %v1161 = vrot.slane %v1144, %v1160
  %v1162 = vlaneseq
  %v1163 = vshrl.u32 %v1162, 7
  %v1164 = vsub.s32 4, %v1163
  %v1165 = vrot.slane %v1144, %v1164
  %v1166 = vlaneseq
  %v1167 = vshrl.u32 %v1166, 7
  %v1168 = vsub.s32 5, %v1167
  %v1169 = vrot.slane %v1144, %v1168
  %v1170 = vlaneseq
  %v1171 = vshrl.u32 %v1170, 7
  %v1172 = vsub.s32 6, %v1171
  %v1173 = vrot.slane %v1144, %v1172
  %v1174 = vlaneseq
  %v1175 = vshrl.u32 %v1174, 7
  %v1176 = vsub.s32 7, %v1175
  %v1177 = vrot.slane %v1144, %v1176
  %v1186 = vmul.f32 %v1054, %v1149
  %v1187 = vmul.f32 %v1056, %v1153
  %v1188 = vmul.f32 %v1058, %v1157
  %v1189 = vmul.f32 %v1060, %v1161
  %v1190 = vmul.f32 %v1062, %v1165
  %v1191 = vmul.f32 %v1064, %v1169
  %v1192 = vmul.f32 %v1066, %v1173
  %v1193 = vmul.f32 %v1068, %v1177
  %1195 = vset.pattern.permute.xlu0 0
  %1196 = vperm.xlu0 %1195, %v1186
  %v1197 = vpop.permute.xlu0 %1196
  %1200 = vset.pattern.permute.xlu0 0
  %1201 = vperm.xlu0 %1200, %v1187
  %v1202 = vpop.permute.xlu0 %1201
  %1205 = vset.pattern.permute.xlu0 0
  %1206 = vperm.xlu0 %1205, %v1188
  %v1207 = vpop.permute.xlu0 %1206
  %1210 = vset.pattern.permute.xlu0 0
  %1211 = vperm.xlu0 %1210, %v1189
  %v1212 = vpop.permute.xlu0 %1211
  %1215 = vset.pattern.permute.xlu0 0
  %1216 = vperm.xlu0 %1215, %v1190
  %v1217 = vpop.permute.xlu0 %1216
  %1220 = vset.pattern.permute.xlu0 0
  %1221 = vperm.xlu0 %1220, %v1191
  %v1222 = vpop.permute.xlu0 %1221
  %1225 = vset.pattern.permute.xlu0 0
  %1226 = vperm.xlu0 %1225, %v1192
  %v1227 = vpop.permute.xlu0 %1226
  %1230 = vset.pattern.permute.xlu0 0
  %1231 = vperm.xlu0 %1230, %v1193
  %v1232 = vpop.permute.xlu0 %1231
  %v1234 = vmul.f32 %v1197, %v677
  %v1235 = vmul.f32 %v1202, %v682
  %v1236 = vmul.f32 %v1207, %v687
  %v1237 = vmul.f32 %v1212, %v692
  %v1238 = vmul.f32 %v1217, %v697
  %v1239 = vmul.f32 %v1222, %v702
  %v1240 = vmul.f32 %v1227, %v707
  %v1241 = vmul.f32 %v1232, %v712
  %v1242 = vsel %vm813, %v1234, 0.0
  %v1243 = vrot.slane %v1242, 4
  %v1244 = vadd.f32 %v1242, %v1243
  %v1245 = vrot.slane %v1244, 2
  %v1246 = vadd.f32 %v1244, %v1245
  %v1247 = vrot.slane %v1246, 1
  %v1248 = vadd.f32 %v1246, %v1247
  %v1249 = vsel %vm813, %v1235, 0.0
  %v1250 = vrot.slane %v1249, 4
  %v1251 = vadd.f32 %v1249, %v1250
  %v1252 = vrot.slane %v1251, 2
  %v1253 = vadd.f32 %v1251, %v1252
  %v1254 = vrot.slane %v1253, 1
  %v1255 = vadd.f32 %v1253, %v1254
  %v1256 = vsel %vm813, %v1236, 0.0
  %v1257 = vrot.slane %v1256, 4
  %v1258 = vadd.f32 %v1256, %v1257
  %v1259 = vrot.slane %v1258, 2
  %v1260 = vadd.f32 %v1258, %v1259
  %v1261 = vrot.slane %v1260, 1
  %v1262 = vadd.f32 %v1260, %v1261
  %v1263 = vsel %vm813, %v1237, 0.0
  %v1264 = vrot.slane %v1263, 4
  %v1265 = vadd.f32 %v1263, %v1264
  %v1266 = vrot.slane %v1265, 2
  %v1267 = vadd.f32 %v1265, %v1266
  %v1268 = vrot.slane %v1267, 1
  %v1269 = vadd.f32 %v1267, %v1268
  %v1270 = vsel %vm813, %v1238, 0.0
  %v1271 = vrot.slane %v1270, 4
  %v1272 = vadd.f32 %v1270, %v1271
  %v1273 = vrot.slane %v1272, 2
  %v1274 = vadd.f32 %v1272, %v1273
  %v1275 = vrot.slane %v1274, 1
  %v1276 = vadd.f32 %v1274, %v1275
  %v1277 = vsel %vm813, %v1239, 0.0
  %v1278 = vrot.slane %v1277, 4
  %v1279 = vadd.f32 %v1277, %v1278
  %v1280 = vrot.slane %v1279, 2
  %v1281 = vadd.f32 %v1279, %v1280
  %v1282 = vrot.slane %v1281, 1
  %v1283 = vadd.f32 %v1281, %v1282
  %v1284 = vsel %vm813, %v1240, 0.0
  %v1285 = vrot.slane %v1284, 4
  %v1286 = vadd.f32 %v1284, %v1285
  %v1287 = vrot.slane %v1286, 2
  %v1288 = vadd.f32 %v1286, %v1287
  %v1289 = vrot.slane %v1288, 1
  %v1290 = vadd.f32 %v1288, %v1289
  %v1291 = vsel %vm813, %v1241, 0.0
  %v1292 = vrot.slane %v1291, 4
  %v1293 = vadd.f32 %v1291, %v1292
  %v1294 = vrot.slane %v1293, 2
  %v1295 = vadd.f32 %v1293, %v1294
  %v1296 = vrot.slane %v1295, 1
  %v1297 = vadd.f32 %v1295, %v1296
  %1306 = vrot.lane.b32.xlu0 %v805, 112
  %v1307 = vpop.permute.xlu0 %1306
  %1308 = vrot.lane.b32.xlu0 %v806, 112
  %v1309 = vpop.permute.xlu0 %1308
  %1310 = vrot.lane.b32.xlu0 %v807, 112
  %v1311 = vpop.permute.xlu0 %1310
  %1312 = vrot.lane.b32.xlu0 %v808, 112
  %v1313 = vpop.permute.xlu0 %1312
  %1314 = vrot.lane.b32.xlu0 %v809, 112
  %v1315 = vpop.permute.xlu0 %1314
  %1316 = vrot.lane.b32.xlu0 %v810, 112
  %v1317 = vpop.permute.xlu0 %1316
  %1318 = vrot.lane.b32.xlu0 %v811, 112
  %v1319 = vpop.permute.xlu0 %1318
  %1320 = vrot.lane.b32.xlu0 %v812, 112
  %v1321 = vpop.permute.xlu0 %1320
  %v1330 = vsel %vm813, %v1307, 0.0
  %1331 = vadd.xlane.f32.xlu0 %v1330
  %v1332 = vpop.xlane.xlu0 %1331
  %v1333 = vsel %vm813, %v1309, 0.0
  %1334 = vadd.xlane.f32.xlu0 %v1333
  %v1335 = vpop.xlane.xlu0 %1334
  %v1336 = vsel %vm813, %v1311, 0.0
  %1337 = vadd.xlane.f32.xlu0 %v1336
  %v1338 = vpop.xlane.xlu0 %1337
  %v1339 = vsel %vm813, %v1313, 0.0
  %1340 = vadd.xlane.f32.xlu0 %v1339
  %v1341 = vpop.xlane.xlu0 %1340
  %v1342 = vsel %vm813, %v1315, 0.0
  %1343 = vadd.xlane.f32.xlu0 %v1342
  %v1344 = vpop.xlane.xlu0 %1343
  %v1345 = vsel %vm813, %v1317, 0.0
  %1346 = vadd.xlane.f32.xlu0 %v1345
  %v1347 = vpop.xlane.xlu0 %1346
  %v1348 = vsel %vm813, %v1319, 0.0
  %1349 = vadd.xlane.f32.xlu0 %v1348
  %v1350 = vpop.xlane.xlu0 %1349
  %v1351 = vsel %vm813, %v1321, 0.0
  %1352 = vadd.xlane.f32.xlu0 %v1351
  %v1353 = vpop.xlane.xlu0 %1352
  %v1354 = vmul.f32 %v1332, 0.25
  %v1355 = vmul.f32 %v1335, 0.25
  %v1356 = vmul.f32 %v1338, 0.25
  %v1357 = vmul.f32 %v1341, 0.25
  %v1358 = vmul.f32 %v1344, 0.25
  %v1359 = vmul.f32 %v1347, 0.25
  %v1360 = vmul.f32 %v1350, 0.25
  %v1361 = vmul.f32 %v1353, 0.25
  %v1362 = vadd.f32 %v1354, %v853
  %v1363 = vadd.f32 %v1355, %v860
  %v1364 = vadd.f32 %v1356, %v867
  %v1365 = vadd.f32 %v1357, %v874
  %v1366 = vadd.f32 %v1358, %v881
  %v1367 = vadd.f32 %v1359, %v888
  %v1368 = vadd.f32 %v1360, %v895
  %v1369 = vadd.f32 %v1361, %v902
  %1378 = vset.pattern.permute.xlu0 0
  %1379 = vperm.xlu0 %1378, %v1362
  %v1380 = vpop.permute.xlu0 %1379
  %1381 = vset.pattern.permute.xlu0 0
  %1382 = vperm.xlu0 %1381, %v1363
  %v1383 = vpop.permute.xlu0 %1382
  %1384 = vset.pattern.permute.xlu0 0
  %1385 = vperm.xlu0 %1384, %v1364
  %v1386 = vpop.permute.xlu0 %1385
  %1387 = vset.pattern.permute.xlu0 0
  %1388 = vperm.xlu0 %1387, %v1365
  %v1389 = vpop.permute.xlu0 %1388
  %1390 = vset.pattern.permute.xlu0 0
  %1391 = vperm.xlu0 %1390, %v1366
  %v1392 = vpop.permute.xlu0 %1391
  %1393 = vset.pattern.permute.xlu0 0
  %1394 = vperm.xlu0 %1393, %v1367
  %v1395 = vpop.permute.xlu0 %1394
  %1396 = vset.pattern.permute.xlu0 0
  %1397 = vperm.xlu0 %1396, %v1368
  %v1398 = vpop.permute.xlu0 %1397
  %1399 = vset.pattern.permute.xlu0 0
  %1400 = vperm.xlu0 %1399, %v1369
  %v1401 = vpop.permute.xlu0 %1400
  %v1402 = vlaneseq
  %v1403 = vshrl.u32 %v1402, 7
  %v1404 = vsub.s32 %v952, %v1403
  %v1405 = vrot.slane %v1380, %v1404
  %v1406 = vlaneseq
  %v1407 = vshrl.u32 %v1406, 7
  %v1408 = vsub.s32 %v952, %v1407
  %v1409 = vrot.slane %v1383, %v1408
  %v1410 = vlaneseq
  %v1411 = vshrl.u32 %v1410, 7
  %v1412 = vsub.s32 %v952, %v1411
  %v1413 = vrot.slane %v1386, %v1412
  %v1414 = vlaneseq
  %v1415 = vshrl.u32 %v1414, 7
  %v1416 = vsub.s32 %v952, %v1415
  %v1417 = vrot.slane %v1389, %v1416
  %v1418 = vlaneseq
  %v1419 = vshrl.u32 %v1418, 7
  %v1420 = vsub.s32 %v952, %v1419
  %v1421 = vrot.slane %v1392, %v1420
  %v1422 = vlaneseq
  %v1423 = vshrl.u32 %v1422, 7
  %v1424 = vsub.s32 %v952, %v1423
  %v1425 = vrot.slane %v1395, %v1424
  %v1426 = vlaneseq
  %v1427 = vshrl.u32 %v1426, 7
  %v1428 = vsub.s32 %v952, %v1427
  %v1429 = vrot.slane %v1398, %v1428
  %v1430 = vlaneseq
  %v1431 = vshrl.u32 %v1430, 7
  %v1432 = vsub.s32 %v952, %v1431
  %v1433 = vrot.slane %v1401, %v1432
  %v1434 = vsel %vm985, %v1409, %v1405
  %v1435 = vsel %vm987, %v1413, %v1434
  %v1436 = vsel %vm989, %v1417, %v1435
  %v1437 = vsel %vm991, %v1421, %v1436
  %v1438 = vsel %vm993, %v1425, %v1437
  %v1439 = vsel %vm995, %v1429, %v1438
  %v1440 = vsel %vm997, %v1433, %v1439
  %v1442 = vsel %vm1000, %v1440, -inf
  %1443 = vmax.xlane.f32.xlu0 %v1442
  %v1444 = vpop.xlane.xlu0 %1443
  %v1446 = vlaneseq
  %v1447 = vshrl.u32 %v1446, 7
  %v1448 = vsub.s32 0, %v1447
  %v1449 = vrot.slane %v1444, %v1448
  %v1450 = vlaneseq
  %v1451 = vshrl.u32 %v1450, 7
  %v1452 = vsub.s32 1, %v1451
  %v1453 = vrot.slane %v1444, %v1452
  %v1454 = vlaneseq
  %v1455 = vshrl.u32 %v1454, 7
  %v1456 = vsub.s32 2, %v1455
  %v1457 = vrot.slane %v1444, %v1456
  %v1458 = vlaneseq
  %v1459 = vshrl.u32 %v1458, 7
  %v1460 = vsub.s32 3, %v1459
  %v1461 = vrot.slane %v1444, %v1460
  %v1462 = vlaneseq
  %v1463 = vshrl.u32 %v1462, 7
  %v1464 = vsub.s32 4, %v1463
  %v1465 = vrot.slane %v1444, %v1464
  %v1466 = vlaneseq
  %v1467 = vshrl.u32 %v1466, 7
  %v1468 = vsub.s32 5, %v1467
  %v1469 = vrot.slane %v1444, %v1468
  %v1470 = vlaneseq
  %v1471 = vshrl.u32 %v1470, 7
  %v1472 = vsub.s32 6, %v1471
  %v1473 = vrot.slane %v1444, %v1472
  %v1474 = vlaneseq
  %v1475 = vshrl.u32 %v1474, 7
  %v1476 = vsub.s32 7, %v1475
  %v1477 = vrot.slane %v1444, %v1476
  %v1486 = vsub.f32 %v1362, %v1449
  %v1487 = vsub.f32 %v1363, %v1453
  %v1488 = vsub.f32 %v1364, %v1457
  %v1489 = vsub.f32 %v1365, %v1461
  %v1490 = vsub.f32 %v1366, %v1465
  %v1491 = vsub.f32 %v1367, %v1469
  %v1492 = vsub.f32 %v1368, %v1473
  %v1493 = vsub.f32 %v1369, %v1477
  %v1494 = vmul.f32 %v1486, 1.442695
  %v1495 = vpow.pop %v1494
  %v1496 = vmul.f32 %v1487, 1.442695
  %v1497 = vpow.pop %v1496
  %v1498 = vmul.f32 %v1488, 1.442695
  %v1499 = vpow.pop %v1498
  %v1500 = vmul.f32 %v1489, 1.442695
  %v1501 = vpow.pop %v1500
  %v1502 = vmul.f32 %v1490, 1.442695
  %v1503 = vpow.pop %v1502
  %v1504 = vmul.f32 %v1491, 1.442695
  %v1505 = vpow.pop %v1504
  %v1506 = vmul.f32 %v1492, 1.442695
  %v1507 = vpow.pop %v1506
  %v1508 = vmul.f32 %v1493, 1.442695
  %v1509 = vpow.pop %v1508
  %1518 = vset.pattern.permute.xlu0 0
  %1519 = vperm.xlu0 %1518, %v1495
  %v1520 = vpop.permute.xlu0 %1519
  %1521 = vset.pattern.permute.xlu0 0
  %1522 = vperm.xlu0 %1521, %v1497
  %v1523 = vpop.permute.xlu0 %1522
  %1524 = vset.pattern.permute.xlu0 0
  %1525 = vperm.xlu0 %1524, %v1499
  %v1526 = vpop.permute.xlu0 %1525
  %1527 = vset.pattern.permute.xlu0 0
  %1528 = vperm.xlu0 %1527, %v1501
  %v1529 = vpop.permute.xlu0 %1528
  %1530 = vset.pattern.permute.xlu0 0
  %1531 = vperm.xlu0 %1530, %v1503
  %v1532 = vpop.permute.xlu0 %1531
  %1533 = vset.pattern.permute.xlu0 0
  %1534 = vperm.xlu0 %1533, %v1505
  %v1535 = vpop.permute.xlu0 %1534
  %1536 = vset.pattern.permute.xlu0 0
  %1537 = vperm.xlu0 %1536, %v1507
  %v1538 = vpop.permute.xlu0 %1537
  %1539 = vset.pattern.permute.xlu0 0
  %1540 = vperm.xlu0 %1539, %v1509
  %v1541 = vpop.permute.xlu0 %1540
  %v1542 = vlaneseq
  %v1543 = vshrl.u32 %v1542, 7
  %v1544 = vsub.s32 %v952, %v1543
  %v1545 = vrot.slane %v1520, %v1544
  %v1546 = vlaneseq
  %v1547 = vshrl.u32 %v1546, 7
  %v1548 = vsub.s32 %v952, %v1547
  %v1549 = vrot.slane %v1523, %v1548
  %v1550 = vlaneseq
  %v1551 = vshrl.u32 %v1550, 7
  %v1552 = vsub.s32 %v952, %v1551
  %v1553 = vrot.slane %v1526, %v1552
  %v1554 = vlaneseq
  %v1555 = vshrl.u32 %v1554, 7
  %v1556 = vsub.s32 %v952, %v1555
  %v1557 = vrot.slane %v1529, %v1556
  %v1558 = vlaneseq
  %v1559 = vshrl.u32 %v1558, 7
  %v1560 = vsub.s32 %v952, %v1559
  %v1561 = vrot.slane %v1532, %v1560
  %v1562 = vlaneseq
  %v1563 = vshrl.u32 %v1562, 7
  %v1564 = vsub.s32 %v952, %v1563
  %v1565 = vrot.slane %v1535, %v1564
  %v1566 = vlaneseq
  %v1567 = vshrl.u32 %v1566, 7
  %v1568 = vsub.s32 %v952, %v1567
  %v1569 = vrot.slane %v1538, %v1568
  %v1570 = vlaneseq
  %v1571 = vshrl.u32 %v1570, 7
  %v1572 = vsub.s32 %v952, %v1571
  %v1573 = vrot.slane %v1541, %v1572
  %v1574 = vsel %vm985, %v1549, %v1545
  %v1575 = vsel %vm987, %v1553, %v1574
  %v1576 = vsel %vm989, %v1557, %v1575
  %v1577 = vsel %vm991, %v1561, %v1576
  %v1578 = vsel %vm993, %v1565, %v1577
  %v1579 = vsel %vm995, %v1569, %v1578
  %v1580 = vsel %vm997, %v1573, %v1579
  %v1582 = vsel %vm1000, %v1580, 0.0
  %1583 = vadd.xlane.f32.xlu0 %v1582
  %v1584 = vpop.xlane.xlu0 %1583
  %v1585 = vrcp.pop %v1584
  %v1587 = vlaneseq
  %v1588 = vshrl.u32 %v1587, 7
  %v1589 = vsub.s32 0, %v1588
  %v1590 = vrot.slane %v1585, %v1589
  %v1591 = vlaneseq
  %v1592 = vshrl.u32 %v1591, 7
  %v1593 = vsub.s32 1, %v1592
  %v1594 = vrot.slane %v1585, %v1593
  %v1595 = vlaneseq
  %v1596 = vshrl.u32 %v1595, 7
  %v1597 = vsub.s32 2, %v1596
  %v1598 = vrot.slane %v1585, %v1597
  %v1599 = vlaneseq
  %v1600 = vshrl.u32 %v1599, 7
  %v1601 = vsub.s32 3, %v1600
  %v1602 = vrot.slane %v1585, %v1601
  %v1603 = vlaneseq
  %v1604 = vshrl.u32 %v1603, 7
  %v1605 = vsub.s32 4, %v1604
  %v1606 = vrot.slane %v1585, %v1605
  %v1607 = vlaneseq
  %v1608 = vshrl.u32 %v1607, 7
  %v1609 = vsub.s32 5, %v1608
  %v1610 = vrot.slane %v1585, %v1609
  %v1611 = vlaneseq
  %v1612 = vshrl.u32 %v1611, 7
  %v1613 = vsub.s32 6, %v1612
  %v1614 = vrot.slane %v1585, %v1613
  %v1615 = vlaneseq
  %v1616 = vshrl.u32 %v1615, 7
  %v1617 = vsub.s32 7, %v1616
  %v1618 = vrot.slane %v1585, %v1617
  %v1627 = vmul.f32 %v1495, %v1590
  %v1628 = vmul.f32 %v1497, %v1594
  %v1629 = vmul.f32 %v1499, %v1598
  %v1630 = vmul.f32 %v1501, %v1602
  %v1631 = vmul.f32 %v1503, %v1606
  %v1632 = vmul.f32 %v1505, %v1610
  %v1633 = vmul.f32 %v1507, %v1614
  %v1634 = vmul.f32 %v1509, %v1618
  %1636 = vset.pattern.permute.xlu0 0
  %1637 = vperm.xlu0 %1636, %v1627
  %v1638 = vpop.permute.xlu0 %1637
  %1641 = vset.pattern.permute.xlu0 0
  %1642 = vperm.xlu0 %1641, %v1628
  %v1643 = vpop.permute.xlu0 %1642
  %1646 = vset.pattern.permute.xlu0 0
  %1647 = vperm.xlu0 %1646, %v1629
  %v1648 = vpop.permute.xlu0 %1647
  %1651 = vset.pattern.permute.xlu0 0
  %1652 = vperm.xlu0 %1651, %v1630
  %v1653 = vpop.permute.xlu0 %1652
  %1656 = vset.pattern.permute.xlu0 0
  %1657 = vperm.xlu0 %1656, %v1631
  %v1658 = vpop.permute.xlu0 %1657
  %1661 = vset.pattern.permute.xlu0 0
  %1662 = vperm.xlu0 %1661, %v1632
  %v1663 = vpop.permute.xlu0 %1662
  %1666 = vset.pattern.permute.xlu0 0
  %1667 = vperm.xlu0 %1666, %v1633
  %v1668 = vpop.permute.xlu0 %1667
  %1671 = vset.pattern.permute.xlu0 0
  %1672 = vperm.xlu0 %1671, %v1634
  %v1673 = vpop.permute.xlu0 %1672
  %v1675 = vmul.f32 %v1638, %v677
  %v1676 = vmul.f32 %v1643, %v682
  %v1677 = vmul.f32 %v1648, %v687
  %v1678 = vmul.f32 %v1653, %v692
  %v1679 = vmul.f32 %v1658, %v697
  %v1680 = vmul.f32 %v1663, %v702
  %v1681 = vmul.f32 %v1668, %v707
  %v1682 = vmul.f32 %v1673, %v712
  %vm1683 = vcmask 261248
  %v1684 = vsel %vm1683, %v1675, 0.0
  %v1685 = vrot.slane %v1684, 4
  %v1686 = vadd.f32 %v1684, %v1685
  %v1687 = vrot.slane %v1686, 2
  %v1688 = vadd.f32 %v1686, %v1687
  %v1689 = vrot.slane %v1688, 1
  %v1690 = vadd.f32 %v1688, %v1689
  %v1691 = vsel %vm1683, %v1676, 0.0
  %v1692 = vrot.slane %v1691, 4
  %v1693 = vadd.f32 %v1691, %v1692
  %v1694 = vrot.slane %v1693, 2
  %v1695 = vadd.f32 %v1693, %v1694
  %v1696 = vrot.slane %v1695, 1
  %v1697 = vadd.f32 %v1695, %v1696
  %v1698 = vsel %vm1683, %v1677, 0.0
  %v1699 = vrot.slane %v1698, 4
  %v1700 = vadd.f32 %v1698, %v1699
  %v1701 = vrot.slane %v1700, 2
  %v1702 = vadd.f32 %v1700, %v1701
  %v1703 = vrot.slane %v1702, 1
  %v1704 = vadd.f32 %v1702, %v1703
  %v1705 = vsel %vm1683, %v1678, 0.0
  %v1706 = vrot.slane %v1705, 4
  %v1707 = vadd.f32 %v1705, %v1706
  %v1708 = vrot.slane %v1707, 2
  %v1709 = vadd.f32 %v1707, %v1708
  %v1710 = vrot.slane %v1709, 1
  %v1711 = vadd.f32 %v1709, %v1710
  %v1712 = vsel %vm1683, %v1679, 0.0
  %v1713 = vrot.slane %v1712, 4
  %v1714 = vadd.f32 %v1712, %v1713
  %v1715 = vrot.slane %v1714, 2
  %v1716 = vadd.f32 %v1714, %v1715
  %v1717 = vrot.slane %v1716, 1
  %v1718 = vadd.f32 %v1716, %v1717
  %v1719 = vsel %vm1683, %v1680, 0.0
  %v1720 = vrot.slane %v1719, 4
  %v1721 = vadd.f32 %v1719, %v1720
  %v1722 = vrot.slane %v1721, 2
  %v1723 = vadd.f32 %v1721, %v1722
  %v1724 = vrot.slane %v1723, 1
  %v1725 = vadd.f32 %v1723, %v1724
  %v1726 = vsel %vm1683, %v1681, 0.0
  %v1727 = vrot.slane %v1726, 4
  %v1728 = vadd.f32 %v1726, %v1727
  %v1729 = vrot.slane %v1728, 2
  %v1730 = vadd.f32 %v1728, %v1729
  %v1731 = vrot.slane %v1730, 1
  %v1732 = vadd.f32 %v1730, %v1731
  %v1733 = vsel %vm1683, %v1682, 0.0
  %v1734 = vrot.slane %v1733, 4
  %v1735 = vadd.f32 %v1733, %v1734
  %v1736 = vrot.slane %v1735, 2
  %v1737 = vadd.f32 %v1735, %v1736
  %v1738 = vrot.slane %v1737, 1
  %v1739 = vadd.f32 %v1737, %v1738
  %v1748 = vsel %vm985, %v1255, %v1248
  %v1749 = vsel %vm987, %v1262, %v1748
  %v1750 = vsel %vm989, %v1269, %v1749
  %v1751 = vsel %vm991, %v1276, %v1750
  %v1752 = vsel %vm993, %v1283, %v1751
  %v1753 = vsel %vm995, %v1290, %v1752
  %v1754 = vsel %vm997, %v1297, %v1753
  %v1764 = vsel %vm985, %v1697, %v1690
  %v1765 = vsel %vm987, %v1704, %v1764
  %v1766 = vsel %vm989, %v1711, %v1765
  %v1767 = vsel %vm991, %v1718, %v1766
  %v1768 = vsel %vm993, %v1725, %v1767
  %v1769 = vsel %vm995, %v1732, %v1768
  %v1770 = vsel %vm997, %v1739, %v1769
  %v1772 = vsel %vm813, %v1754, %v1770
  %v1773 = vlaneseq
  %v1774 = vshrl.u32 %v1773, 7
  %v1775 = vsub.s32 3, %v1774
  %v1776 = vrot.slane %v242, %v1775
  %v1778 = vsel %vm243, %v1772, 0
  %1780 = vmatprep.subr.mxu0 0.0
  %1781 = vmatpush1.msra.mxu0 %v228
  %1782 = vmatprep.subr.mxu0 0.0
  %1783 = vmatpush1.msra.mxu0 %v229
  %1784 = vmatprep.subr.mxu0 0.0
  %1785 = vmatpush1.msra.mxu0 %v230
  %1786 = vmatprep.subr.mxu0 0.0
  %1787 = vmatpush1.msra.mxu0 %v231
  %1788 = vmatprep.subr.mxu0 0.0
  %1789 = vmatpush1.msra.mxu0 0.0
  %1790 = vmatprep.subr.mxu0 0.0
  %1791 = vmatpush1.msra.mxu0 0.0
  %1792 = vmatprep.subr.mxu0 0.0
  %1793 = vmatpush1.msra.mxu0 0.0
  %1794 = vmatprep.subr.mxu0 0.0
  %1795 = vmatpush1.msra.mxu0 0.0
  %1796 = vmatprep.subr.mxu0 0.0
  %1797 = vmatpush1.msra.mxu0 0.0
  %1798 = vmatprep.subr.mxu0 0.0
  %1799 = vmatpush1.msra.mxu0 0.0
  %1800 = vmatprep.subr.mxu0 0.0
  %1801 = vmatpush1.msra.mxu0 0.0
  %1802 = vmatprep.subr.mxu0 0.0
  %1803 = vmatpush1.msra.mxu0 0.0
  %1804 = vmatprep.subr.mxu0 0.0
  %1805 = vmatpush1.msra.mxu0 0.0
  %1806 = vmatprep.subr.mxu0 0.0
  %1807 = vmatpush1.msra.mxu0 0.0
  %1808 = vmatprep.subr.mxu0 0.0
  %1809 = vmatpush1.msra.mxu0 0.0
  %1810 = vmatprep.subr.mxu0 0.0
  %1811 = vmatpush1.msra.mxu0 0.0
  %1812 = vmatprep.subr.mxu0 0.0
  %1813 = vmatpush1.msra.mxu0 0.0
  %1814 = vmatprep.subr.mxu0 0.0
  %1815 = vmatpush1.msra.mxu0 0.0
  %1816 = vmatprep.subr.mxu0 0.0
  %1817 = vmatpush1.msra.mxu0 0.0
  %1818 = vmatprep.subr.mxu0 0.0
  %1819 = vmatpush1.msra.mxu0 0.0
  %1820 = vmatprep.subr.mxu0 0.0
  %1821 = vmatpush1.msra.mxu0 0.0
  %1822 = vmatprep.subr.mxu0 0.0
  %1823 = vmatpush1.msra.mxu0 0.0
  %1824 = vmatprep.subr.mxu0 0.0
  %1825 = vmatpush1.msra.mxu0 0.0
  %1826 = vmatprep.subr.mxu0 0.0
  %1827 = vmatpush1.msra.mxu0 0.0
  %1828 = vmatprep.subr.mxu0 0.0
  %1829 = vmatpush1.msra.mxu0 0.0
  %1830 = vmatprep.subr.mxu0 0.0
  %1831 = vmatpush1.msra.mxu0 0.0
  %1832 = vmatprep.subr.mxu0 0.0
  %1833 = vmatpush1.msra.mxu0 0.0
  %1834 = vmatprep.subr.mxu0 0.0
  %1835 = vmatpush1.msra.mxu0 0.0
  %1836 = vmatprep.subr.mxu0 0.0
  %1837 = vmatpush1.msra.mxu0 0.0
  %1838 = vmatprep.subr.mxu0 0.0
  %1839 = vmatpush1.msra.mxu0 0.0
  %1840 = vmatprep.subr.mxu0 0.0
  %1841 = vmatpush1.msra.mxu0 0.0
  %1842 = vmatprep.subr.mxu0 0.0
  %1843 = vmatpush1.msra.mxu0 0.0
  %1844 = vmatprep.mubr.f32.mxu0 0.0
  %1845 = vmatmul.mubr.f32.gmra.mrb[0].mxu0 %v1778
  %v1846 = vpop.f32.mrb[0].mxu0
  %v1847 = vadd.f32 %v1776, %v1846
  %v1848 = vpop.f32.mrb[0].mxu0
  %1849 = vdwg.mxu0
  %v1851 = vsel %vm243, %v1847, 0
  %1853 = vmatprep.subr.mxu0 0.0
  %1854 = vmatpush1.msra.mxu0 %v233
  %1855 = vmatprep.subr.mxu0 0.0
  %1856 = vmatpush1.msra.mxu0 %v234
  %1857 = vmatprep.subr.mxu0 0.0
  %1858 = vmatpush1.msra.mxu0 %v235
  %1859 = vmatprep.subr.mxu0 0.0
  %1860 = vmatpush1.msra.mxu0 %v236
  %1861 = vmatprep.subr.mxu0 0.0
  %1862 = vmatpush1.msra.mxu0 0.0
  %1863 = vmatprep.subr.mxu0 0.0
  %1864 = vmatpush1.msra.mxu0 0.0
  %1865 = vmatprep.subr.mxu0 0.0
  %1866 = vmatpush1.msra.mxu0 0.0
  %1867 = vmatprep.subr.mxu0 0.0
  %1868 = vmatpush1.msra.mxu0 0.0
  %1869 = vmatprep.subr.mxu0 0.0
  %1870 = vmatpush1.msra.mxu0 0.0
  %1871 = vmatprep.subr.mxu0 0.0
  %1872 = vmatpush1.msra.mxu0 0.0
  %1873 = vmatprep.subr.mxu0 0.0
  %1874 = vmatpush1.msra.mxu0 0.0
  %1875 = vmatprep.subr.mxu0 0.0
  %1876 = vmatpush1.msra.mxu0 0.0
  %1877 = vmatprep.subr.mxu0 0.0
  %1878 = vmatpush1.msra.mxu0 0.0
  %1879 = vmatprep.subr.mxu0 0.0
  %1880 = vmatpush1.msra.mxu0 0.0
  %1881 = vmatprep.subr.mxu0 0.0
  %1882 = vmatpush1.msra.mxu0 0.0
  %1883 = vmatprep.subr.mxu0 0.0
  %1884 = vmatpush1.msra.mxu0 0.0
  %1885 = vmatprep.subr.mxu0 0.0
  %1886 = vmatpush1.msra.mxu0 0.0
  %1887 = vmatprep.subr.mxu0 0.0
  %1888 = vmatpush1.msra.mxu0 0.0
  %1889 = vmatprep.subr.mxu0 0.0
  %1890 = vmatpush1.msra.mxu0 0.0
  %1891 = vmatprep.subr.mxu0 0.0
  %1892 = vmatpush1.msra.mxu0 0.0
  %1893 = vmatprep.subr.mxu0 0.0
  %1894 = vmatpush1.msra.mxu0 0.0
  %1895 = vmatprep.subr.mxu0 0.0
  %1896 = vmatpush1.msra.mxu0 0.0
  %1897 = vmatprep.subr.mxu0 0.0
  %1898 = vmatpush1.msra.mxu0 0.0
  %1899 = vmatprep.subr.mxu0 0.0
  %1900 = vmatpush1.msra.mxu0 0.0
  %1901 = vmatprep.subr.mxu0 0.0
  %1902 = vmatpush1.msra.mxu0 0.0
  %1903 = vmatprep.subr.mxu0 0.0
  %1904 = vmatpush1.msra.mxu0 0.0
  %1905 = vmatprep.subr.mxu0 0.0
  %1906 = vmatpush1.msra.mxu0 0.0
  %1907 = vmatprep.subr.mxu0 0.0
  %1908 = vmatpush1.msra.mxu0 0.0
  %1909 = vmatprep.subr.mxu0 0.0
  %1910 = vmatpush1.msra.mxu0 0.0
  %1911 = vmatprep.subr.mxu0 0.0
  %1912 = vmatpush1.msra.mxu0 0.0
  %1913 = vmatprep.subr.mxu0 0.0
  %1914 = vmatpush1.msra.mxu0 0.0
  %1915 = vmatprep.subr.mxu0 0.0
  %1916 = vmatpush1.msra.mxu0 0.0
  %1917 = vmatprep.mubr.f32.mxu0 0.0
  %1918 = vmatmul.mubr.f32.gmra.mrb[0].mxu0 %v1851
  %v1919 = vpop.f32.mrb[0].mxu0
  %v1920 = vadd.f32 0.0, %v1919
  %v1921 = vpop.f32.mrb[0].mxu0
  %1922 = vdwg.mxu0
  %vm1923 = vcmp.ge.f32.partialorder %v1920, 0.0
  %v1924 = vmul.f32 %v1920, 0.01
  %v1925 = vsel %vm1923, %v1920, %v1924
  %v1926 = vadd.f32 %v1925, %v206
  %v1927 = vsel %vm243, %v1926, 0.0
  %1928 = vadd.xlane.f32.xlu0 %v1927
  %v1929 = vpop.xlane.xlu0 %1928
  %v1930 = vrcp.pop 32.0
  %v1931 = vmul.f32 %v1929, %v1930
  %v1932 = vsub.f32 %v1926, %v1931
  %v1933 = vmul.f32 %v1932, %v1932
  %v1934 = vsel %vm243, %v1933, 0.0
  %1935 = vadd.xlane.f32.xlu0 %v1934
  %v1936 = vpop.xlane.xlu0 %1935
  %v1937 = vmul.f32 %v1936, %v1930
  %v1938 = vadd.f32 %v1937, 1e-05
  %v1939 = vrsqrt.pop %v1938
  %v1940 = vmul.f32 %v1932, %v1939
  %v1941 = vlaneseq
  %v1942 = vshrl.u32 %v1941, 7
  %v1943 = vsub.s32 4, %v1942
  %v1944 = vrot.slane %v242, %v1943
  %v1945 = vmul.f32 %v1940, %v1944
  %v1946 = vlaneseq
  %v1947 = vshrl.u32 %v1946, 7
  %v1948 = vsub.s32 5, %v1947
  %v1949 = vrot.slane %v242, %v1948
  %v1950 = vadd.f32 %v1945, %v1949
  %v1952 = vsel %vm243, %v1950, 0
  %1954 = vmatprep.subr.mxu0 0.0
  %1955 = vmatpush1.msra.mxu0 %v238
  %1956 = vmatprep.subr.mxu0 0.0
  %1957 = vmatpush1.msra.mxu0 %v239
  %1958 = vmatprep.subr.mxu0 0.0
  %1959 = vmatpush1.msra.mxu0 %v240
  %1960 = vmatprep.subr.mxu0 0.0
  %1961 = vmatpush1.msra.mxu0 %v241
  %1962 = vmatprep.subr.mxu0 0.0
  %1963 = vmatpush1.msra.mxu0 0.0
  %1964 = vmatprep.subr.mxu0 0.0
  %1965 = vmatpush1.msra.mxu0 0.0
  %1966 = vmatprep.subr.mxu0 0.0
  %1967 = vmatpush1.msra.mxu0 0.0
  %1968 = vmatprep.subr.mxu0 0.0
  %1969 = vmatpush1.msra.mxu0 0.0
  %1970 = vmatprep.subr.mxu0 0.0
  %1971 = vmatpush1.msra.mxu0 0.0
  %1972 = vmatprep.subr.mxu0 0.0
  %1973 = vmatpush1.msra.mxu0 0.0
  %1974 = vmatprep.subr.mxu0 0.0
  %1975 = vmatpush1.msra.mxu0 0.0
  %1976 = vmatprep.subr.mxu0 0.0
  %1977 = vmatpush1.msra.mxu0 0.0
  %1978 = vmatprep.subr.mxu0 0.0
  %1979 = vmatpush1.msra.mxu0 0.0
  %1980 = vmatprep.subr.mxu0 0.0
  %1981 = vmatpush1.msra.mxu0 0.0
  %1982 = vmatprep.subr.mxu0 0.0
  %1983 = vmatpush1.msra.mxu0 0.0
  %1984 = vmatprep.subr.mxu0 0.0
  %1985 = vmatpush1.msra.mxu0 0.0
  %1986 = vmatprep.subr.mxu0 0.0
  %1987 = vmatpush1.msra.mxu0 0.0
  %1988 = vmatprep.subr.mxu0 0.0
  %1989 = vmatpush1.msra.mxu0 0.0
  %1990 = vmatprep.subr.mxu0 0.0
  %1991 = vmatpush1.msra.mxu0 0.0
  %1992 = vmatprep.subr.mxu0 0.0
  %1993 = vmatpush1.msra.mxu0 0.0
  %1994 = vmatprep.subr.mxu0 0.0
  %1995 = vmatpush1.msra.mxu0 0.0
  %1996 = vmatprep.subr.mxu0 0.0
  %1997 = vmatpush1.msra.mxu0 0.0
  %1998 = vmatprep.subr.mxu0 0.0
  %1999 = vmatpush1.msra.mxu0 0.0
  %2000 = vmatprep.subr.mxu0 0.0
  %2001 = vmatpush1.msra.mxu0 0.0
  %2002 = vmatprep.subr.mxu0 0.0
  %2003 = vmatpush1.msra.mxu0 0.0
  %2004 = vmatprep.subr.mxu0 0.0
  %2005 = vmatpush1.msra.mxu0 0.0
  %2006 = vmatprep.subr.mxu0 0.0
  %2007 = vmatpush1.msra.mxu0 0.0
  %2008 = vmatprep.subr.mxu0 0.0
  %2009 = vmatpush1.msra.mxu0 0.0
  %2010 = vmatprep.subr.mxu0 0.0
  %2011 = vmatpush1.msra.mxu0 0.0
  %2012 = vmatprep.subr.mxu0 0.0
  %2013 = vmatpush1.msra.mxu0 0.0
  %2014 = vmatprep.subr.mxu0 0.0
  %2015 = vmatpush1.msra.mxu0 0.0
  %2016 = vmatprep.subr.mxu0 0.0
  %2017 = vmatpush1.msra.mxu0 0.0
  %2018 = vmatprep.mubr.f32.mxu0 0.0
  %2019 = vmatmul.mubr.f32.gmra.mrb[0].mxu0 %v1952
  %v2020 = vpop.f32.mrb[0].mxu0
  %v2021 = vadd.f32 0.0, %v2020
  %v2022 = vpop.f32.mrb[0].mxu0
  %2023 = vdwg.mxu0
  %vm2024 = vcmp.ge.f32.partialorder %v2021, 0.0
  %v2025 = vmul.f32 %v2021, 0.01
  %v2026 = vsel %vm2024, %v2021, %v2025
  %s2027 = scalar_lea.vmem %s4, 224
  %v2028 = vld [vmem:[%s2027] sm:$0xff]
  %v2029 = vld [vmem:[%s2027 + $0x8] sm:$0xff]
  %v2030 = vld [vmem:[%s2027 + $0x10] sm:$0xff]
  %v2031 = vld [vmem:[%s2027 + $0x18] sm:$0xff]
  %s2032 = scalar_lea.vmem %s4, 256
  %v2033 = vld [vmem:[%s2032] sm:$0xff]
  %v2034 = vld [vmem:[%s2032 + $0x8] sm:$0xff]
  %v2035 = vld [vmem:[%s2032 + $0x10] sm:$0xff]
  %v2036 = vld [vmem:[%s2032 + $0x18] sm:$0xff]
  %s2037 = scalar_lea.vmem %s4, 288
  %v2038 = vld [vmem:[%s2037] sm:$0xff]
  %v2039 = vld [vmem:[%s2037 + $0x8] sm:$0xff]
  %v2040 = vld [vmem:[%s2037 + $0x10] sm:$0xff]
  %v2041 = vld [vmem:[%s2037 + $0x18] sm:$0xff]
  %s2042 = scalar_lea.vmem %s4, 320
  %v2043 = vld [vmem:[%s2042] sm:$0xff]
  %v2044 = vld [vmem:[%s2042 + $0x8] sm:$0xff]
  %v2045 = vld [vmem:[%s2042 + $0x10] sm:$0xff]
  %v2046 = vld [vmem:[%s2042 + $0x18] sm:$0xff]
  %s2047 = scalar_lea.vmem %s4, 352
  %v2048 = vld [vmem:[%s2047] sm:$0xff]
  %v2049 = vld [vmem:[%s2047 + $0x8] sm:$0xff]
  %v2050 = vld [vmem:[%s2047 + $0x10] sm:$0xff]
  %v2051 = vld [vmem:[%s2047 + $0x18] sm:$0xff]
  %s2052 = scalar_lea.vmem %s4, 384
  %v2053 = vld [vmem:[%s2052] sm:$0xff]
  %v2054 = vld [vmem:[%s2052 + $0x8] sm:$0xff]
  %v2055 = vld [vmem:[%s2052 + $0x10] sm:$0xff]
  %v2056 = vld [vmem:[%s2052 + $0x18] sm:$0xff]
  %s2057 = scalar_lea.vmem %s4, 416
  %v2058 = vld [vmem:[%s2057] sm:$0xff]
  %v2059 = vld [vmem:[%s2057 + $0x8] sm:$0xff]
  %v2060 = vld [vmem:[%s2057 + $0x10] sm:$0xff]
  %v2061 = vld [vmem:[%s2057 + $0x18] sm:$0xff]
  %s2062 = scalar_lea.vmem %s5, 8
  %v2063 = vld [vmem:[%s2062] sm:$0x3f]
  %2064 = vmatprep.subr.mxu0 0.0
  %2065 = vmatpush1.msra.mxu0 %v2028
  %2066 = vmatprep.subr.mxu0 0.0
  %2067 = vmatpush1.msra.mxu0 %v2029
  %2068 = vmatprep.subr.mxu0 0.0
  %2069 = vmatpush1.msra.mxu0 %v2030
  %2070 = vmatprep.subr.mxu0 0.0
  %2071 = vmatpush1.msra.mxu0 %v2031
  %2072 = vmatprep.subr.mxu0 0.0
  %2073 = vmatpush1.msra.mxu0 0.0
  %2074 = vmatprep.subr.mxu0 0.0
  %2075 = vmatpush1.msra.mxu0 0.0
  %2076 = vmatprep.subr.mxu0 0.0
  %2077 = vmatpush1.msra.mxu0 0.0
  %2078 = vmatprep.subr.mxu0 0.0
  %2079 = vmatpush1.msra.mxu0 0.0
  %2080 = vmatprep.subr.mxu0 0.0
  %2081 = vmatpush1.msra.mxu0 0.0
  %2082 = vmatprep.subr.mxu0 0.0
  %2083 = vmatpush1.msra.mxu0 0.0
  %2084 = vmatprep.subr.mxu0 0.0
  %2085 = vmatpush1.msra.mxu0 0.0
  %2086 = vmatprep.subr.mxu0 0.0
  %2087 = vmatpush1.msra.mxu0 0.0
  %2088 = vmatprep.subr.mxu0 0.0
  %2089 = vmatpush1.msra.mxu0 0.0
  %2090 = vmatprep.subr.mxu0 0.0
  %2091 = vmatpush1.msra.mxu0 0.0
  %2092 = vmatprep.subr.mxu0 0.0
  %2093 = vmatpush1.msra.mxu0 0.0
  %2094 = vmatprep.subr.mxu0 0.0
  %2095 = vmatpush1.msra.mxu0 0.0
  %2096 = vmatprep.subr.mxu0 0.0
  %2097 = vmatpush1.msra.mxu0 0.0
  %2098 = vmatprep.subr.mxu0 0.0
  %2099 = vmatpush1.msra.mxu0 0.0
  %2100 = vmatprep.subr.mxu0 0.0
  %2101 = vmatpush1.msra.mxu0 0.0
  %2102 = vmatprep.subr.mxu0 0.0
  %2103 = vmatpush1.msra.mxu0 0.0
  %2104 = vmatprep.subr.mxu0 0.0
  %2105 = vmatpush1.msra.mxu0 0.0
  %2106 = vmatprep.subr.mxu0 0.0
  %2107 = vmatpush1.msra.mxu0 0.0
  %2108 = vmatprep.subr.mxu0 0.0
  %2109 = vmatpush1.msra.mxu0 0.0
  %2110 = vmatprep.subr.mxu0 0.0
  %2111 = vmatpush1.msra.mxu0 0.0
  %2112 = vmatprep.subr.mxu0 0.0
  %2113 = vmatpush1.msra.mxu0 0.0
  %2114 = vmatprep.subr.mxu0 0.0
  %2115 = vmatpush1.msra.mxu0 0.0
  %2116 = vmatprep.subr.mxu0 0.0
  %2117 = vmatpush1.msra.mxu0 0.0
  %2118 = vmatprep.subr.mxu0 0.0
  %2119 = vmatpush1.msra.mxu0 0.0
  %2120 = vmatprep.subr.mxu0 0.0
  %2121 = vmatpush1.msra.mxu0 0.0
  %2122 = vmatprep.subr.mxu0 0.0
  %2123 = vmatpush1.msra.mxu0 0.0
  %2124 = vmatprep.subr.mxu0 0.0
  %2125 = vmatpush1.msra.mxu0 0.0
  %2126 = vmatprep.subr.mxu0 0.0
  %2127 = vmatpush1.msra.mxu0 0.0
  %2128 = vmatprep.mubr.f32.mxu0 0.0
  %2129 = vmatmul.mubr.f32.gmra.mrb[0].mxu0 %v245
  %v2130 = vpop.f32.mrb[0].mxu0
  %v2131 = vadd.f32 0.0, %v2130
  %v2132 = vpop.f32.mrb[0].mxu0
  %2133 = vmatprep.mubr.f32.mxu0 0.0
  %2134 = vmatmul.mubr.f32.gmra.mrb[0].mxu0 %v248
  %v2135 = vpop.f32.mrb[0].mxu0
  %v2136 = vadd.f32 0.0, %v2135
  %v2137 = vpop.f32.mrb[0].mxu0
  %2138 = vmatprep.mubr.f32.mxu0 0.0
  %2139 = vmatmul.mubr.f32.gmra.mrb[0].mxu0 %v251
  %v2140 = vpop.f32.mrb[0].mxu0
  %v2141 = vadd.f32 0.0, %v2140
  %v2142 = vpop.f32.mrb[0].mxu0
  %2143 = vmatprep.mubr.f32.mxu0 0.0
  %2144 = vmatmul.mubr.f32.gmra.mrb[0].mxu0 %v254
  %v2145 = vpop.f32.mrb[0].mxu0
  %v2146 = vadd.f32 0.0, %v2145
  %v2147 = vpop.f32.mrb[0].mxu0
  %2148 = vmatprep.mubr.f32.mxu0 0.0
  %2149 = vmatmul.mubr.f32.gmra.mrb[0].mxu0 %v257
  %v2150 = vpop.f32.mrb[0].mxu0
  %v2151 = vadd.f32 0.0, %v2150
  %v2152 = vpop.f32.mrb[0].mxu0
  %2153 = vmatprep.mubr.f32.mxu0 0.0
  %2154 = vmatmul.mubr.f32.gmra.mrb[0].mxu0 %v260
  %v2155 = vpop.f32.mrb[0].mxu0
  %v2156 = vadd.f32 0.0, %v2155
  %v2157 = vpop.f32.mrb[0].mxu0
  %2158 = vmatprep.mubr.f32.mxu0 0.0
  %2159 = vmatmul.mubr.f32.gmra.mrb[0].mxu0 %v263
  %v2160 = vpop.f32.mrb[0].mxu0
  %v2161 = vadd.f32 0.0, %v2160
  %v2162 = vpop.f32.mrb[0].mxu0
  %2163 = vmatprep.mubr.f32.mxu0 0.0
  %2164 = vmatmul.mubr.f32.gmra.mrb[0].mxu0 %v266
  %v2165 = vpop.f32.mrb[0].mxu0
  %v2166 = vadd.f32 0.0, %v2165
  %v2167 = vpop.f32.mrb[0].mxu0
  %2168 = vdwg.mxu0
  %vm2169 = vcmp.ge.f32.partialorder %v2131, 0.0
  %vm2170 = vcmp.ge.f32.partialorder %v2136, 0.0
  %vm2171 = vcmp.ge.f32.partialorder %v2141, 0.0
  %vm2172 = vcmp.ge.f32.partialorder %v2146, 0.0
  %vm2173 = vcmp.ge.f32.partialorder %v2151, 0.0
  %vm2174 = vcmp.ge.f32.partialorder %v2156, 0.0
  %vm2175 = vcmp.ge.f32.partialorder %v2161, 0.0
  %vm2176 = vcmp.ge.f32.partialorder %v2166, 0.0
  %v2177 = vmul.f32 %v2131, 0.01
  %v2178 = vmul.f32 %v2136, 0.01
  %v2179 = vmul.f32 %v2141, 0.01
  %v2180 = vmul.f32 %v2146, 0.01
  %v2181 = vmul.f32 %v2151, 0.01
  %v2182 = vmul.f32 %v2156, 0.01
  %v2183 = vmul.f32 %v2161, 0.01
  %v2184 = vmul.f32 %v2166, 0.01
  %v2185 = vsel %vm2169, %v2131, %v2177
  %v2186 = vsel %vm2170, %v2136, %v2178
  %v2187 = vsel %vm2171, %v2141, %v2179
  %v2188 = vsel %vm2172, %v2146, %v2180
  %v2189 = vsel %vm2173, %v2151, %v2181
  %v2190 = vsel %vm2174, %v2156, %v2182
  %v2191 = vsel %vm2175, %v2161, %v2183
  %v2192 = vsel %vm2176, %v2166, %v2184
  %v2193 = vlaneseq
  %v2194 = vshrl.u32 %v2193, 7
  %v2195 = vsub.s32 0, %v2194
  %v2196 = vrot.slane %v2063, %v2195
  %v2198 = vsel %vm243, %v2026, 0
  %2200 = vmatprep.subr.mxu0 0.0
  %2201 = vmatpush1.msra.mxu0 %v2033
  %2202 = vmatprep.subr.mxu0 0.0
  %2203 = vmatpush1.msra.mxu0 %v2034
  %2204 = vmatprep.subr.mxu0 0.0
  %2205 = vmatpush1.msra.mxu0 %v2035
  %2206 = vmatprep.subr.mxu0 0.0
  %2207 = vmatpush1.msra.mxu0 %v2036
  %2208 = vmatprep.subr.mxu0 0.0
  %2209 = vmatpush1.msra.mxu0 0.0
  %2210 = vmatprep.subr.mxu0 0.0
  %2211 = vmatpush1.msra.mxu0 0.0
  %2212 = vmatprep.subr.mxu0 0.0
  %2213 = vmatpush1.msra.mxu0 0.0
  %2214 = vmatprep.subr.mxu0 0.0
  %2215 = vmatpush1.msra.mxu0 0.0
  %2216 = vmatprep.subr.mxu0 0.0
  %2217 = vmatpush1.msra.mxu0 0.0
  %2218 = vmatprep.subr.mxu0 0.0
  %2219 = vmatpush1.msra.mxu0 0.0
  %2220 = vmatprep.subr.mxu0 0.0
  %2221 = vmatpush1.msra.mxu0 0.0
  %2222 = vmatprep.subr.mxu0 0.0
  %2223 = vmatpush1.msra.mxu0 0.0
  %2224 = vmatprep.subr.mxu0 0.0
  %2225 = vmatpush1.msra.mxu0 0.0
  %2226 = vmatprep.subr.mxu0 0.0
  %2227 = vmatpush1.msra.mxu0 0.0
  %2228 = vmatprep.subr.mxu0 0.0
  %2229 = vmatpush1.msra.mxu0 0.0
  %2230 = vmatprep.subr.mxu0 0.0
  %2231 = vmatpush1.msra.mxu0 0.0
  %2232 = vmatprep.subr.mxu0 0.0
  %2233 = vmatpush1.msra.mxu0 0.0
  %2234 = vmatprep.subr.mxu0 0.0
  %2235 = vmatpush1.msra.mxu0 0.0
  %2236 = vmatprep.subr.mxu0 0.0
  %2237 = vmatpush1.msra.mxu0 0.0
  %2238 = vmatprep.subr.mxu0 0.0
  %2239 = vmatpush1.msra.mxu0 0.0
  %2240 = vmatprep.subr.mxu0 0.0
  %2241 = vmatpush1.msra.mxu0 0.0
  %2242 = vmatprep.subr.mxu0 0.0
  %2243 = vmatpush1.msra.mxu0 0.0
  %2244 = vmatprep.subr.mxu0 0.0
  %2245 = vmatpush1.msra.mxu0 0.0
  %2246 = vmatprep.subr.mxu0 0.0
  %2247 = vmatpush1.msra.mxu0 0.0
  %2248 = vmatprep.subr.mxu0 0.0
  %2249 = vmatpush1.msra.mxu0 0.0
  %2250 = vmatprep.subr.mxu0 0.0
  %2251 = vmatpush1.msra.mxu0 0.0
  %2252 = vmatprep.subr.mxu0 0.0
  %2253 = vmatpush1.msra.mxu0 0.0
  %2254 = vmatprep.subr.mxu0 0.0
  %2255 = vmatpush1.msra.mxu0 0.0
  %2256 = vmatprep.subr.mxu0 0.0
  %2257 = vmatpush1.msra.mxu0 0.0
  %2258 = vmatprep.subr.mxu0 0.0
  %2259 = vmatpush1.msra.mxu0 0.0
  %2260 = vmatprep.subr.mxu0 0.0
  %2261 = vmatpush1.msra.mxu0 0.0
  %2262 = vmatprep.subr.mxu0 0.0
  %2263 = vmatpush1.msra.mxu0 0.0
  %2264 = vmatprep.mubr.f32.mxu0 0.0
  %2265 = vmatmul.mubr.f32.gmra.mrb[0].mxu0 %v2198
  %v2266 = vpop.f32.mrb[0].mxu0
  %v2267 = vadd.f32 %v2196, %v2266
  %v2268 = vpop.f32.mrb[0].mxu0
  %2269 = vdwg.mxu0
  %v2270 = vlaneseq
  %v2271 = vshrl.u32 %v2270, 7
  %v2272 = vsub.s32 1, %v2271
  %v2273 = vrot.slane %v2063, %v2272
  %v2275 = vsel %vm243, %v2185, 0
  %v2278 = vsel %vm243, %v2186, 0
  %v2281 = vsel %vm243, %v2187, 0
  %v2284 = vsel %vm243, %v2188, 0
  %v2287 = vsel %vm243, %v2189, 0
  %v2290 = vsel %vm243, %v2190, 0
  %v2293 = vsel %vm243, %v2191, 0
  %v2296 = vsel %vm243, %v2192, 0
  %2298 = vmatprep.subr.mxu0 0.0
  %2299 = vmatpush1.msra.mxu0 %v2038
  %2300 = vmatprep.subr.mxu0 0.0
  %2301 = vmatpush1.msra.mxu0 %v2039
  %2302 = vmatprep.subr.mxu0 0.0
  %2303 = vmatpush1.msra.mxu0 %v2040
  %2304 = vmatprep.subr.mxu0 0.0
  %2305 = vmatpush1.msra.mxu0 %v2041
  %2306 = vmatprep.subr.mxu0 0.0
  %2307 = vmatpush1.msra.mxu0 0.0
  %2308 = vmatprep.subr.mxu0 0.0
  %2309 = vmatpush1.msra.mxu0 0.0
  %2310 = vmatprep.subr.mxu0 0.0
  %2311 = vmatpush1.msra.mxu0 0.0
  %2312 = vmatprep.subr.mxu0 0.0
  %2313 = vmatpush1.msra.mxu0 0.0
  %2314 = vmatprep.subr.mxu0 0.0
  %2315 = vmatpush1.msra.mxu0 0.0
  %2316 = vmatprep.subr.mxu0 0.0
  %2317 = vmatpush1.msra.mxu0 0.0
  %2318 = vmatprep.subr.mxu0 0.0
  %2319 = vmatpush1.msra.mxu0 0.0
  %2320 = vmatprep.subr.mxu0 0.0
  %2321 = vmatpush1.msra.mxu0 0.0
  %2322 = vmatprep.subr.mxu0 0.0
  %2323 = vmatpush1.msra.mxu0 0.0
  %2324 = vmatprep.subr.mxu0 0.0
  %2325 = vmatpush1.msra.mxu0 0.0
  %2326 = vmatprep.subr.mxu0 0.0
  %2327 = vmatpush1.msra.mxu0 0.0
  %2328 = vmatprep.subr.mxu0 0.0
  %2329 = vmatpush1.msra.mxu0 0.0
  %2330 = vmatprep.subr.mxu0 0.0
  %2331 = vmatpush1.msra.mxu0 0.0
  %2332 = vmatprep.subr.mxu0 0.0
  %2333 = vmatpush1.msra.mxu0 0.0
  %2334 = vmatprep.subr.mxu0 0.0
  %2335 = vmatpush1.msra.mxu0 0.0
  %2336 = vmatprep.subr.mxu0 0.0
  %2337 = vmatpush1.msra.mxu0 0.0
  %2338 = vmatprep.subr.mxu0 0.0
  %2339 = vmatpush1.msra.mxu0 0.0
  %2340 = vmatprep.subr.mxu0 0.0
  %2341 = vmatpush1.msra.mxu0 0.0
  %2342 = vmatprep.subr.mxu0 0.0
  %2343 = vmatpush1.msra.mxu0 0.0
  %2344 = vmatprep.subr.mxu0 0.0
  %2345 = vmatpush1.msra.mxu0 0.0
  %2346 = vmatprep.subr.mxu0 0.0
  %2347 = vmatpush1.msra.mxu0 0.0
  %2348 = vmatprep.subr.mxu0 0.0
  %2349 = vmatpush1.msra.mxu0 0.0
  %2350 = vmatprep.subr.mxu0 0.0
  %2351 = vmatpush1.msra.mxu0 0.0
  %2352 = vmatprep.subr.mxu0 0.0
  %2353 = vmatpush1.msra.mxu0 0.0
  %2354 = vmatprep.subr.mxu0 0.0
  %2355 = vmatpush1.msra.mxu0 0.0
  %2356 = vmatprep.subr.mxu0 0.0
  %2357 = vmatpush1.msra.mxu0 0.0
  %2358 = vmatprep.subr.mxu0 0.0
  %2359 = vmatpush1.msra.mxu0 0.0
  %2360 = vmatprep.subr.mxu0 0.0
  %2361 = vmatpush1.msra.mxu0 0.0
  %2362 = vmatprep.mubr.f32.mxu0 0.0
  %2363 = vmatmul.mubr.f32.gmra.mrb[0].mxu0 %v2275
  %v2364 = vpop.f32.mrb[0].mxu0
  %v2365 = vadd.f32 %v2273, %v2364
  %v2366 = vpop.f32.mrb[0].mxu0
  %2367 = vmatprep.mubr.f32.mxu0 0.0
  %2368 = vmatmul.mubr.f32.gmra.mrb[0].mxu0 %v2278
  %v2369 = vpop.f32.mrb[0].mxu0
  %v2370 = vadd.f32 %v2273, %v2369
  %v2371 = vpop.f32.mrb[0].mxu0
  %2372 = vmatprep.mubr.f32.mxu0 0.0
  %2373 = vmatmul.mubr.f32.gmra.mrb[0].mxu0 %v2281
  %v2374 = vpop.f32.mrb[0].mxu0
  %v2375 = vadd.f32 %v2273, %v2374
  %v2376 = vpop.f32.mrb[0].mxu0
  %2377 = vmatprep.mubr.f32.mxu0 0.0
  %2378 = vmatmul.mubr.f32.gmra.mrb[0].mxu0 %v2284
  %v2379 = vpop.f32.mrb[0].mxu0
  %v2380 = vadd.f32 %v2273, %v2379
  %v2381 = vpop.f32.mrb[0].mxu0
  %2382 = vmatprep.mubr.f32.mxu0 0.0
  %2383 = vmatmul.mubr.f32.gmra.mrb[0].mxu0 %v2287
  %v2384 = vpop.f32.mrb[0].mxu0
  %v2385 = vadd.f32 %v2273, %v2384
  %v2386 = vpop.f32.mrb[0].mxu0
  %2387 = vmatprep.mubr.f32.mxu0 0.0
  %2388 = vmatmul.mubr.f32.gmra.mrb[0].mxu0 %v2290
  %v2389 = vpop.f32.mrb[0].mxu0
  %v2390 = vadd.f32 %v2273, %v2389
  %v2391 = vpop.f32.mrb[0].mxu0
  %2392 = vmatprep.mubr.f32.mxu0 0.0
  %2393 = vmatmul.mubr.f32.gmra.mrb[0].mxu0 %v2293
  %v2394 = vpop.f32.mrb[0].mxu0
  %v2395 = vadd.f32 %v2273, %v2394
  %v2396 = vpop.f32.mrb[0].mxu0
  %2397 = vmatprep.mubr.f32.mxu0 0.0
  %2398 = vmatmul.mubr.f32.gmra.mrb[0].mxu0 %v2296
  %v2399 = vpop.f32.mrb[0].mxu0
  %v2400 = vadd.f32 %v2273, %v2399
  %v2401 = vpop.f32.mrb[0].mxu0
  %2402 = vdwg.mxu0
  %v2403 = vlaneseq
  %v2404 = vshrl.u32 %v2403, 7
  %v2405 = vsub.s32 2, %v2404
  %v2406 = vrot.slane %v2063, %v2405
  %2407 = vmatprep.subr.mxu0 0.0
  %2408 = vmatpush1.msra.mxu0 %v2043
  %2409 = vmatprep.subr.mxu0 0.0
  %2410 = vmatpush1.msra.mxu0 %v2044
  %2411 = vmatprep.subr.mxu0 0.0
  %2412 = vmatpush1.msra.mxu0 %v2045
  %2413 = vmatprep.subr.mxu0 0.0
  %2414 = vmatpush1.msra.mxu0 %v2046
  %2415 = vmatprep.subr.mxu0 0.0
  %2416 = vmatpush1.msra.mxu0 0.0
  %2417 = vmatprep.subr.mxu0 0.0
  %2418 = vmatpush1.msra.mxu0 0.0
  %2419 = vmatprep.subr.mxu0 0.0
  %2420 = vmatpush1.msra.mxu0 0.0
  %2421 = vmatprep.subr.mxu0 0.0
  %2422 = vmatpush1.msra.mxu0 0.0
  %2423 = vmatprep.subr.mxu0 0.0
  %2424 = vmatpush1.msra.mxu0 0.0
  %2425 = vmatprep.subr.mxu0 0.0
  %2426 = vmatpush1.msra.mxu0 0.0
  %2427 = vmatprep.subr.mxu0 0.0
  %2428 = vmatpush1.msra.mxu0 0.0
  %2429 = vmatprep.subr.mxu0 0.0
  %2430 = vmatpush1.msra.mxu0 0.0
  %2431 = vmatprep.subr.mxu0 0.0
  %2432 = vmatpush1.msra.mxu0 0.0
  %2433 = vmatprep.subr.mxu0 0.0
  %2434 = vmatpush1.msra.mxu0 0.0
  %2435 = vmatprep.subr.mxu0 0.0
  %2436 = vmatpush1.msra.mxu0 0.0
  %2437 = vmatprep.subr.mxu0 0.0
  %2438 = vmatpush1.msra.mxu0 0.0
  %2439 = vmatprep.subr.mxu0 0.0
  %2440 = vmatpush1.msra.mxu0 0.0
  %2441 = vmatprep.subr.mxu0 0.0
  %2442 = vmatpush1.msra.mxu0 0.0
  %2443 = vmatprep.subr.mxu0 0.0
  %2444 = vmatpush1.msra.mxu0 0.0
  %2445 = vmatprep.subr.mxu0 0.0
  %2446 = vmatpush1.msra.mxu0 0.0
  %2447 = vmatprep.subr.mxu0 0.0
  %2448 = vmatpush1.msra.mxu0 0.0
  %2449 = vmatprep.subr.mxu0 0.0
  %2450 = vmatpush1.msra.mxu0 0.0
  %2451 = vmatprep.subr.mxu0 0.0
  %2452 = vmatpush1.msra.mxu0 0.0
  %2453 = vmatprep.subr.mxu0 0.0
  %2454 = vmatpush1.msra.mxu0 0.0
  %2455 = vmatprep.subr.mxu0 0.0
  %2456 = vmatpush1.msra.mxu0 0.0
  %2457 = vmatprep.subr.mxu0 0.0
  %2458 = vmatpush1.msra.mxu0 0.0
  %2459 = vmatprep.subr.mxu0 0.0
  %2460 = vmatpush1.msra.mxu0 0.0
  %2461 = vmatprep.subr.mxu0 0.0
  %2462 = vmatpush1.msra.mxu0 0.0
  %2463 = vmatprep.subr.mxu0 0.0
  %2464 = vmatpush1.msra.mxu0 0.0
  %2465 = vmatprep.subr.mxu0 0.0
  %2466 = vmatpush1.msra.mxu0 0.0
  %2467 = vmatprep.subr.mxu0 0.0
  %2468 = vmatpush1.msra.mxu0 0.0
  %2469 = vmatprep.subr.mxu0 0.0
  %2470 = vmatpush1.msra.mxu0 0.0
  %2471 = vmatprep.mubr.f32.mxu0 0.0
  %2472 = vmatmul.mubr.f32.gmra.mrb[0].mxu0 %v2275
  %v2473 = vpop.f32.mrb[0].mxu0
  %v2474 = vadd.f32 %v2406, %v2473
  %v2475 = vpop.f32.mrb[0].mxu0
  %2476 = vmatprep.mubr.f32.mxu0 0.0
  %2477 = vmatmul.mubr.f32.gmra.mrb[0].mxu0 %v2278
  %v2478 = vpop.f32.mrb[0].mxu0
  %v2479 = vadd.f32 %v2406, %v2478
  %v2480 = vpop.f32.mrb[0].mxu0
  %2481 = vmatprep.mubr.f32.mxu0 0.0
  %2482 = vmatmul.mubr.f32.gmra.mrb[0].mxu0 %v2281
  %v2483 = vpop.f32.mrb[0].mxu0
  %v2484 = vadd.f32 %v2406, %v2483
  %v2485 = vpop.f32.mrb[0].mxu0
  %2486 = vmatprep.mubr.f32.mxu0 0.0
  %2487 = vmatmul.mubr.f32.gmra.mrb[0].mxu0 %v2284
  %v2488 = vpop.f32.mrb[0].mxu0
  %v2489 = vadd.f32 %v2406, %v2488
  %v2490 = vpop.f32.mrb[0].mxu0
  %2491 = vmatprep.mubr.f32.mxu0 0.0
  %2492 = vmatmul.mubr.f32.gmra.mrb[0].mxu0 %v2287
  %v2493 = vpop.f32.mrb[0].mxu0
  %v2494 = vadd.f32 %v2406, %v2493
  %v2495 = vpop.f32.mrb[0].mxu0
  %2496 = vmatprep.mubr.f32.mxu0 0.0
  %2497 = vmatmul.mubr.f32.gmra.mrb[0].mxu0 %v2290
  %v2498 = vpop.f32.mrb[0].mxu0
  %v2499 = vadd.f32 %v2406, %v2498
  %v2500 = vpop.f32.mrb[0].mxu0
  %2501 = vmatprep.mubr.f32.mxu0 0.0
  %2502 = vmatmul.mubr.f32.gmra.mrb[0].mxu0 %v2293
  %v2503 = vpop.f32.mrb[0].mxu0
  %v2504 = vadd.f32 %v2406, %v2503
  %v2505 = vpop.f32.mrb[0].mxu0
  %2506 = vmatprep.mubr.f32.mxu0 0.0
  %2507 = vmatmul.mubr.f32.gmra.mrb[0].mxu0 %v2296
  %v2508 = vpop.f32.mrb[0].mxu0
  %v2509 = vadd.f32 %v2406, %v2508
  %v2510 = vpop.f32.mrb[0].mxu0
  %2511 = vdwg.mxu0
  %v2513 = vcombine.high %v2267, %v2267
  %v2515 = vunpack.c.l.s4 1966171168
  %v2516 = vunpack.c.0.s8 %v2515
  %v2517 = vlaneseq
  %v2518 = vshrl.u32 %v2517, 7
  %v2519 = vsub.s32 %v2516, %v2518
  %v2520 = vrot.slane %v2267, %v2519
  %v2522 = vunpack.c.l.s4 1966171168
  %v2523 = vunpack.c.0.s8 %v2522
  %v2524 = vlaneseq
  %v2525 = vshrl.u32 %v2524, 7
  %v2526 = vsub.s32 %v2523, %v2525
  %v2527 = vrot.slane %v2513, %v2526
  %v2528 = vcombine.high %v2520, %v2520
  %v2529 = vcombine.high %v2527, %v2527
  %v2531 = vunpack.c.l.s4 1966171168
  %v2532 = vunpack.c.0.s8 %v2531
  %v2533 = vlaneseq
  %v2534 = vshrl.u32 %v2533, 7
  %v2535 = vsub.s32 %v2532, %v2534
  %v2536 = vrot.slane %v2520, %v2535
  %v2538 = vunpack.c.l.s4 1966171168
  %v2539 = vunpack.c.0.s8 %v2538
  %v2540 = vlaneseq
  %v2541 = vshrl.u32 %v2540, 7
  %v2542 = vsub.s32 %v2539, %v2541
  %v2543 = vrot.slane %v2527, %v2542
  %v2545 = vunpack.c.l.s4 1966171168
  %v2546 = vunpack.c.0.s8 %v2545
  %v2547 = vlaneseq
  %v2548 = vshrl.u32 %v2547, 7
  %v2549 = vsub.s32 %v2546, %v2548
  %v2550 = vrot.slane %v2528, %v2549
  %v2552 = vunpack.c.l.s4 1966171168
  %v2553 = vunpack.c.0.s8 %v2552
  %v2554 = vlaneseq
  %v2555 = vshrl.u32 %v2554, 7
  %v2556 = vsub.s32 %v2553, %v2555
  %v2557 = vrot.slane %v2529, %v2556
  %v2558 = vcombine.high %v2536, %v2536
  %v2559 = vcombine.high %v2543, %v2543
  %v2560 = vcombine.high %v2550, %v2550
  %v2561 = vcombine.high %v2557, %v2557
  %v2562 = vlaneseq
  %v2563 = vshrl.u32 %v2562, 7
  %v2564 = vsub.s32 0, %v2563
  %v2565 = vrot.slane %v2536, %v2564
  %v2566 = vlaneseq
  %v2567 = vshrl.u32 %v2566, 7
  %v2568 = vsub.s32 0, %v2567
  %v2569 = vrot.slane %v2550, %v2568
  %v2570 = vlaneseq
  %v2571 = vshrl.u32 %v2570, 7
  %v2572 = vsub.s32 0, %v2571
  %v2573 = vrot.slane %v2558, %v2572
  %v2574 = vlaneseq
  %v2575 = vshrl.u32 %v2574, 7
  %v2576 = vsub.s32 0, %v2575
  %v2577 = vrot.slane %v2560, %v2576
  %v2578 = vlaneseq
  %v2579 = vshrl.u32 %v2578, 7
  %v2580 = vsub.s32 0, %v2579
  %v2581 = vrot.slane %v2543, %v2580
  %v2582 = vlaneseq
  %v2583 = vshrl.u32 %v2582, 7
  %v2584 = vsub.s32 0, %v2583
  %v2585 = vrot.slane %v2557, %v2584
  %v2586 = vlaneseq
  %v2587 = vshrl.u32 %v2586, 7
  %v2588 = vsub.s32 0, %v2587
  %v2589 = vrot.slane %v2559, %v2588
  %v2590 = vlaneseq
  %v2591 = vshrl.u32 %v2590, 7
  %v2592 = vsub.s32 0, %v2591
  %v2593 = vrot.slane %v2561, %v2592
  %v2602 = vmul.f32 %v2365, %v2565
  %v2603 = vmul.f32 %v2370, %v2569
  %v2604 = vmul.f32 %v2375, %v2573
  %v2605 = vmul.f32 %v2380, %v2577
  %v2606 = vmul.f32 %v2385, %v2581
  %v2607 = vmul.f32 %v2390, %v2585
  %v2608 = vmul.f32 %v2395, %v2589
  %v2609 = vmul.f32 %v2400, %v2593
  %v2610 = vsel %vm813, %v2602, 0.0
  %2611 = vadd.xlane.f32.xlu0 %v2610
  %v2612 = vpop.xlane.xlu0 %2611
  %v2613 = vsel %vm813, %v2603, 0.0
  %2614 = vadd.xlane.f32.xlu0 %v2613
  %v2615 = vpop.xlane.xlu0 %2614
  %v2616 = vsel %vm813, %v2604, 0.0
  %2617 = vadd.xlane.f32.xlu0 %v2616
  %v2618 = vpop.xlane.xlu0 %2617
  %v2619 = vsel %vm813, %v2605, 0.0
  %2620 = vadd.xlane.f32.xlu0 %v2619
  %v2621 = vpop.xlane.xlu0 %2620
  %v2622 = vsel %vm813, %v2606, 0.0
  %2623 = vadd.xlane.f32.xlu0 %v2622
  %v2624 = vpop.xlane.xlu0 %2623
  %v2625 = vsel %vm813, %v2607, 0.0
  %2626 = vadd.xlane.f32.xlu0 %v2625
  %v2627 = vpop.xlane.xlu0 %2626
  %v2628 = vsel %vm813, %v2608, 0.0
  %2629 = vadd.xlane.f32.xlu0 %v2628
  %v2630 = vpop.xlane.xlu0 %2629
  %v2631 = vsel %vm813, %v2609, 0.0
  %2632 = vadd.xlane.f32.xlu0 %v2631
  %v2633 = vpop.xlane.xlu0 %2632
  %v2634 = vmul.f32 %v2612, 0.25
  %v2635 = vmul.f32 %v2615, 0.25
  %v2636 = vmul.f32 %v2618, 0.25
  %v2637 = vmul.f32 %v2621, 0.25
  %v2638 = vmul.f32 %v2624, 0.25
  %v2639 = vmul.f32 %v2627, 0.25
  %v2640 = vmul.f32 %v2630, 0.25
  %v2641 = vmul.f32 %v2633, 0.25
  %v2642 = vadd.f32 %v2634, %v853
  %v2643 = vadd.f32 %v2635, %v860
  %v2644 = vadd.f32 %v2636, %v867
  %v2645 = vadd.f32 %v2637, %v874
  %v2646 = vadd.f32 %v2638, %v881
  %v2647 = vadd.f32 %v2639, %v888
  %v2648 = vadd.f32 %v2640, %v895
  %v2649 = vadd.f32 %v2641, %v902
  %2658 = vset.pattern.permute.xlu0 0
  %2659 = vperm.xlu0 %2658, %v2642
  %v2660 = vpop.permute.xlu0 %2659
  %2661 = vset.pattern.permute.xlu0 0
  %2662 = vperm.xlu0 %2661, %v2643
  %v2663 = vpop.permute.xlu0 %2662
  %2664 = vset.pattern.permute.xlu0 0
  %2665 = vperm.xlu0 %2664, %v2644
  %v2666 = vpop.permute.xlu0 %2665
  %2667 = vset.pattern.permute.xlu0 0
  %2668 = vperm.xlu0 %2667, %v2645
  %v2669 = vpop.permute.xlu0 %2668
  %2670 = vset.pattern.permute.xlu0 0
  %2671 = vperm.xlu0 %2670, %v2646
  %v2672 = vpop.permute.xlu0 %2671
  %2673 = vset.pattern.permute.xlu0 0
  %2674 = vperm.xlu0 %2673, %v2647
  %v2675 = vpop.permute.xlu0 %2674
  %2676 = vset.pattern.permute.xlu0 0
  %2677 = vperm.xlu0 %2676, %v2648
  %v2678 = vpop.permute.xlu0 %2677
  %2679 = vset.pattern.permute.xlu0 0
  %2680 = vperm.xlu0 %2679, %v2649
  %v2681 = vpop.permute.xlu0 %2680
  %v2682 = vlaneseq
  %v2683 = vshrl.u32 %v2682, 7
  %v2684 = vsub.s32 %v952, %v2683
  %v2685 = vrot.slane %v2660, %v2684
  %v2686 = vlaneseq
  %v2687 = vshrl.u32 %v2686, 7
  %v2688 = vsub.s32 %v952, %v2687
  %v2689 = vrot.slane %v2663, %v2688
  %v2690 = vlaneseq
  %v2691 = vshrl.u32 %v2690, 7
  %v2692 = vsub.s32 %v952, %v2691
  %v2693 = vrot.slane %v2666, %v2692
  %v2694 = vlaneseq
  %v2695 = vshrl.u32 %v2694, 7
  %v2696 = vsub.s32 %v952, %v2695
  %v2697 = vrot.slane %v2669, %v2696
  %v2698 = vlaneseq
  %v2699 = vshrl.u32 %v2698, 7
  %v2700 = vsub.s32 %v952, %v2699
  %v2701 = vrot.slane %v2672, %v2700
  %v2702 = vlaneseq
  %v2703 = vshrl.u32 %v2702, 7
  %v2704 = vsub.s32 %v952, %v2703
  %v2705 = vrot.slane %v2675, %v2704
  %v2706 = vlaneseq
  %v2707 = vshrl.u32 %v2706, 7
  %v2708 = vsub.s32 %v952, %v2707
  %v2709 = vrot.slane %v2678, %v2708
  %v2710 = vlaneseq
  %v2711 = vshrl.u32 %v2710, 7
  %v2712 = vsub.s32 %v952, %v2711
  %v2713 = vrot.slane %v2681, %v2712
  %v2714 = vsel %vm985, %v2689, %v2685
  %v2715 = vsel %vm987, %v2693, %v2714
  %v2716 = vsel %vm989, %v2697, %v2715
  %v2717 = vsel %vm991, %v2701, %v2716
  %v2718 = vsel %vm993, %v2705, %v2717
  %v2719 = vsel %vm995, %v2709, %v2718
  %v2720 = vsel %vm997, %v2713, %v2719
  %v2722 = vsel %vm1000, %v2720, -inf
  %2723 = vmax.xlane.f32.xlu0 %v2722
  %v2724 = vpop.xlane.xlu0 %2723
  %v2726 = vlaneseq
  %v2727 = vshrl.u32 %v2726, 7
  %v2728 = vsub.s32 0, %v2727
  %v2729 = vrot.slane %v2724, %v2728
  %v2730 = vlaneseq
  %v2731 = vshrl.u32 %v2730, 7
  %v2732 = vsub.s32 1, %v2731
  %v2733 = vrot.slane %v2724, %v2732
  %v2734 = vlaneseq
  %v2735 = vshrl.u32 %v2734, 7
  %v2736 = vsub.s32 2, %v2735
  %v2737 = vrot.slane %v2724, %v2736
  %v2738 = vlaneseq
  %v2739 = vshrl.u32 %v2738, 7
  %v2740 = vsub.s32 3, %v2739
  %v2741 = vrot.slane %v2724, %v2740
  %v2742 = vlaneseq
  %v2743 = vshrl.u32 %v2742, 7
  %v2744 = vsub.s32 4, %v2743
  %v2745 = vrot.slane %v2724, %v2744
  %v2746 = vlaneseq
  %v2747 = vshrl.u32 %v2746, 7
  %v2748 = vsub.s32 5, %v2747
  %v2749 = vrot.slane %v2724, %v2748
  %v2750 = vlaneseq
  %v2751 = vshrl.u32 %v2750, 7
  %v2752 = vsub.s32 6, %v2751
  %v2753 = vrot.slane %v2724, %v2752
  %v2754 = vlaneseq
  %v2755 = vshrl.u32 %v2754, 7
  %v2756 = vsub.s32 7, %v2755
  %v2757 = vrot.slane %v2724, %v2756
  %v2766 = vsub.f32 %v2642, %v2729
  %v2767 = vsub.f32 %v2643, %v2733
  %v2768 = vsub.f32 %v2644, %v2737
  %v2769 = vsub.f32 %v2645, %v2741
  %v2770 = vsub.f32 %v2646, %v2745
  %v2771 = vsub.f32 %v2647, %v2749
  %v2772 = vsub.f32 %v2648, %v2753
  %v2773 = vsub.f32 %v2649, %v2757
  %v2774 = vmul.f32 %v2766, 1.442695
  %v2775 = vpow.pop %v2774
  %v2776 = vmul.f32 %v2767, 1.442695
  %v2777 = vpow.pop %v2776
  %v2778 = vmul.f32 %v2768, 1.442695
  %v2779 = vpow.pop %v2778
  %v2780 = vmul.f32 %v2769, 1.442695
  %v2781 = vpow.pop %v2780
  %v2782 = vmul.f32 %v2770, 1.442695
  %v2783 = vpow.pop %v2782
  %v2784 = vmul.f32 %v2771, 1.442695
  %v2785 = vpow.pop %v2784
  %v2786 = vmul.f32 %v2772, 1.442695
  %v2787 = vpow.pop %v2786
  %v2788 = vmul.f32 %v2773, 1.442695
  %v2789 = vpow.pop %v2788
  %2798 = vset.pattern.permute.xlu0 0
  %2799 = vperm.xlu0 %2798, %v2775
  %v2800 = vpop.permute.xlu0 %2799
  %2801 = vset.pattern.permute.xlu0 0
  %2802 = vperm.xlu0 %2801, %v2777
  %v2803 = vpop.permute.xlu0 %2802
  %2804 = vset.pattern.permute.xlu0 0
  %2805 = vperm.xlu0 %2804, %v2779
  %v2806 = vpop.permute.xlu0 %2805
  %2807 = vset.pattern.permute.xlu0 0
  %2808 = vperm.xlu0 %2807, %v2781
  %v2809 = vpop.permute.xlu0 %2808
  %2810 = vset.pattern.permute.xlu0 0
  %2811 = vperm.xlu0 %2810, %v2783
  %v2812 = vpop.permute.xlu0 %2811
  %2813 = vset.pattern.permute.xlu0 0
  %2814 = vperm.xlu0 %2813, %v2785
  %v2815 = vpop.permute.xlu0 %2814
  %2816 = vset.pattern.permute.xlu0 0
  %2817 = vperm.xlu0 %2816, %v2787
  %v2818 = vpop.permute.xlu0 %2817
  %2819 = vset.pattern.permute.xlu0 0
  %2820 = vperm.xlu0 %2819, %v2789
  %v2821 = vpop.permute.xlu0 %2820
  %v2822 = vlaneseq
  %v2823 = vshrl.u32 %v2822, 7
  %v2824 = vsub.s32 %v952, %v2823
  %v2825 = vrot.slane %v2800, %v2824
  %v2826 = vlaneseq
  %v2827 = vshrl.u32 %v2826, 7
  %v2828 = vsub.s32 %v952, %v2827
  %v2829 = vrot.slane %v2803, %v2828
  %v2830 = vlaneseq
  %v2831 = vshrl.u32 %v2830, 7
  %v2832 = vsub.s32 %v952, %v2831
  %v2833 = vrot.slane %v2806, %v2832
  %v2834 = vlaneseq
  %v2835 = vshrl.u32 %v2834, 7
  %v2836 = vsub.s32 %v952, %v2835
  %v2837 = vrot.slane %v2809, %v2836
  %v2838 = vlaneseq
  %v2839 = vshrl.u32 %v2838, 7
  %v2840 = vsub.s32 %v952, %v2839
  %v2841 = vrot.slane %v2812, %v2840
  %v2842 = vlaneseq
  %v2843 = vshrl.u32 %v2842, 7
  %v2844 = vsub.s32 %v952, %v2843
  %v2845 = vrot.slane %v2815, %v2844
  %v2846 = vlaneseq
  %v2847 = vshrl.u32 %v2846, 7
  %v2848 = vsub.s32 %v952, %v2847
  %v2849 = vrot.slane %v2818, %v2848
  %v2850 = vlaneseq
  %v2851 = vshrl.u32 %v2850, 7
  %v2852 = vsub.s32 %v952, %v2851
  %v2853 = vrot.slane %v2821, %v2852
  %v2854 = vsel %vm985, %v2829, %v2825
  %v2855 = vsel %vm987, %v2833, %v2854
  %v2856 = vsel %vm989, %v2837, %v2855
  %v2857 = vsel %vm991, %v2841, %v2856
  %v2858 = vsel %vm993, %v2845, %v2857
  %v2859 = vsel %vm995, %v2849, %v2858
  %v2860 = vsel %vm997, %v2853, %v2859
  %v2862 = vsel %vm1000, %v2860, 0.0
  %2863 = vadd.xlane.f32.xlu0 %v2862
  %v2864 = vpop.xlane.xlu0 %2863
  %v2865 = vrcp.pop %v2864
  %v2867 = vlaneseq
  %v2868 = vshrl.u32 %v2867, 7
  %v2869 = vsub.s32 0, %v2868
  %v2870 = vrot.slane %v2865, %v2869
  %v2871 = vlaneseq
  %v2872 = vshrl.u32 %v2871, 7
  %v2873 = vsub.s32 1, %v2872
  %v2874 = vrot.slane %v2865, %v2873
  %v2875 = vlaneseq
  %v2876 = vshrl.u32 %v2875, 7
  %v2877 = vsub.s32 2, %v2876
  %v2878 = vrot.slane %v2865, %v2877
  %v2879 = vlaneseq
  %v2880 = vshrl.u32 %v2879, 7
  %v2881 = vsub.s32 3, %v2880
  %v2882 = vrot.slane %v2865, %v2881
  %v2883 = vlaneseq
  %v2884 = vshrl.u32 %v2883, 7
  %v2885 = vsub.s32 4, %v2884
  %v2886 = vrot.slane %v2865, %v2885
  %v2887 = vlaneseq
  %v2888 = vshrl.u32 %v2887, 7
  %v2889 = vsub.s32 5, %v2888
  %v2890 = vrot.slane %v2865, %v2889
  %v2891 = vlaneseq
  %v2892 = vshrl.u32 %v2891, 7
  %v2893 = vsub.s32 6, %v2892
  %v2894 = vrot.slane %v2865, %v2893
  %v2895 = vlaneseq
  %v2896 = vshrl.u32 %v2895, 7
  %v2897 = vsub.s32 7, %v2896
  %v2898 = vrot.slane %v2865, %v2897
  %v2907 = vmul.f32 %v2775, %v2870
  %v2908 = vmul.f32 %v2777, %v2874
  %v2909 = vmul.f32 %v2779, %v2878
  %v2910 = vmul.f32 %v2781, %v2882
  %v2911 = vmul.f32 %v2783, %v2886
  %v2912 = vmul.f32 %v2785, %v2890
  %v2913 = vmul.f32 %v2787, %v2894
  %v2914 = vmul.f32 %v2789, %v2898
  %2916 = vset.pattern.permute.xlu0 0
  %2917 = vperm.xlu0 %2916, %v2907
  %v2918 = vpop.permute.xlu0 %2917
  %2921 = vset.pattern.permute.xlu0 0
  %2922 = vperm.xlu0 %2921, %v2908
  %v2923 = vpop.permute.xlu0 %2922
  %2926 = vset.pattern.permute.xlu0 0
  %2927 = vperm.xlu0 %2926, %v2909
  %v2928 = vpop.permute.xlu0 %2927
  %2931 = vset.pattern.permute.xlu0 0
  %2932 = vperm.xlu0 %2931, %v2910
  %v2933 = vpop.permute.xlu0 %2932
  %2936 = vset.pattern.permute.xlu0 0
  %2937 = vperm.xlu0 %2936, %v2911
  %v2938 = vpop.permute.xlu0 %2937
  %2941 = vset.pattern.permute.xlu0 0
  %2942 = vperm.xlu0 %2941, %v2912
  %v2943 = vpop.permute.xlu0 %2942
  %2946 = vset.pattern.permute.xlu0 0
  %2947 = vperm.xlu0 %2946, %v2913
  %v2948 = vpop.permute.xlu0 %2947
  %2951 = vset.pattern.permute.xlu0 0
  %2952 = vperm.xlu0 %2951, %v2914
  %v2953 = vpop.permute.xlu0 %2952
  %v2955 = vmul.f32 %v2918, %v2474
  %v2956 = vmul.f32 %v2923, %v2479
  %v2957 = vmul.f32 %v2928, %v2484
  %v2958 = vmul.f32 %v2933, %v2489
  %v2959 = vmul.f32 %v2938, %v2494
  %v2960 = vmul.f32 %v2943, %v2499
  %v2961 = vmul.f32 %v2948, %v2504
  %v2962 = vmul.f32 %v2953, %v2509
  %v2963 = vsel %vm813, %v2955, 0.0
  %v2964 = vrot.slane %v2963, 4
  %v2965 = vadd.f32 %v2963, %v2964
  %v2966 = vrot.slane %v2965, 2
  %v2967 = vadd.f32 %v2965, %v2966
  %v2968 = vrot.slane %v2967, 1
  %v2969 = vadd.f32 %v2967, %v2968
  %v2970 = vsel %vm813, %v2956, 0.0
  %v2971 = vrot.slane %v2970, 4
  %v2972 = vadd.f32 %v2970, %v2971
  %v2973 = vrot.slane %v2972, 2
  %v2974 = vadd.f32 %v2972, %v2973
  %v2975 = vrot.slane %v2974, 1
  %v2976 = vadd.f32 %v2974, %v2975
  %v2977 = vsel %vm813, %v2957, 0.0
  %v2978 = vrot.slane %v2977, 4
  %v2979 = vadd.f32 %v2977, %v2978
  %v2980 = vrot.slane %v2979, 2
  %v2981 = vadd.f32 %v2979, %v2980
  %v2982 = vrot.slane %v2981, 1
  %v2983 = vadd.f32 %v2981, %v2982
  %v2984 = vsel %vm813, %v2958, 0.0
  %v2985 = vrot.slane %v2984, 4
  %v2986 = vadd.f32 %v2984, %v2985
  %v2987 = vrot.slane %v2986, 2
  %v2988 = vadd.f32 %v2986, %v2987
  %v2989 = vrot.slane %v2988, 1
  %v2990 = vadd.f32 %v2988, %v2989
  %v2991 = vsel %vm813, %v2959, 0.0
  %v2992 = vrot.slane %v2991, 4
  %v2993 = vadd.f32 %v2991, %v2992
  %v2994 = vrot.slane %v2993, 2
  %v2995 = vadd.f32 %v2993, %v2994
  %v2996 = vrot.slane %v2995, 1
  %v2997 = vadd.f32 %v2995, %v2996
  %v2998 = vsel %vm813, %v2960, 0.0
  %v2999 = vrot.slane %v2998, 4
  %v3000 = vadd.f32 %v2998, %v2999
  %v3001 = vrot.slane %v3000, 2
  %v3002 = vadd.f32 %v3000, %v3001
  %v3003 = vrot.slane %v3002, 1
  %v3004 = vadd.f32 %v3002, %v3003
  %v3005 = vsel %vm813, %v2961, 0.0
  %v3006 = vrot.slane %v3005, 4
  %v3007 = vadd.f32 %v3005, %v3006
  %v3008 = vrot.slane %v3007, 2
  %v3009 = vadd.f32 %v3007, %v3008
  %v3010 = vrot.slane %v3009, 1
  %v3011 = vadd.f32 %v3009, %v3010
  %v3012 = vsel %vm813, %v2962, 0.0
  %v3013 = vrot.slane %v3012, 4
  %v3014 = vadd.f32 %v3012, %v3013
  %v3015 = vrot.slane %v3014, 2
  %v3016 = vadd.f32 %v3014, %v3015
  %v3017 = vrot.slane %v3016, 1
  %v3018 = vadd.f32 %v3016, %v3017
  %3027 = vrot.lane.b32.xlu0 %v2602, 112
  %v3028 = vpop.permute.xlu0 %3027
  %3029 = vrot.lane.b32.xlu0 %v2603, 112
  %v3030 = vpop.permute.xlu0 %3029
  %3031 = vrot.lane.b32.xlu0 %v2604, 112
  %v3032 = vpop.permute.xlu0 %3031
  %3033 = vrot.lane.b32.xlu0 %v2605, 112
  %v3034 = vpop.permute.xlu0 %3033
  %3035 = vrot.lane.b32.xlu0 %v2606, 112
  %v3036 = vpop.permute.xlu0 %3035
  %3037 = vrot.lane.b32.xlu0 %v2607, 112
  %v3038 = vpop.permute.xlu0 %3037
  %3039 = vrot.lane.b32.xlu0 %v2608, 112
  %v3040 = vpop.permute.xlu0 %3039
  %3041 = vrot.lane.b32.xlu0 %v2609, 112
  %v3042 = vpop.permute.xlu0 %3041
  %v3051 = vsel %vm813, %v3028, 0.0
  %3052 = vadd.xlane.f32.xlu0 %v3051
  %v3053 = vpop.xlane.xlu0 %3052
  %v3054 = vsel %vm813, %v3030, 0.0
  %3055 = vadd.xlane.f32.xlu0 %v3054
  %v3056 = vpop.xlane.xlu0 %3055
  %v3057 = vsel %vm813, %v3032, 0.0
  %3058 = vadd.xlane.f32.xlu0 %v3057
  %v3059 = vpop.xlane.xlu0 %3058
  %v3060 = vsel %vm813, %v3034, 0.0
  %3061 = vadd.xlane.f32.xlu0 %v3060
  %v3062 = vpop.xlane.xlu0 %3061
  %v3063 = vsel %vm813, %v3036, 0.0
  %3064 = vadd.xlane.f32.xlu0 %v3063
  %v3065 = vpop.xlane.xlu0 %3064
  %v3066 = vsel %vm813, %v3038, 0.0
  %3067 = vadd.xlane.f32.xlu0 %v3066
  %v3068 = vpop.xlane.xlu0 %3067
  %v3069 = vsel %vm813, %v3040, 0.0
  %3070 = vadd.xlane.f32.xlu0 %v3069
  %v3071 = vpop.xlane.xlu0 %3070
  %v3072 = vsel %vm813, %v3042, 0.0
  %3073 = vadd.xlane.f32.xlu0 %v3072
  %v3074 = vpop.xlane.xlu0 %3073
  %v3075 = vmul.f32 %v3053, 0.25
  %v3076 = vmul.f32 %v3056, 0.25
  %v3077 = vmul.f32 %v3059, 0.25
  %v3078 = vmul.f32 %v3062, 0.25
  %v3079 = vmul.f32 %v3065, 0.25
  %v3080 = vmul.f32 %v3068, 0.25
  %v3081 = vmul.f32 %v3071, 0.25
  %v3082 = vmul.f32 %v3074, 0.25
  %v3083 = vadd.f32 %v3075, %v853
  %v3084 = vadd.f32 %v3076, %v860
  %v3085 = vadd.f32 %v3077, %v867
  %v3086 = vadd.f32 %v3078, %v874
  %v3087 = vadd.f32 %v3079, %v881
  %v3088 = vadd.f32 %v3080, %v888
  %v3089 = vadd.f32 %v3081, %v895
  %v3090 = vadd.f32 %v3082, %v902
  %3099 = vset.pattern.permute.xlu0 0
  %3100 = vperm.xlu0 %3099, %v3083
  %v3101 = vpop.permute.xlu0 %3100
  %3102 = vset.pattern.permute.xlu0 0
  %3103 = vperm.xlu0 %3102, %v3084
  %v3104 = vpop.permute.xlu0 %3103
  %3105 = vset.pattern.permute.xlu0 0
  %3106 = vperm.xlu0 %3105, %v3085
  %v3107 = vpop.permute.xlu0 %3106
  %3108 = vset.pattern.permute.xlu0 0
  %3109 = vperm.xlu0 %3108, %v3086
  %v3110 = vpop.permute.xlu0 %3109
  %3111 = vset.pattern.permute.xlu0 0
  %3112 = vperm.xlu0 %3111, %v3087
  %v3113 = vpop.permute.xlu0 %3112
  %3114 = vset.pattern.permute.xlu0 0
  %3115 = vperm.xlu0 %3114, %v3088
  %v3116 = vpop.permute.xlu0 %3115
  %3117 = vset.pattern.permute.xlu0 0
  %3118 = vperm.xlu0 %3117, %v3089
  %v3119 = vpop.permute.xlu0 %3118
  %3120 = vset.pattern.permute.xlu0 0
  %3121 = vperm.xlu0 %3120, %v3090
  %v3122 = vpop.permute.xlu0 %3121
  %v3123 = vlaneseq
  %v3124 = vshrl.u32 %v3123, 7
  %v3125 = vsub.s32 %v952, %v3124
  %v3126 = vrot.slane %v3101, %v3125
  %v3127 = vlaneseq
  %v3128 = vshrl.u32 %v3127, 7
  %v3129 = vsub.s32 %v952, %v3128
  %v3130 = vrot.slane %v3104, %v3129
  %v3131 = vlaneseq
  %v3132 = vshrl.u32 %v3131, 7
  %v3133 = vsub.s32 %v952, %v3132
  %v3134 = vrot.slane %v3107, %v3133
  %v3135 = vlaneseq
  %v3136 = vshrl.u32 %v3135, 7
  %v3137 = vsub.s32 %v952, %v3136
  %v3138 = vrot.slane %v3110, %v3137
  %v3139 = vlaneseq
  %v3140 = vshrl.u32 %v3139, 7
  %v3141 = vsub.s32 %v952, %v3140
  %v3142 = vrot.slane %v3113, %v3141
  %v3143 = vlaneseq
  %v3144 = vshrl.u32 %v3143, 7
  %v3145 = vsub.s32 %v952, %v3144
  %v3146 = vrot.slane %v3116, %v3145
  %v3147 = vlaneseq
  %v3148 = vshrl.u32 %v3147, 7
  %v3149 = vsub.s32 %v952, %v3148
  %v3150 = vrot.slane %v3119, %v3149
  %v3151 = vlaneseq
  %v3152 = vshrl.u32 %v3151, 7
  %v3153 = vsub.s32 %v952, %v3152
  %v3154 = vrot.slane %v3122, %v3153
  %v3155 = vsel %vm985, %v3130, %v3126
  %v3156 = vsel %vm987, %v3134, %v3155
  %v3157 = vsel %vm989, %v3138, %v3156
  %v3158 = vsel %vm991, %v3142, %v3157
  %v3159 = vsel %vm993, %v3146, %v3158
  %v3160 = vsel %vm995, %v3150, %v3159
  %v3161 = vsel %vm997, %v3154, %v3160
  %v3163 = vsel %vm1000, %v3161, -inf
  %3164 = vmax.xlane.f32.xlu0 %v3163
  %v3165 = vpop.xlane.xlu0 %3164
  %v3167 = vlaneseq
  %v3168 = vshrl.u32 %v3167, 7
  %v3169 = vsub.s32 0, %v3168
  %v3170 = vrot.slane %v3165, %v3169
  %v3171 = vlaneseq
  %v3172 = vshrl.u32 %v3171, 7
  %v3173 = vsub.s32 1, %v3172
  %v3174 = vrot.slane %v3165, %v3173
  %v3175 = vlaneseq
  %v3176 = vshrl.u32 %v3175, 7
  %v3177 = vsub.s32 2, %v3176
  %v3178 = vrot.slane %v3165, %v3177
  %v3179 = vlaneseq
  %v3180 = vshrl.u32 %v3179, 7
  %v3181 = vsub.s32 3, %v3180
  %v3182 = vrot.slane %v3165, %v3181
  %v3183 = vlaneseq
  %v3184 = vshrl.u32 %v3183, 7
  %v3185 = vsub.s32 4, %v3184
  %v3186 = vrot.slane %v3165, %v3185
  %v3187 = vlaneseq
  %v3188 = vshrl.u32 %v3187, 7
  %v3189 = vsub.s32 5, %v3188
  %v3190 = vrot.slane %v3165, %v3189
  %v3191 = vlaneseq
  %v3192 = vshrl.u32 %v3191, 7
  %v3193 = vsub.s32 6, %v3192
  %v3194 = vrot.slane %v3165, %v3193
  %v3195 = vlaneseq
  %v3196 = vshrl.u32 %v3195, 7
  %v3197 = vsub.s32 7, %v3196
  %v3198 = vrot.slane %v3165, %v3197
  %v3207 = vsub.f32 %v3083, %v3170
  %v3208 = vsub.f32 %v3084, %v3174
  %v3209 = vsub.f32 %v3085, %v3178
  %v3210 = vsub.f32 %v3086, %v3182
  %v3211 = vsub.f32 %v3087, %v3186
  %v3212 = vsub.f32 %v3088, %v3190
  %v3213 = vsub.f32 %v3089, %v3194
  %v3214 = vsub.f32 %v3090, %v3198
  %v3215 = vmul.f32 %v3207, 1.442695
  %v3216 = vpow.pop %v3215
  %v3217 = vmul.f32 %v3208, 1.442695
  %v3218 = vpow.pop %v3217
  %v3219 = vmul.f32 %v3209, 1.442695
  %v3220 = vpow.pop %v3219
  %v3221 = vmul.f32 %v3210, 1.442695
  %v3222 = vpow.pop %v3221
  %v3223 = vmul.f32 %v3211, 1.442695
  %v3224 = vpow.pop %v3223
  %v3225 = vmul.f32 %v3212, 1.442695
  %v3226 = vpow.pop %v3225
  %v3227 = vmul.f32 %v3213, 1.442695
  %v3228 = vpow.pop %v3227
  %v3229 = vmul.f32 %v3214, 1.442695
  %v3230 = vpow.pop %v3229
  %3239 = vset.pattern.permute.xlu0 0
  %3240 = vperm.xlu0 %3239, %v3216
  %v3241 = vpop.permute.xlu0 %3240
  %3242 = vset.pattern.permute.xlu0 0
  %3243 = vperm.xlu0 %3242, %v3218
  %v3244 = vpop.permute.xlu0 %3243
  %3245 = vset.pattern.permute.xlu0 0
  %3246 = vperm.xlu0 %3245, %v3220
  %v3247 = vpop.permute.xlu0 %3246
  %3248 = vset.pattern.permute.xlu0 0
  %3249 = vperm.xlu0 %3248, %v3222
  %v3250 = vpop.permute.xlu0 %3249
  %3251 = vset.pattern.permute.xlu0 0
  %3252 = vperm.xlu0 %3251, %v3224
  %v3253 = vpop.permute.xlu0 %3252
  %3254 = vset.pattern.permute.xlu0 0
  %3255 = vperm.xlu0 %3254, %v3226
  %v3256 = vpop.permute.xlu0 %3255
  %3257 = vset.pattern.permute.xlu0 0
  %3258 = vperm.xlu0 %3257, %v3228
  %v3259 = vpop.permute.xlu0 %3258
  %3260 = vset.pattern.permute.xlu0 0
  %3261 = vperm.xlu0 %3260, %v3230
  %v3262 = vpop.permute.xlu0 %3261
  %v3263 = vlaneseq
  %v3264 = vshrl.u32 %v3263, 7
  %v3265 = vsub.s32 %v952, %v3264
  %v3266 = vrot.slane %v3241, %v3265
  %v3267 = vlaneseq
  %v3268 = vshrl.u32 %v3267, 7
  %v3269 = vsub.s32 %v952, %v3268
  %v3270 = vrot.slane %v3244, %v3269
  %v3271 = vlaneseq
  %v3272 = vshrl.u32 %v3271, 7
  %v3273 = vsub.s32 %v952, %v3272
  %v3274 = vrot.slane %v3247, %v3273
  %v3275 = vlaneseq
  %v3276 = vshrl.u32 %v3275, 7
  %v3277 = vsub.s32 %v952, %v3276
  %v3278 = vrot.slane %v3250, %v3277
  %v3279 = vlaneseq
  %v3280 = vshrl.u32 %v3279, 7
  %v3281 = vsub.s32 %v952, %v3280
  %v3282 = vrot.slane %v3253, %v3281
  %v3283 = vlaneseq
  %v3284 = vshrl.u32 %v3283, 7
  %v3285 = vsub.s32 %v952, %v3284
  %v3286 = vrot.slane %v3256, %v3285
  %v3287 = vlaneseq
  %v3288 = vshrl.u32 %v3287, 7
  %v3289 = vsub.s32 %v952, %v3288
  %v3290 = vrot.slane %v3259, %v3289
  %v3291 = vlaneseq
  %v3292 = vshrl.u32 %v3291, 7
  %v3293 = vsub.s32 %v952, %v3292
  %v3294 = vrot.slane %v3262, %v3293
  %v3295 = vsel %vm985, %v3270, %v3266
  %v3296 = vsel %vm987, %v3274, %v3295
  %v3297 = vsel %vm989, %v3278, %v3296
  %v3298 = vsel %vm991, %v3282, %v3297
  %v3299 = vsel %vm993, %v3286, %v3298
  %v3300 = vsel %vm995, %v3290, %v3299
  %v3301 = vsel %vm997, %v3294, %v3300
  %v3303 = vsel %vm1000, %v3301, 0.0
  %3304 = vadd.xlane.f32.xlu0 %v3303
  %v3305 = vpop.xlane.xlu0 %3304
  %v3306 = vrcp.pop %v3305
  %v3308 = vlaneseq
  %v3309 = vshrl.u32 %v3308, 7
  %v3310 = vsub.s32 0, %v3309
  %v3311 = vrot.slane %v3306, %v3310
  %v3312 = vlaneseq
  %v3313 = vshrl.u32 %v3312, 7
  %v3314 = vsub.s32 1, %v3313
  %v3315 = vrot.slane %v3306, %v3314
  %v3316 = vlaneseq
  %v3317 = vshrl.u32 %v3316, 7
  %v3318 = vsub.s32 2, %v3317
  %v3319 = vrot.slane %v3306, %v3318
  %v3320 = vlaneseq
  %v3321 = vshrl.u32 %v3320, 7
  %v3322 = vsub.s32 3, %v3321
  %v3323 = vrot.slane %v3306, %v3322
  %v3324 = vlaneseq
  %v3325 = vshrl.u32 %v3324, 7
  %v3326 = vsub.s32 4, %v3325
  %v3327 = vrot.slane %v3306, %v3326
  %v3328 = vlaneseq
  %v3329 = vshrl.u32 %v3328, 7
  %v3330 = vsub.s32 5, %v3329
  %v3331 = vrot.slane %v3306, %v3330
  %v3332 = vlaneseq
  %v3333 = vshrl.u32 %v3332, 7
  %v3334 = vsub.s32 6, %v3333
  %v3335 = vrot.slane %v3306, %v3334
  %v3336 = vlaneseq
  %v3337 = vshrl.u32 %v3336, 7
  %v3338 = vsub.s32 7, %v3337
  %v3339 = vrot.slane %v3306, %v3338
  %v3348 = vmul.f32 %v3216, %v3311
  %v3349 = vmul.f32 %v3218, %v3315
  %v3350 = vmul.f32 %v3220, %v3319
  %v3351 = vmul.f32 %v3222, %v3323
  %v3352 = vmul.f32 %v3224, %v3327
  %v3353 = vmul.f32 %v3226, %v3331
  %v3354 = vmul.f32 %v3228, %v3335
  %v3355 = vmul.f32 %v3230, %v3339
  %3357 = vset.pattern.permute.xlu0 0
  %3358 = vperm.xlu0 %3357, %v3348
  %v3359 = vpop.permute.xlu0 %3358
  %3362 = vset.pattern.permute.xlu0 0
  %3363 = vperm.xlu0 %3362, %v3349
  %v3364 = vpop.permute.xlu0 %3363
  %3367 = vset.pattern.permute.xlu0 0
  %3368 = vperm.xlu0 %3367, %v3350
  %v3369 = vpop.permute.xlu0 %3368
  %3372 = vset.pattern.permute.xlu0 0
  %3373 = vperm.xlu0 %3372, %v3351
  %v3374 = vpop.permute.xlu0 %3373
  %3377 = vset.pattern.permute.xlu0 0
  %3378 = vperm.xlu0 %3377, %v3352
  %v3379 = vpop.permute.xlu0 %3378
  %3382 = vset.pattern.permute.xlu0 0
  %3383 = vperm.xlu0 %3382, %v3353
  %v3384 = vpop.permute.xlu0 %3383
  %3387 = vset.pattern.permute.xlu0 0
  %3388 = vperm.xlu0 %3387, %v3354
  %v3389 = vpop.permute.xlu0 %3388
  %3392 = vset.pattern.permute.xlu0 0
  %3393 = vperm.xlu0 %3392, %v3355
  %v3394 = vpop.permute.xlu0 %3393
  %v3396 = vmul.f32 %v3359, %v2474
  %v3397 = vmul.f32 %v3364, %v2479
  %v3398 = vmul.f32 %v3369, %v2484
  %v3399 = vmul.f32 %v3374, %v2489
  %v3400 = vmul.f32 %v3379, %v2494
  %v3401 = vmul.f32 %v3384, %v2499
  %v3402 = vmul.f32 %v3389, %v2504
  %v3403 = vmul.f32 %v3394, %v2509
  %v3404 = vsel %vm1683, %v3396, 0.0
  %v3405 = vrot.slane %v3404, 4
  %v3406 = vadd.f32 %v3404, %v3405
  %v3407 = vrot.slane %v3406, 2
  %v3408 = vadd.f32 %v3406, %v3407
  %v3409 = vrot.slane %v3408, 1
  %v3410 = vadd.f32 %v3408, %v3409
  %v3411 = vsel %vm1683, %v3397, 0.0
  %v3412 = vrot.slane %v3411, 4
  %v3413 = vadd.f32 %v3411, %v3412
  %v3414 = vrot.slane %v3413, 2
  %v3415 = vadd.f32 %v3413, %v3414
  %v3416 = vrot.slane %v3415, 1
  %v3417 = vadd.f32 %v3415, %v3416
  %v3418 = vsel %vm1683, %v3398, 0.0
  %v3419 = vrot.slane %v3418, 4
  %v3420 = vadd.f32 %v3418, %v3419
  %v3421 = vrot.slane %v3420, 2
  %v3422 = vadd.f32 %v3420, %v3421
  %v3423 = vrot.slane %v3422, 1
  %v3424 = vadd.f32 %v3422, %v3423
  %v3425 = vsel %vm1683, %v3399, 0.0
  %v3426 = vrot.slane %v3425, 4
  %v3427 = vadd.f32 %v3425, %v3426
  %v3428 = vrot.slane %v3427, 2
  %v3429 = vadd.f32 %v3427, %v3428
  %v3430 = vrot.slane %v3429, 1
  %v3431 = vadd.f32 %v3429, %v3430
  %v3432 = vsel %vm1683, %v3400, 0.0
  %v3433 = vrot.slane %v3432, 4
  %v3434 = vadd.f32 %v3432, %v3433
  %v3435 = vrot.slane %v3434, 2
  %v3436 = vadd.f32 %v3434, %v3435
  %v3437 = vrot.slane %v3436, 1
  %v3438 = vadd.f32 %v3436, %v3437
  %v3439 = vsel %vm1683, %v3401, 0.0
  %v3440 = vrot.slane %v3439, 4
  %v3441 = vadd.f32 %v3439, %v3440
  %v3442 = vrot.slane %v3441, 2
  %v3443 = vadd.f32 %v3441, %v3442
  %v3444 = vrot.slane %v3443, 1
  %v3445 = vadd.f32 %v3443, %v3444
  %v3446 = vsel %vm1683, %v3402, 0.0
  %v3447 = vrot.slane %v3446, 4
  %v3448 = vadd.f32 %v3446, %v3447
  %v3449 = vrot.slane %v3448, 2
  %v3450 = vadd.f32 %v3448, %v3449
  %v3451 = vrot.slane %v3450, 1
  %v3452 = vadd.f32 %v3450, %v3451
  %v3453 = vsel %vm1683, %v3403, 0.0
  %v3454 = vrot.slane %v3453, 4
  %v3455 = vadd.f32 %v3453, %v3454
  %v3456 = vrot.slane %v3455, 2
  %v3457 = vadd.f32 %v3455, %v3456
  %v3458 = vrot.slane %v3457, 1
  %v3459 = vadd.f32 %v3457, %v3458
  %v3468 = vsel %vm985, %v2976, %v2969
  %v3469 = vsel %vm987, %v2983, %v3468
  %v3470 = vsel %vm989, %v2990, %v3469
  %v3471 = vsel %vm991, %v2997, %v3470
  %v3472 = vsel %vm993, %v3004, %v3471
  %v3473 = vsel %vm995, %v3011, %v3472
  %v3474 = vsel %vm997, %v3018, %v3473
  %v3484 = vsel %vm985, %v3417, %v3410
  %v3485 = vsel %vm987, %v3424, %v3484
  %v3486 = vsel %vm989, %v3431, %v3485
  %v3487 = vsel %vm991, %v3438, %v3486
  %v3488 = vsel %vm993, %v3445, %v3487
  %v3489 = vsel %vm995, %v3452, %v3488
  %v3490 = vsel %vm997, %v3459, %v3489
  %v3492 = vsel %vm813, %v3474, %v3490
  %v3493 = vlaneseq
  %v3494 = vshrl.u32 %v3493, 7
  %v3495 = vsub.s32 3, %v3494
  %v3496 = vrot.slane %v2063, %v3495
  %v3498 = vsel %vm243, %v3492, 0
  %3500 = vmatprep.subr.mxu0 0.0
  %3501 = vmatpush1.msra.mxu0 %v2048
  %3502 = vmatprep.subr.mxu0 0.0
  %3503 = vmatpush1.msra.mxu0 %v2049
  %3504 = vmatprep.subr.mxu0 0.0
  %3505 = vmatpush1.msra.mxu0 %v2050
  %3506 = vmatprep.subr.mxu0 0.0
  %3507 = vmatpush1.msra.mxu0 %v2051
  %3508 = vmatprep.subr.mxu0 0.0
  %3509 = vmatpush1.msra.mxu0 0.0
  %3510 = vmatprep.subr.mxu0 0.0
  %3511 = vmatpush1.msra.mxu0 0.0
  %3512 = vmatprep.subr.mxu0 0.0
  %3513 = vmatpush1.msra.mxu0 0.0
  %3514 = vmatprep.subr.mxu0 0.0
  %3515 = vmatpush1.msra.mxu0 0.0
  %3516 = vmatprep.subr.mxu0 0.0
  %3517 = vmatpush1.msra.mxu0 0.0
  %3518 = vmatprep.subr.mxu0 0.0
  %3519 = vmatpush1.msra.mxu0 0.0
  %3520 = vmatprep.subr.mxu0 0.0
  %3521 = vmatpush1.msra.mxu0 0.0
  %3522 = vmatprep.subr.mxu0 0.0
  %3523 = vmatpush1.msra.mxu0 0.0
  %3524 = vmatprep.subr.mxu0 0.0
  %3525 = vmatpush1.msra.mxu0 0.0
  %3526 = vmatprep.subr.mxu0 0.0
  %3527 = vmatpush1.msra.mxu0 0.0
  %3528 = vmatprep.subr.mxu0 0.0
  %3529 = vmatpush1.msra.mxu0 0.0
  %3530 = vmatprep.subr.mxu0 0.0
  %3531 = vmatpush1.msra.mxu0 0.0
  %3532 = vmatprep.subr.mxu0 0.0
  %3533 = vmatpush1.msra.mxu0 0.0
  %3534 = vmatprep.subr.mxu0 0.0
  %3535 = vmatpush1.msra.mxu0 0.0
  %3536 = vmatprep.subr.mxu0 0.0
  %3537 = vmatpush1.msra.mxu0 0.0
  %3538 = vmatprep.subr.mxu0 0.0
  %3539 = vmatpush1.msra.mxu0 0.0
  %3540 = vmatprep.subr.mxu0 0.0
  %3541 = vmatpush1.msra.mxu0 0.0
  %3542 = vmatprep.subr.mxu0 0.0
  %3543 = vmatpush1.msra.mxu0 0.0
  %3544 = vmatprep.subr.mxu0 0.0
  %3545 = vmatpush1.msra.mxu0 0.0
  %3546 = vmatprep.subr.mxu0 0.0
  %3547 = vmatpush1.msra.mxu0 0.0
  %3548 = vmatprep.subr.mxu0 0.0
  %3549 = vmatpush1.msra.mxu0 0.0
  %3550 = vmatprep.subr.mxu0 0.0
  %3551 = vmatpush1.msra.mxu0 0.0
  %3552 = vmatprep.subr.mxu0 0.0
  %3553 = vmatpush1.msra.mxu0 0.0
  %3554 = vmatprep.subr.mxu0 0.0
  %3555 = vmatpush1.msra.mxu0 0.0
  %3556 = vmatprep.subr.mxu0 0.0
  %3557 = vmatpush1.msra.mxu0 0.0
  %3558 = vmatprep.subr.mxu0 0.0
  %3559 = vmatpush1.msra.mxu0 0.0
  %3560 = vmatprep.subr.mxu0 0.0
  %3561 = vmatpush1.msra.mxu0 0.0
  %3562 = vmatprep.subr.mxu0 0.0
  %3563 = vmatpush1.msra.mxu0 0.0
  %3564 = vmatprep.mubr.f32.mxu0 0.0
  %3565 = vmatmul.mubr.f32.gmra.mrb[0].mxu0 %v3498
  %v3566 = vpop.f32.mrb[0].mxu0
  %v3567 = vadd.f32 %v3496, %v3566
  %v3568 = vpop.f32.mrb[0].mxu0
  %3569 = vdwg.mxu0
  %v3571 = vsel %vm243, %v3567, 0
  %3573 = vmatprep.subr.mxu0 0.0
  %3574 = vmatpush1.msra.mxu0 %v2053
  %3575 = vmatprep.subr.mxu0 0.0
  %3576 = vmatpush1.msra.mxu0 %v2054
  %3577 = vmatprep.subr.mxu0 0.0
  %3578 = vmatpush1.msra.mxu0 %v2055
  %3579 = vmatprep.subr.mxu0 0.0
  %3580 = vmatpush1.msra.mxu0 %v2056
  %3581 = vmatprep.subr.mxu0 0.0
  %3582 = vmatpush1.msra.mxu0 0.0
  %3583 = vmatprep.subr.mxu0 0.0
  %3584 = vmatpush1.msra.mxu0 0.0
  %3585 = vmatprep.subr.mxu0 0.0
  %3586 = vmatpush1.msra.mxu0 0.0
  %3587 = vmatprep.subr.mxu0 0.0
  %3588 = vmatpush1.msra.mxu0 0.0
  %3589 = vmatprep.subr.mxu0 0.0
  %3590 = vmatpush1.msra.mxu0 0.0
  %3591 = vmatprep.subr.mxu0 0.0
  %3592 = vmatpush1.msra.mxu0 0.0
  %3593 = vmatprep.subr.mxu0 0.0
  %3594 = vmatpush1.msra.mxu0 0.0
  %3595 = vmatprep.subr.mxu0 0.0
  %3596 = vmatpush1.msra.mxu0 0.0
  %3597 = vmatprep.subr.mxu0 0.0
  %3598 = vmatpush1.msra.mxu0 0.0
  %3599 = vmatprep.subr.mxu0 0.0
  %3600 = vmatpush1.msra.mxu0 0.0
  %3601 = vmatprep.subr.mxu0 0.0
  %3602 = vmatpush1.msra.mxu0 0.0
  %3603 = vmatprep.subr.mxu0 0.0
  %3604 = vmatpush1.msra.mxu0 0.0
  %3605 = vmatprep.subr.mxu0 0.0
  %3606 = vmatpush1.msra.mxu0 0.0
  %3607 = vmatprep.subr.mxu0 0.0
  %3608 = vmatpush1.msra.mxu0 0.0
  %3609 = vmatprep.subr.mxu0 0.0
  %3610 = vmatpush1.msra.mxu0 0.0
  %3611 = vmatprep.subr.mxu0 0.0
  %3612 = vmatpush1.msra.mxu0 0.0
  %3613 = vmatprep.subr.mxu0 0.0
  %3614 = vmatpush1.msra.mxu0 0.0
  %3615 = vmatprep.subr.mxu0 0.0
  %3616 = vmatpush1.msra.mxu0 0.0
  %3617 = vmatprep.subr.mxu0 0.0
  %3618 = vmatpush1.msra.mxu0 0.0
  %3619 = vmatprep.subr.mxu0 0.0
  %3620 = vmatpush1.msra.mxu0 0.0
  %3621 = vmatprep.subr.mxu0 0.0
  %3622 = vmatpush1.msra.mxu0 0.0
  %3623 = vmatprep.subr.mxu0 0.0
  %3624 = vmatpush1.msra.mxu0 0.0
  %3625 = vmatprep.subr.mxu0 0.0
  %3626 = vmatpush1.msra.mxu0 0.0
  %3627 = vmatprep.subr.mxu0 0.0
  %3628 = vmatpush1.msra.mxu0 0.0
  %3629 = vmatprep.subr.mxu0 0.0
  %3630 = vmatpush1.msra.mxu0 0.0
  %3631 = vmatprep.subr.mxu0 0.0
  %3632 = vmatpush1.msra.mxu0 0.0
  %3633 = vmatprep.subr.mxu0 0.0
  %3634 = vmatpush1.msra.mxu0 0.0
  %3635 = vmatprep.subr.mxu0 0.0
  %3636 = vmatpush1.msra.mxu0 0.0
  %3637 = vmatprep.mubr.f32.mxu0 0.0
  %3638 = vmatmul.mubr.f32.gmra.mrb[0].mxu0 %v3571
  %v3639 = vpop.f32.mrb[0].mxu0
  %v3640 = vadd.f32 0.0, %v3639
  %v3641 = vpop.f32.mrb[0].mxu0
  %3642 = vdwg.mxu0
  %vm3643 = vcmp.ge.f32.partialorder %v3640, 0.0
  %v3644 = vmul.f32 %v3640, 0.01
  %v3645 = vsel %vm3643, %v3640, %v3644
  %v3646 = vadd.f32 %v3645, %v2026
  %v3647 = vsel %vm243, %v3646, 0.0
  %3648 = vadd.xlane.f32.xlu0 %v3647
  %v3649 = vpop.xlane.xlu0 %3648
  %v3650 = vmul.f32 %v3649, %v1930
  %v3651 = vsub.f32 %v3646, %v3650
  %v3652 = vmul.f32 %v3651, %v3651
  %v3653 = vsel %vm243, %v3652, 0.0
  %3654 = vadd.xlane.f32.xlu0 %v3653
  %v3655 = vpop.xlane.xlu0 %3654
  %v3656 = vmul.f32 %v3655, %v1930
  %v3657 = vadd.f32 %v3656, 1e-05
  %v3658 = vrsqrt.pop %v3657
  %v3659 = vmul.f32 %v3651, %v3658
  %v3660 = vlaneseq
  %v3661 = vshrl.u32 %v3660, 7
  %v3662 = vsub.s32 4, %v3661
  %v3663 = vrot.slane %v2063, %v3662
  %v3664 = vmul.f32 %v3659, %v3663
  %v3665 = vlaneseq
  %v3666 = vshrl.u32 %v3665, 7
  %v3667 = vsub.s32 5, %v3666
  %v3668 = vrot.slane %v2063, %v3667
  %v3669 = vadd.f32 %v3664, %v3668
  %v3671 = vsel %vm243, %v3669, 0
  %3673 = vmatprep.subr.mxu0 0.0
  %3674 = vmatpush1.msra.mxu0 %v2058
  %3675 = vmatprep.subr.mxu0 0.0
  %3676 = vmatpush1.msra.mxu0 %v2059
  %3677 = vmatprep.subr.mxu0 0.0
  %3678 = vmatpush1.msra.mxu0 %v2060
  %3679 = vmatprep.subr.mxu0 0.0
  %3680 = vmatpush1.msra.mxu0 %v2061
  %3681 = vmatprep.subr.mxu0 0.0
  %3682 = vmatpush1.msra.mxu0 0.0
  %3683 = vmatprep.subr.mxu0 0.0
  %3684 = vmatpush1.msra.mxu0 0.0
  %3685 = vmatprep.subr.mxu0 0.0
  %3686 = vmatpush1.msra.mxu0 0.0
  %3687 = vmatprep.subr.mxu0 0.0
  %3688 = vmatpush1.msra.mxu0 0.0
  %3689 = vmatprep.subr.mxu0 0.0
  %3690 = vmatpush1.msra.mxu0 0.0
  %3691 = vmatprep.subr.mxu0 0.0
  %3692 = vmatpush1.msra.mxu0 0.0
  %3693 = vmatprep.subr.mxu0 0.0
  %3694 = vmatpush1.msra.mxu0 0.0
  %3695 = vmatprep.subr.mxu0 0.0
  %3696 = vmatpush1.msra.mxu0 0.0
  %3697 = vmatprep.subr.mxu0 0.0
  %3698 = vmatpush1.msra.mxu0 0.0
  %3699 = vmatprep.subr.mxu0 0.0
  %3700 = vmatpush1.msra.mxu0 0.0
  %3701 = vmatprep.subr.mxu0 0.0
  %3702 = vmatpush1.msra.mxu0 0.0
  %3703 = vmatprep.subr.mxu0 0.0
  %3704 = vmatpush1.msra.mxu0 0.0
  %3705 = vmatprep.subr.mxu0 0.0
  %3706 = vmatpush1.msra.mxu0 0.0
  %3707 = vmatprep.subr.mxu0 0.0
  %3708 = vmatpush1.msra.mxu0 0.0
  %3709 = vmatprep.subr.mxu0 0.0
  %3710 = vmatpush1.msra.mxu0 0.0
  %3711 = vmatprep.subr.mxu0 0.0
  %3712 = vmatpush1.msra.mxu0 0.0
  %3713 = vmatprep.subr.mxu0 0.0
  %3714 = vmatpush1.msra.mxu0 0.0
  %3715 = vmatprep.subr.mxu0 0.0
  %3716 = vmatpush1.msra.mxu0 0.0
  %3717 = vmatprep.subr.mxu0 0.0
  %3718 = vmatpush1.msra.mxu0 0.0
  %3719 = vmatprep.subr.mxu0 0.0
  %3720 = vmatpush1.msra.mxu0 0.0
  %3721 = vmatprep.subr.mxu0 0.0
  %3722 = vmatpush1.msra.mxu0 0.0
  %3723 = vmatprep.subr.mxu0 0.0
  %3724 = vmatpush1.msra.mxu0 0.0
  %3725 = vmatprep.subr.mxu0 0.0
  %3726 = vmatpush1.msra.mxu0 0.0
  %3727 = vmatprep.subr.mxu0 0.0
  %3728 = vmatpush1.msra.mxu0 0.0
  %3729 = vmatprep.subr.mxu0 0.0
  %3730 = vmatpush1.msra.mxu0 0.0
  %3731 = vmatprep.subr.mxu0 0.0
  %3732 = vmatpush1.msra.mxu0 0.0
  %3733 = vmatprep.subr.mxu0 0.0
  %3734 = vmatpush1.msra.mxu0 0.0
  %3735 = vmatprep.subr.mxu0 0.0
  %3736 = vmatpush1.msra.mxu0 0.0
  %3737 = vmatprep.mubr.f32.mxu0 0.0
  %3738 = vmatmul.mubr.f32.gmra.mrb[0].mxu0 %v3671
  %v3739 = vpop.f32.mrb[0].mxu0
  %v3740 = vadd.f32 0.0, %v3739
  %v3741 = vpop.f32.mrb[0].mxu0
  %3742 = vdwg.mxu0
  %vm3743 = vcmp.ge.f32.partialorder %v3740, 0.0
  %v3744 = vmul.f32 %v3740, 0.01
  %v3745 = vsel %vm3743, %v3740, %v3744
  %3746 = vst.msk [vmem:[%s9] sm:$0xff] %vm243, %v3745
  %v3747 = vld [vmem:[%s6] sm:$0xff]
  %v3748 = vld [vmem:[%s6 + $0x8] sm:$0xff]
  %v3749 = vld [vmem:[%s6 + $0x10] sm:$0xff]
  %v3750 = vld [vmem:[%s6 + $0x18] sm:$0xff]
  %v3752 = vsel %vm243, %v3745, 0
  %3754 = vmatprep.subr.mxu0 0.0
  %3755 = vmatpush1.msra.mxu0 %v3747
  %3756 = vmatprep.subr.mxu0 0.0
  %3757 = vmatpush1.msra.mxu0 %v3748
  %3758 = vmatprep.subr.mxu0 0.0
  %3759 = vmatpush1.msra.mxu0 %v3749
  %3760 = vmatprep.subr.mxu0 0.0
  %3761 = vmatpush1.msra.mxu0 %v3750
  %3762 = vmatprep.subr.mxu0 0.0
  %3763 = vmatpush1.msra.mxu0 0.0
  %3764 = vmatprep.subr.mxu0 0.0
  %3765 = vmatpush1.msra.mxu0 0.0
  %3766 = vmatprep.subr.mxu0 0.0
  %3767 = vmatpush1.msra.mxu0 0.0
  %3768 = vmatprep.subr.mxu0 0.0
  %3769 = vmatpush1.msra.mxu0 0.0
  %3770 = vmatprep.subr.mxu0 0.0
  %3771 = vmatpush1.msra.mxu0 0.0
  %3772 = vmatprep.subr.mxu0 0.0
  %3773 = vmatpush1.msra.mxu0 0.0
  %3774 = vmatprep.subr.mxu0 0.0
  %3775 = vmatpush1.msra.mxu0 0.0
  %3776 = vmatprep.subr.mxu0 0.0
  %3777 = vmatpush1.msra.mxu0 0.0
  %3778 = vmatprep.subr.mxu0 0.0
  %3779 = vmatpush1.msra.mxu0 0.0
  %3780 = vmatprep.subr.mxu0 0.0
  %3781 = vmatpush1.msra.mxu0 0.0
  %3782 = vmatprep.subr.mxu0 0.0
  %3783 = vmatpush1.msra.mxu0 0.0
  %3784 = vmatprep.subr.mxu0 0.0
  %3785 = vmatpush1.msra.mxu0 0.0
  %3786 = vmatprep.subr.mxu0 0.0
  %3787 = vmatpush1.msra.mxu0 0.0
  %3788 = vmatprep.subr.mxu0 0.0
  %3789 = vmatpush1.msra.mxu0 0.0
  %3790 = vmatprep.subr.mxu0 0.0
  %3791 = vmatpush1.msra.mxu0 0.0
  %3792 = vmatprep.subr.mxu0 0.0
  %3793 = vmatpush1.msra.mxu0 0.0
  %3794 = vmatprep.subr.mxu0 0.0
  %3795 = vmatpush1.msra.mxu0 0.0
  %3796 = vmatprep.subr.mxu0 0.0
  %3797 = vmatpush1.msra.mxu0 0.0
  %3798 = vmatprep.subr.mxu0 0.0
  %3799 = vmatpush1.msra.mxu0 0.0
  %3800 = vmatprep.subr.mxu0 0.0
  %3801 = vmatpush1.msra.mxu0 0.0
  %3802 = vmatprep.subr.mxu0 0.0
  %3803 = vmatpush1.msra.mxu0 0.0
  %3804 = vmatprep.subr.mxu0 0.0
  %3805 = vmatpush1.msra.mxu0 0.0
  %3806 = vmatprep.subr.mxu0 0.0
  %3807 = vmatpush1.msra.mxu0 0.0
  %3808 = vmatprep.subr.mxu0 0.0
  %3809 = vmatpush1.msra.mxu0 0.0
  %3810 = vmatprep.subr.mxu0 0.0
  %3811 = vmatpush1.msra.mxu0 0.0
  %3812 = vmatprep.subr.mxu0 0.0
  %3813 = vmatpush1.msra.mxu0 0.0
  %3814 = vmatprep.subr.mxu0 0.0
  %3815 = vmatpush1.msra.mxu0 0.0
  %3816 = vmatprep.subr.mxu0 0.0
  %3817 = vmatpush1.msra.mxu0 0.0
  %3818 = vmatprep.mubr.f32.mxu0 0.0
  %3819 = vmatmul.mubr.f32.gmra.mrb[0].mxu0 %v3752
  %v3820 = vpop.f32.mrb[0].mxu0
  %v3821 = vadd.f32 0.0, %v3820
  %v3822 = vpop.f32.mrb[0].mxu0
  %3823 = vdwg.mxu0
  %vm3824 = vcmp.ge.f32.partialorder %v3821, 0.0
  %v3825 = vmul.f32 %v3821, 0.01
  %v3826 = vsel %vm3824, %v3821, %v3825
  %v3827 = vld [vmem:[%s7] sm:$0xff]
  %v3828 = vld [vmem:[%s7 + $0x8] sm:$0xff]
  %v3829 = vld [vmem:[%s7 + $0x10] sm:$0xff]
  %v3830 = vld [vmem:[%s7 + $0x18] sm:$0xff]
  %v3832 = vsel %vm243, %v3826, 0
  %3834 = vmatprep.subr.mxu0 0.0
  %3835 = vmatpush1.msra.mxu0 %v3827
  %3836 = vmatprep.subr.mxu0 0.0
  %3837 = vmatpush1.msra.mxu0 %v3828
  %3838 = vmatprep.subr.mxu0 0.0
  %3839 = vmatpush1.msra.mxu0 %v3829
  %3840 = vmatprep.subr.mxu0 0.0
  %3841 = vmatpush1.msra.mxu0 %v3830
  %3842 = vmatprep.subr.mxu0 0.0
  %3843 = vmatpush1.msra.mxu0 0.0
  %3844 = vmatprep.subr.mxu0 0.0
  %3845 = vmatpush1.msra.mxu0 0.0
  %3846 = vmatprep.subr.mxu0 0.0
  %3847 = vmatpush1.msra.mxu0 0.0
  %3848 = vmatprep.subr.mxu0 0.0
  %3849 = vmatpush1.msra.mxu0 0.0
  %3850 = vmatprep.subr.mxu0 0.0
  %3851 = vmatpush1.msra.mxu0 0.0
  %3852 = vmatprep.subr.mxu0 0.0
  %3853 = vmatpush1.msra.mxu0 0.0
  %3854 = vmatprep.subr.mxu0 0.0
  %3855 = vmatpush1.msra.mxu0 0.0
  %3856 = vmatprep.subr.mxu0 0.0
  %3857 = vmatpush1.msra.mxu0 0.0
  %3858 = vmatprep.subr.mxu0 0.0
  %3859 = vmatpush1.msra.mxu0 0.0
  %3860 = vmatprep.subr.mxu0 0.0
  %3861 = vmatpush1.msra.mxu0 0.0
  %3862 = vmatprep.subr.mxu0 0.0
  %3863 = vmatpush1.msra.mxu0 0.0
  %3864 = vmatprep.subr.mxu0 0.0
  %3865 = vmatpush1.msra.mxu0 0.0
  %3866 = vmatprep.subr.mxu0 0.0
  %3867 = vmatpush1.msra.mxu0 0.0
  %3868 = vmatprep.subr.mxu0 0.0
  %3869 = vmatpush1.msra.mxu0 0.0
  %3870 = vmatprep.subr.mxu0 0.0
  %3871 = vmatpush1.msra.mxu0 0.0
  %3872 = vmatprep.subr.mxu0 0.0
  %3873 = vmatpush1.msra.mxu0 0.0
  %3874 = vmatprep.subr.mxu0 0.0
  %3875 = vmatpush1.msra.mxu0 0.0
  %3876 = vmatprep.subr.mxu0 0.0
  %3877 = vmatpush1.msra.mxu0 0.0
  %3878 = vmatprep.subr.mxu0 0.0
  %3879 = vmatpush1.msra.mxu0 0.0
  %3880 = vmatprep.subr.mxu0 0.0
  %3881 = vmatpush1.msra.mxu0 0.0
  %3882 = vmatprep.subr.mxu0 0.0
  %3883 = vmatpush1.msra.mxu0 0.0
  %3884 = vmatprep.subr.mxu0 0.0
  %3885 = vmatpush1.msra.mxu0 0.0
  %3886 = vmatprep.subr.mxu0 0.0
  %3887 = vmatpush1.msra.mxu0 0.0
  %3888 = vmatprep.subr.mxu0 0.0
  %3889 = vmatpush1.msra.mxu0 0.0
  %3890 = vmatprep.subr.mxu0 0.0
  %3891 = vmatpush1.msra.mxu0 0.0
  %3892 = vmatprep.subr.mxu0 0.0
  %3893 = vmatpush1.msra.mxu0 0.0
  %3894 = vmatprep.subr.mxu0 0.0
  %3895 = vmatpush1.msra.mxu0 0.0
  %3896 = vmatprep.subr.mxu0 0.0
  %3897 = vmatpush1.msra.mxu0 0.0
  %3898 = vmatprep.mubr.f32.mxu0 0.0
  %3899 = vmatmul.mubr.f32.gmra.mrb[0].mxu0 %v3832
  %v3900 = vpop.f32.mrb[0].mxu0
  %v3901 = vadd.f32 0.0, %v3900
  %v3902 = vpop.f32.mrb[0].mxu0
  %3903 = vdwg.mxu0
  %vm3904 = vcmask 7168
  %3905 = vst.msk [vmem:[%s8] sm:$0xff] %vm3904, %v3901
  // Predicated region
  $region34: #{model_forward.1} parent=0 // pred_check
    _
  $region35: #{model_forward.1} parent=0 // pred_check_branch
    %3907 = sbr.rel (0) target = $region37
  $region36: #{model_forward.1} parent=0 // pred_region
    _
  $region37: #{model_forward.1} parent=0 // pred_fallthru
    _
  // Predicated region
  $region38: #{model_forward.1} parent=0 // pred_check
    _
  $region39: #{model_forward.1} parent=0 // pred_check_branch
    %3909 = sbr.rel (0) target = $region41
  $region40: #{model_forward.1} parent=0 // pred_region
    _
  $region41: #{model_forward.1} parent=0 // pred_fallthru
    _
  // Predicated region
  $region42: #{model_forward.1} parent=0 // pred_check
    _
  $region43: #{model_forward.1} parent=0 // pred_check_branch
    %3911 = sbr.rel (0) target = $region45
  $region44: #{model_forward.1} parent=0 // pred_region
    _
  $region45: #{model_forward.1} parent=0 // pred_fallthru
    _
  // Predicated region
  $region46: #{model_forward.1} parent=0 // pred_check
    _
  $region47: #{model_forward.1} parent=0 // pred_check_branch
    %3913 = sbr.rel (0) target = $region49
  $region48: #{model_forward.1} parent=0 // pred_region
    _
  $region49: #{model_forward.1} parent=0 // pred_fallthru
    _

</llo_original>
